<compile_context>
chip_gen: v6e
topology: v6e:2x2x1
jax: 0.10.0
libtpu: 0.0.40
codegen_flags: <defaults>
</compile_context>

<pallas_src>
import jax
import jax.numpy as jnp
from jax.experimental import pallas as pl
from jax.experimental.pallas import tpu as pltpu

N, C_IN, H, W = 1, 512, 28, 28
C_OUT = 128
EPS = 1e-5
M = N * H * W          # 784
TK = 256               # contraction tile (C_IN = 2 * TK) -> 2 pipelined K-steps
INV_M = 1.0 / M


def _fused_kernel(a_ref, b_ref, w_ref, gamma_ref, beta_ref, o_ref):
    # a_ref, b_ref : (TK, M)          f32  -- channel-major slices of the two inputs
    # w_ref        : (C_OUT, C_IN)    f32  -- full 1x1 conv weight, VMEM-resident
    # gamma_ref    : (C_OUT, 1)       f32
    # beta_ref     : (C_OUT, 1)       f32
    # o_ref        : (C_OUT, M)       f32  -- resident output block, doubles as accumulator
    k = pl.program_id(0)

    @pl.when(k == 0)
    def _():
        o_ref[...] = jnp.zeros_like(o_ref)

    # add + ReLU (VPU) on this C_IN slice; elementwise, so per-slice accumulation is exact.
    x = jnp.maximum(a_ref[...] + b_ref[...], 0.0)                 # (TK, M)

    # 1x1 conv == matmul over channels (MXU); slice the resident weight.
    k_off = pl.multiple_of(k * TK, TK)
    w_slice = w_ref[:, pl.ds(k_off, TK)]                          # (C_OUT, TK)
    o_ref[...] += jnp.dot(w_slice, x, preferred_element_type=jnp.float32)

    @pl.when(k == pl.num_programs(0) - 1)
    def _():
        y = o_ref[...]                                            # (C_OUT, M)
        # Batch statistics over all N*H*W positions (lane-axis reductions).
        mean = jnp.sum(y, axis=1, keepdims=True) * INV_M          # (C_OUT, 1)
        yc = y - mean
        var = jnp.sum(yc * yc, axis=1, keepdims=True) * INV_M     # biased variance
        inv_std = jax.lax.rsqrt(var + EPS)
        scale = gamma_ref[...] * inv_std                          # (C_OUT, 1)
        o_ref[...] = yc * scale + beta_ref[...]


def fused_add_relu_conv_bn(x46, x48, conv_w, gamma, beta):
    """x46, x48: (N, C_IN, H, W) f32. conv_w: (C_OUT, C_IN, 1, 1). Returns (N, C_OUT, H, W)."""
    assert x46.shape[0] == 1, "channel-major reshape below assumes N == 1"
    # N == 1: NCHW is already channel-major (C, H*W); reshapes are layout-free.
    a2d = x46.reshape(C_IN, M)
    b2d = x48.reshape(C_IN, M)
    w2d = conv_w.reshape(C_OUT, C_IN)
    g2d = gamma.reshape(C_OUT, 1)
    be2d = beta.reshape(C_OUT, 1)

    out2d = pl.pallas_call(
        _fused_kernel,
        out_shape=jax.ShapeDtypeStruct((C_OUT, M), jnp.float32),
        grid_spec=pltpu.PrefetchScalarGridSpec(
            num_scalar_prefetch=0,
            grid=(C_IN // TK,),
            in_specs=[
                pl.BlockSpec((TK, M), lambda k: (k, 0)),          # a slice
                pl.BlockSpec((TK, M), lambda k: (k, 0)),          # b slice
                pl.BlockSpec((C_OUT, C_IN), lambda k: (0, 0)),    # full weight, resident
                pl.BlockSpec((C_OUT, 1), lambda k: (0, 0)),       # gamma
                pl.BlockSpec((C_OUT, 1), lambda k: (0, 0)),       # beta
            ],
            out_specs=pl.BlockSpec((C_OUT, M), lambda k: (0, 0)),
        ),
        compiler_params=pltpu.CompilerParams(
            dimension_semantics=("arbitrary",),
        ),
    )(a2d, b2d, w2d, g2d, be2d)

    # (C_OUT, M) -> (N, C_OUT, H, W): pure reshape, no transpose.
    return out2d.reshape(N, C_OUT, H, W)


if __name__ == "__main__":
    key = jax.random.PRNGKey(0)
    k1, k2, k3 = jax.random.split(key, 3)

    # Inputs (shapes implied by the module: [1, 512, 28, 28]).
    x46 = jax.random.normal(k1, (N, C_IN, H, W), dtype=jnp.float32)
    x48 = jax.random.normal(k2, (N, C_IN, H, W), dtype=jnp.float32)

    # Parameters, deterministically initialized in-script.
    # Conv2d(512, 128, 1x1, bias=False): weight (128, 512, 1, 1).
    conv_w = 0.05 * jax.random.normal(k3, (C_OUT, C_IN, 1, 1), dtype=jnp.float32)
    # BatchNorm2d defaults: gamma = 1, beta = 0.
    gamma = jnp.ones((C_OUT,), dtype=jnp.float32)
    beta = jnp.zeros((C_OUT,), dtype=jnp.float32)

    out = fused_add_relu_conv_bn(x46, x48, conv_w, gamma, beta)
    out = jax.block_until_ready(out)

    # Sanity check against a pure-JAX reference (training-mode BN, batch statistics).
    a2d = x46.reshape(C_IN, M)
    b2d = x48.reshape(C_IN, M)
    x = jnp.maximum(a2d + b2d, 0.0)
    y = conv_w.reshape(C_OUT, C_IN) @ x                           # (C_OUT, M)
    mean = y.mean(axis=1, keepdims=True)
    var = ((y - mean) ** 2).mean(axis=1, keepdims=True)
    ref2d = (y - mean) * jax.lax.rsqrt(var + EPS) * gamma[:, None] + beta[:, None]
    ref = ref2d.reshape(N, C_OUT, H, W)

    assert out.shape == (N, C_OUT, H, W)
    assert jnp.allclose(out, ref, atol=1e-4, rtol=1e-4)

    # TODO(synk): running_mean/running_var of BatchNorm2d are not updated (forward
    # activation output only); normalization itself matches PyTorch training mode.

    print("KERNEL_OK")
</pallas_src>

<mosaic_0001>
module attributes {stable_mosaic.version = 11 : i64} {
  func.func @_fused_kernel(%arg0: i32, %arg1: memref<256x784xf32, #tpu.memory_space<vmem>>, %arg2: memref<256x784xf32, #tpu.memory_space<vmem>>, %arg3: memref<128x512xf32, #tpu.memory_space<vmem>>, %arg4: memref<128x1xf32, #tpu.memory_space<vmem>>, %arg5: memref<128x1xf32, #tpu.memory_space<vmem>>, %arg6: memref<128x784xf32, #tpu.memory_space<vmem>>) attributes {dimension_semantics = [#tpu.dimension_semantics<arbitrary>], iteration_bounds = array<i64: 2>, scalar_prefetch = 0 : i64, scratch_operands = 0 : i64, tpu.core_type = #tpu.core_type<tc>, window_params = [{transform_indices = @transform_0, window_bounds = array<i64: 256, 784>}, {transform_indices = @transform_1, window_bounds = array<i64: 256, 784>}, {pipeline_mode = #tpu.pipeline_mode<synchronous>, transform_indices = @transform_2, window_bounds = array<i64: 128, 512>}, {pipeline_mode = #tpu.pipeline_mode<synchronous>, transform_indices = @transform_3, window_bounds = array<i64: 128, 1>}, {pipeline_mode = #tpu.pipeline_mode<synchronous>, transform_indices = @transform_4, window_bounds = array<i64: 128, 1>}, {pipeline_mode = #tpu.pipeline_mode<synchronous>, transform_indices = @transform_5, window_bounds = array<i64: 128, 784>}]} {
    %c0_i32 = arith.constant 0 : i32
    %0 = arith.cmpi eq, %arg0, %c0_i32 : i32
    %1 = arith.extui %0 : i1 to i32
    %c0_i32_0 = arith.constant 0 : i32
    %2 = arith.cmpi ne, %1, %c0_i32_0 : i32
    scf.if %2 {
      %cst_11 = arith.constant 0.000000e+00 : f32
      %19 = vector.broadcast %cst_11 : f32 to vector<128x784xf32>
      %c0_12 = arith.constant 0 : index
      %c0_13 = arith.constant 0 : index
      %20 = vector.load %arg6[%c0_12, %c0_13] : memref<128x784xf32, #tpu.memory_space<vmem>>, vector<128x784xf32>
      tpu.vector_store %arg6[%c0_12, %c0_13], %19 {strides = array<i32>} : memref<128x784xf32, #tpu.memory_space<vmem>>, vector<128x784xf32>,
    } else {
    }
    %c0 = arith.constant 0 : index
    %c0_1 = arith.constant 0 : index
    %3 = vector.load %arg1[%c0, %c0_1] : memref<256x784xf32, #tpu.memory_space<vmem>>, vector<256x784xf32>
    %c0_2 = arith.constant 0 : index
    %c0_3 = arith.constant 0 : index
    %4 = vector.load %arg2[%c0_2, %c0_3] : memref<256x784xf32, #tpu.memory_space<vmem>>, vector<256x784xf32>
    %5 = arith.addf %3, %4 : vector<256x784xf32>
    %cst = arith.constant 0.000000e+00 : f32
    %6 = vector.broadcast %cst : f32 to vector<256x784xf32>
    %7 = arith.maximumf %5, %6 : vector<256x784xf32>
    %c256_i32 = arith.constant 256 : i32
    %8 = arith.muli %arg0, %c256_i32 : i32
    %9 = tpu.assume_multiple %8, 256 : i32
    %c0_4 = arith.constant 0 : index
    %10 = arith.index_cast %9 : i32 to index
    %11 = vector.load %arg3[%c0_4, %10] : memref<128x512xf32, #tpu.memory_space<vmem>>, vector<128x256xf32>
    %c0_5 = arith.constant 0 : index
    %c0_6 = arith.constant 0 : index
    %12 = vector.load %arg6[%c0_5, %c0_6] : memref<128x784xf32, #tpu.memory_space<vmem>>, vector<128x784xf32>
    %cst_7 = arith.constant dense<0.000000e+00> : vector<128x784xf32>
    %13 = tpu.matmul %11, %7, %cst_7 {dimension_numbers = #tpu.dot_dimension_numbers<[1], [0], [0], [1], [0, 0, 1, 1], [], []>} : vector<128x256xf32>, vector<256x784xf32>, vector<128x784xf32> -> vector<128x784xf32>
    %14 = arith.addf %12, %13 : vector<128x784xf32>
    %c0_8 = arith.constant 0 : index
    %c0_9 = arith.constant 0 : index
    %15 = vector.load %arg6[%c0_8, %c0_9] : memref<128x784xf32, #tpu.memory_space<vmem>>, vector<128x784xf32>
    tpu.vector_store %arg6[%c0_8, %c0_9], %14 {strides = array<i32>} : memref<128x784xf32, #tpu.memory_space<vmem>>, vector<128x784xf32>,
    %c1_i32 = arith.constant 1 : i32
    %16 = arith.cmpi eq, %arg0, %c1_i32 : i32
    %17 = arith.extui %16 : i1 to i32
    %c0_i32_10 = arith.constant 0 : i32
    %18 = arith.cmpi ne, %17, %c0_i32_10 : i32
    scf.if %18 {
      %c0_11 = arith.constant 0 : index
      %c0_12 = arith.constant 0 : index
      %19 = vector.load %arg6[%c0_11, %c0_12] : memref<128x784xf32, #tpu.memory_space<vmem>>, vector<128x784xf32>
      %cst_13 = arith.constant dense<0.000000e+00> : vector<128xf32>
      %20 = vector.multi_reduction <add>, %19, %cst_13 [1] : vector<128x784xf32> to vector<128xf32>
      %21 = vector.shape_cast %20 : vector<128xf32> to vector<128x1xf32>
      %cst_14 = arith.constant 0.00127551018 : f32
      %22 = vector.broadcast %cst_14 : f32 to vector<128x1xf32>
      %23 = arith.mulf %21, %22 : vector<128x1xf32>
      %24 = vector.broadcast %23 : vector<128x1xf32> to vector<128x784xf32>
      %25 = arith.subf %19, %24 : vector<128x784xf32>
      %26 = arith.mulf %25, %25 : vector<128x784xf32>
      %cst_15 = arith.constant dense<0.000000e+00> : vector<128xf32>
      %27 = vector.multi_reduction <add>, %26, %cst_15 [1] : vector<128x784xf32> to vector<128xf32>
      %28 = vector.shape_cast %27 : vector<128xf32> to vector<128x1xf32>
      %cst_16 = arith.constant 0.00127551018 : f32
      %29 = vector.broadcast %cst_16 : f32 to vector<128x1xf32>
      %30 = arith.mulf %28, %29 : vector<128x1xf32>
      %cst_17 = arith.constant 9.99999974E-6 : f32
      %31 = vector.broadcast %cst_17 : f32 to vector<128x1xf32>
      %32 = arith.addf %30, %31 : vector<128x1xf32>
      %33 = math.rsqrt %32 : vector<128x1xf32>
      %c0_18 = arith.constant 0 : index
      %c0_19 = arith.constant 0 : index
      %34 = vector.load %arg4[%c0_18, %c0_19] : memref<128x1xf32, #tpu.memory_space<vmem>>, vector<128x1xf32>
      %35 = arith.mulf %34, %33 : vector<128x1xf32>
      %36 = vector.broadcast %35 : vector<128x1xf32> to vector<128x784xf32>
      %37 = arith.mulf %25, %36 : vector<128x784xf32>
      %c0_20 = arith.constant 0 : index
      %c0_21 = arith.constant 0 : index
      %38 = vector.load %arg5[%c0_20, %c0_21] : memref<128x1xf32, #tpu.memory_space<vmem>>, vector<128x1xf32>
      %39 = vector.broadcast %38 : vector<128x1xf32> to vector<128x784xf32>
      %40 = arith.addf %37, %39 : vector<128x784xf32>
      %c0_22 = arith.constant 0 : index
      %c0_23 = arith.constant 0 : index
      %41 = vector.load %arg6[%c0_22, %c0_23] : memref<128x784xf32, #tpu.memory_space<vmem>>, vector<128x784xf32>
      tpu.vector_store %arg6[%c0_22, %c0_23], %40 {strides = array<i32>} : memref<128x784xf32, #tpu.memory_space<vmem>>, vector<128x784xf32>,
    } else {
    }
    return
  }
  func.func @transform_0(%arg0: i32) -> (i32, i32) {
    %c0_i32 = arith.constant 0 : i32
    %c0_i32_0 = arith.constant 0 : i32
    return %arg0, %c0_i32 : i32, i32
  }
  func.func @transform_1(%arg0: i32) -> (i32, i32) {
    %c0_i32 = arith.constant 0 : i32
    %c0_i32_0 = arith.constant 0 : i32
    return %arg0, %c0_i32 : i32, i32
  }
  func.func @transform_2(%arg0: i32) -> (i32, i32) {
    %c0_i32 = arith.constant 0 : i32
    %c0_i32_0 = arith.constant 0 : i32
    %c0_i32_1 = arith.constant 0 : i32
    return %c0_i32, %c0_i32_0 : i32, i32
  }
  func.func @transform_3(%arg0: i32) -> (i32, i32) {
    %c0_i32 = arith.constant 0 : i32
    %c0_i32_0 = arith.constant 0 : i32
    %c0_i32_1 = arith.constant 0 : i32
    return %c0_i32, %c0_i32_0 : i32, i32
  }
  func.func @transform_4(%arg0: i32) -> (i32, i32) {
    %c0_i32 = arith.constant 0 : i32
    %c0_i32_0 = arith.constant 0 : i32
    %c0_i32_1 = arith.constant 0 : i32
    return %c0_i32, %c0_i32_0 : i32, i32
  }
  func.func @transform_5(%arg0: i32) -> (i32, i32) {
    %c0_i32 = arith.constant 0 : i32
    %c0_i32_0 = arith.constant 0 : i32
    %c0_i32_1 = arith.constant 0 : i32
    return %c0_i32, %c0_i32_0 : i32, i32
  }
}

</mosaic_0001>

<llo_original>
// kernel: tpu_custom_call.1
$region0: #{tpu_custom_call.1}
  #allocation0 [shape = 'u32[]', space=smem, size = 0x4, offset = 0x4, fixed_abs, tag = 'smem constant byte address 0x4 - core index']
  #allocation1 [shape = 'u32[144,128]{1,0:T(1,128)}', space=vmem, size = 0x12000, scoped, tag = 'internal scratch']
  %s0 = inlined_call_operand.vmem [shape: f32[512,784], index: 0, kind: input, shape index: {}]
  %s1 = inlined_call_operand.vmem [shape: f32[512,784], index: 1, kind: input, shape index: {}]
  %s2 = inlined_call_operand.vmem [shape: f32[128,512], index: 2, kind: input, shape index: {}]
  %s3 = inlined_call_operand.vmem [shape: f32[128,1], index: 3, kind: input, shape index: {}]
  %s4 = inlined_call_operand.vmem [shape: f32[128,1], index: 4, kind: input, shape index: {}]
  %s5 = inlined_call_operand.vmem [shape: f32[128,784], index: 5, kind: output, shape index: {}]
  %s6 = sld [smem:[#allocation0]]
  $region61: #{tpu_custom_call.1} parent=0
    _
  %s8 = ssub.s32 1, %s6
  %s9 = scalar_select 0, %s8, %s6
  loop: start=0, step=1, limit=4
  $region2: #{tpu_custom_call.1} parent=0 // loop_pre_header
    _
  $region3: #{tpu_custom_call.1} parent=0 // loop_header
    %s11 = sphi 0, %s15
    %p12 = scmp.ge.s32.totalorder %s11, 4
    %s21 = sphi 0, %s23
    %s24 = sphi 0, %s21
    %s25 = sphi 0, %s24
    %s41 = sphi 0, %s25
    %s47 = sphi 0, %s49
    %s50 = sphi 0, %s47
    %s51 = sphi 0, %s50
    %s67 = sphi 0, %s51
    %s71 = sphi 0, %s71
    %s73 = sphi 0, %s71
    %s74 = sphi 0, %s73
    %s88 = sphi 0, %s74
    %s92 = sphi 0, %s92
    %s94 = sphi 0, %s92
    %s95 = sphi 0, %s94
    %s109 = sphi 0, %s95
    %s113 = sphi 0, %s113
    %s115 = sphi 0, %s113
    %s116 = sphi 0, %s115
    %s130 = sphi 0, %s116
    %s134 = sphi 0, %s134
    %s136 = sphi 0, %s134
    %s137 = sphi 0, %s136
    %s151 = sphi 0, %s137
  $region4: #{tpu_custom_call.1} parent=0 // loop_header_branch
    %14 = sbr.rel (%p12) target = $region8
  $region5: #{tpu_custom_call.1} parent=0 // loop_body
    %s16 = ssub.s32 %s11, 1
    %s17 = ssub.s32 %s11, 2
    %s18 = sadd.s32 %s11, 1
    %s19 = ssub.s32 %s11, %s18
    %p20 = scmp.eq.s32.totalorder %s19, 0
    %s22 = sadd.s32 %s21, 1
    %s23 = scalar_select %p20, %s21, %s22
    %p26 = pneg %p20
    %p27 = scmp.eq.s32.totalorder %s11, 1
    %p28 = por %p26, %p27
    %p29 = scmp.ne.s32.totalorder %s21, %s24
    %p30 = scmp.eq.s32.totalorder %s11, 0
    %p31 = por %p29, %p30
    %p32 = scmp.ne.s32.totalorder %s21, %s24
    %p33 = scmp.eq.s32.totalorder %s16, 1
    %p34 = por %p32, %p33
    %p35 = scmp.ne.s32.totalorder %s24, %s25
    %p36 = scmp.eq.s32.totalorder %s16, 0
    %p37 = por %p35, %p36
    %p38 = scmp.ne.s32.totalorder %s24, %s25
    %p39 = scmp.eq.s32.totalorder %s17, 1
    %p40 = por %p38, %p39
    %p42 = scmp.ne.s32.totalorder %s25, %s41
    %p43 = scmp.eq.s32.totalorder %s17, 0
    %p44 = por %p42, %p43
    %s45 = ssub.s32 %s11, %s18
    %p46 = scmp.eq.s32.totalorder %s45, 0
    %s48 = sadd.s32 %s47, 1
    %s49 = scalar_select %p46, %s47, %s48
    %p52 = pneg %p46
    %p53 = scmp.eq.s32.totalorder %s11, 1
    %p54 = por %p52, %p53
    %p55 = scmp.ne.s32.totalorder %s47, %s50
    %p56 = scmp.eq.s32.totalorder %s11, 0
    %p57 = por %p55, %p56
    %p58 = scmp.ne.s32.totalorder %s47, %s50
    %p59 = scmp.eq.s32.totalorder %s16, 1
    %p60 = por %p58, %p59
    %p61 = scmp.ne.s32.totalorder %s50, %s51
    %p62 = scmp.eq.s32.totalorder %s16, 0
    %p63 = por %p61, %p62
    %p64 = scmp.ne.s32.totalorder %s50, %s51
    %p65 = scmp.eq.s32.totalorder %s17, 1
    %p66 = por %p64, %p65
    %p68 = scmp.ne.s32.totalorder %s51, %s67
    %p69 = scmp.eq.s32.totalorder %s17, 0
    %p70 = por %p68, %p69
    %s72 = sadd.s32 %s71, 1
    %p75 = scmp.eq.s32.totalorder %s11, 1
    %p76 = scmp.ne.s32.totalorder %s71, %s73
    %p77 = scmp.eq.s32.totalorder %s11, 0
    %p78 = por %p76, %p77
    %p79 = scmp.ne.s32.totalorder %s71, %s73
    %p80 = scmp.eq.s32.totalorder %s16, 1
    %p81 = por %p79, %p80
    %p82 = scmp.ne.s32.totalorder %s73, %s74
    %p83 = scmp.eq.s32.totalorder %s16, 0
    %p84 = por %p82, %p83
    %p85 = scmp.ne.s32.totalorder %s73, %s74
    %p86 = scmp.eq.s32.totalorder %s17, 1
    %p87 = por %p85, %p86
    %p89 = scmp.ne.s32.totalorder %s74, %s88
    %p90 = scmp.eq.s32.totalorder %s17, 0
    %p91 = por %p89, %p90
    %s93 = sadd.s32 %s92, 1
    %p96 = scmp.eq.s32.totalorder %s11, 1
    %p97 = scmp.ne.s32.totalorder %s92, %s94
    %p98 = scmp.eq.s32.totalorder %s11, 0
    %p99 = por %p97, %p98
    %p100 = scmp.ne.s32.totalorder %s92, %s94
    %p101 = scmp.eq.s32.totalorder %s16, 1
    %p102 = por %p100, %p101
    %p103 = scmp.ne.s32.totalorder %s94, %s95
    %p104 = scmp.eq.s32.totalorder %s16, 0
    %p105 = por %p103, %p104
    %p106 = scmp.ne.s32.totalorder %s94, %s95
    %p107 = scmp.eq.s32.totalorder %s17, 1
    %p108 = por %p106, %p107
    %p110 = scmp.ne.s32.totalorder %s95, %s109
    %p111 = scmp.eq.s32.totalorder %s17, 0
    %p112 = por %p110, %p111
    %s114 = sadd.s32 %s113, 1
    %p117 = scmp.eq.s32.totalorder %s11, 1
    %p118 = scmp.ne.s32.totalorder %s113, %s115
    %p119 = scmp.eq.s32.totalorder %s11, 0
    %p120 = por %p118, %p119
    %p121 = scmp.ne.s32.totalorder %s113, %s115
    %p122 = scmp.eq.s32.totalorder %s16, 1
    %p123 = por %p121, %p122
    %p124 = scmp.ne.s32.totalorder %s115, %s116
    %p125 = scmp.eq.s32.totalorder %s16, 0
    %p126 = por %p124, %p125
    %p127 = scmp.ne.s32.totalorder %s115, %s116
    %p128 = scmp.eq.s32.totalorder %s17, 1
    %p129 = por %p127, %p128
    %p131 = scmp.ne.s32.totalorder %s116, %s130
    %p132 = scmp.eq.s32.totalorder %s17, 0
    %p133 = por %p131, %p132
    %s135 = sadd.s32 %s134, 1
    %p138 = scmp.eq.s32.totalorder %s11, 1
    %p139 = scmp.ne.s32.totalorder %s134, %s136
    %p140 = scmp.eq.s32.totalorder %s11, 0
    %p141 = por %p139, %p140
    %p142 = scmp.ne.s32.totalorder %s134, %s136
    %p143 = scmp.eq.s32.totalorder %s16, 1
    %p144 = por %p142, %p143
    %p145 = scmp.ne.s32.totalorder %s136, %s137
    %p146 = scmp.eq.s32.totalorder %s16, 0
    %p147 = por %p145, %p146
    %p148 = scmp.ne.s32.totalorder %s136, %s137
    %p149 = scmp.eq.s32.totalorder %s17, 1
    %p150 = por %p148, %p149
    %p152 = scmp.ne.s32.totalorder %s137, %s151
    %p153 = scmp.eq.s32.totalorder %s17, 0
    %p154 = por %p152, %p153
    %p155 = scmp.le.s32.totalorder 1, %s11
    %p156 = scmp.lt.s32.totalorder %s11, 3
    %p157 = pnand %p155, %p156
    %p158 = pneg %p157
    // Predicated region
    $region9: #{tpu_custom_call.1} parent=5 // pred_check
      _
    $region10: #{tpu_custom_call.1} parent=5 // pred_check_branch
      %160 = sbr.rel (%p157) target = $region12
    $region11: #{tpu_custom_call.1} parent=5 // pred_region
      %s161 = ssub.s32 %s11, 1
      // Predicated region
      $region13: #{tpu_custom_call.1} parent=11 // pred_check
        %p162 = pneg %p84
      $region14: #{tpu_custom_call.1} parent=11 // pred_check_branch
        %164 = sbr.rel (%p162) target = $region16
      $region15: #{tpu_custom_call.1} parent=11 // pred_region
        _
      $region16: #{tpu_custom_call.1} parent=11 // pred_fallthru
        _
      // Predicated region
      $region17: #{tpu_custom_call.1} parent=11 // pred_check
        %p165 = pneg %p105
      $region18: #{tpu_custom_call.1} parent=11 // pred_check_branch
        %167 = sbr.rel (%p165) target = $region20
      $region19: #{tpu_custom_call.1} parent=11 // pred_region
        _
      $region20: #{tpu_custom_call.1} parent=11 // pred_fallthru
        _
      // Predicated region
      $region21: #{tpu_custom_call.1} parent=11 // pred_check
        %p168 = pneg %p126
      $region22: #{tpu_custom_call.1} parent=11 // pred_check_branch
        %170 = sbr.rel (%p168) target = $region24
      $region23: #{tpu_custom_call.1} parent=11 // pred_region
        _
      $region24: #{tpu_custom_call.1} parent=11 // pred_fallthru
        _
    $region12: #{tpu_custom_call.1} parent=5 // pred_fallthru
      _
    %p171 = scmp.lt.s32.totalorder %s11, 2
    // Predicated region
    $region25: #{tpu_custom_call.1} parent=5 // pred_check
      %p172 = pneg %p171
    $region26: #{tpu_custom_call.1} parent=5 // pred_check_branch
      %174 = sbr.rel (%p172) target = $region28
    $region27: #{tpu_custom_call.1} parent=5 // pred_region
      // Predicated region
      $region29: #{tpu_custom_call.1} parent=27 // pred_check
        %p175 = pneg %p31
      $region30: #{tpu_custom_call.1} parent=27 // pred_check_branch
        %177 = sbr.rel (%p175) target = $region32
      $region31: #{tpu_custom_call.1} parent=27 // pred_region
        %s178 = smul.u32 32, %s11
        %p179 = scmp.lt.s32.totalorder %s178, 63
        %s180 = scalar_select %p179, %s178, 63
        %s181 = smul.addr %s180, 7
        %s182 = smul.addr %s181, 8
        %s183 = scalar_lea.vmem %s0, %s182
        %s184 = smul.u32 32, %s11
      $region32: #{tpu_custom_call.1} parent=27 // pred_fallthru
        _
      // Predicated region
      $region33: #{tpu_custom_call.1} parent=27 // pred_check
        %p185 = pneg %p57
      $region34: #{tpu_custom_call.1} parent=27 // pred_check_branch
        %187 = sbr.rel (%p185) target = $region36
      $region35: #{tpu_custom_call.1} parent=27 // pred_region
        %s188 = smul.u32 32, %s11
        %p189 = scmp.lt.s32.totalorder %s188, 63
        %s190 = scalar_select %p189, %s188, 63
        %s191 = smul.addr %s190, 7
        %s192 = smul.addr %s191, 8
        %s193 = scalar_lea.vmem %s1, %s192
        %s194 = smul.u32 32, %s11
      $region36: #{tpu_custom_call.1} parent=27 // pred_fallthru
        _
    $region28: #{tpu_custom_call.1} parent=5 // pred_fallthru
      _
    %p195 = scmp.le.s32.totalorder 1, %s11
    %p196 = scmp.lt.s32.totalorder %s11, 3
    %p197 = pnand %p195, %p196
    %p198 = pneg %p197
    // Predicated region
    $region37: #{tpu_custom_call.1} parent=5 // pred_check
      _
    $region38: #{tpu_custom_call.1} parent=5 // pred_check_branch
      %200 = sbr.rel (%p197) target = $region40
    $region39: #{tpu_custom_call.1} parent=5 // pred_region
      %s201 = ssub.s32 %s11, 1
      %s202 = smul.u32 32, %s16
      %p203 = scmp.lt.s32.totalorder %s202, 63
      %s204 = scalar_select %p203, %s202, 63
      %s205 = smul.addr %s204, 7
      %s206 = smul.addr %s205, 8
      %s207 = scalar_lea.vmem %s0, %s206
      %p208 = pneg %p37
      %p209 = pneg %p34
      %s210 = smul.u32 32, %s16
      %p211 = scmp.lt.s32.totalorder %s210, 63
      %s212 = scalar_select %p211, %s210, 63
      %s213 = smul.addr %s212, 7
      %s214 = smul.addr %s213, 8
      %s215 = scalar_lea.vmem %s1, %s214
      %p216 = pneg %p63
      %p217 = pneg %p60
      %p218 = pneg %p84
      %p219 = pneg %p81
      %p220 = pneg %p105
      %p221 = pneg %p102
      %p222 = pneg %p126
      %p223 = pneg %p123
      %p224 = pneg %p147
      %p225 = pneg %p144
      %s226 = smul.u32 32, %s16
      %p227 = scmp.lt.s32.totalorder %s226, 63
      %s228 = scalar_select %p227, %s226, 63
      %s229 = smul.addr %s228, 7
      %s230 = smul.addr %s229, 8
      %s231 = scalar_lea.vmem %s0, %s230
      %s232 = smul.u32 32, %s16
      %s233 = smul.u32 32, %s16
      %p234 = scmp.lt.s32.totalorder %s233, 63
      %s235 = scalar_select %p234, %s233, 63
      %s236 = smul.addr %s235, 7
      %s237 = smul.addr %s236, 8
      %s238 = scalar_lea.vmem %s1, %s237
      %s239 = smul.u32 32, %s16
      %p240 = scmp.eq.s32.totalorder %s16, 0
      // Predicated region
      $region41: #{tpu_custom_call.1} parent=39 // pred_check
        %p241 = pneg %p240
      $region42: #{tpu_custom_call.1} parent=39 // pred_check_branch
        %243 = sbr.rel (%p241) target = $region44
      $region43: #{tpu_custom_call.1} parent=39 // pred_region
        %244 = vst [vmem:[%s5] sm:$0xff] 0.0
        %245 = vst [vmem:[%s5 + $0x8] sm:$0xff] 0.0
        %246 = vst [vmem:[%s5 + $0x10] sm:$0xff] 0.0
        %247 = vst [vmem:[%s5 + $0x18] sm:$0xff] 0.0
        %248 = vst [vmem:[%s5 + $0x20] sm:$0xff] 0.0
        %249 = vst [vmem:[%s5 + $0x28] sm:$0xff] 0.0
        %vm250 = vcmask 130048
        %251 = vst.msk [vmem:[%s5 + $0x30] sm:$0xff] %vm250, 0.0
        %252 = vst [vmem:[%s5 + $0x38] sm:$0xff] 0.0
        %253 = vst [vmem:[%s5 + $0x40] sm:$0xff] 0.0
        %254 = vst [vmem:[%s5 + $0x48] sm:$0xff] 0.0
        %255 = vst [vmem:[%s5 + $0x50] sm:$0xff] 0.0
        %256 = vst [vmem:[%s5 + $0x58] sm:$0xff] 0.0
        %257 = vst [vmem:[%s5 + $0x60] sm:$0xff] 0.0
        %258 = vst.msk [vmem:[%s5 + $0x68] sm:$0xff] %vm250, 0.0
        %259 = vst [vmem:[%s5 + $0x70] sm:$0xff] 0.0
        %260 = vst [vmem:[%s5 + $0x78] sm:$0xff] 0.0
        %261 = vst [vmem:[%s5 + $0x80] sm:$0xff] 0.0
        %262 = vst [vmem:[%s5 + $0x88] sm:$0xff] 0.0
        %263 = vst [vmem:[%s5 + $0x90] sm:$0xff] 0.0
        %264 = vst [vmem:[%s5 + $0x98] sm:$0xff] 0.0
        %265 = vst.msk [vmem:[%s5 + $0xa0] sm:$0xff] %vm250, 0.0
        %266 = vst [vmem:[%s5 + $0xa8] sm:$0xff] 0.0
        %267 = vst [vmem:[%s5 + $0xb0] sm:$0xff] 0.0
        %268 = vst [vmem:[%s5 + $0xb8] sm:$0xff] 0.0
        %269 = vst [vmem:[%s5 + $0xc0] sm:$0xff] 0.0
        %270 = vst [vmem:[%s5 + $0xc8] sm:$0xff] 0.0
        %271 = vst [vmem:[%s5 + $0xd0] sm:$0xff] 0.0
        %272 = vst.msk [vmem:[%s5 + $0xd8] sm:$0xff] %vm250, 0.0
        %273 = vst [vmem:[%s5 + $0xe0] sm:$0xff] 0.0
        %274 = vst [vmem:[%s5 + $0xe8] sm:$0xff] 0.0
        %275 = vst [vmem:[%s5 + $0xf0] sm:$0xff] 0.0
        %276 = vst [vmem:[%s5 + $0xf8] sm:$0xff] 0.0
        %277 = vst [vmem:[%s5 + $0x100] sm:$0xff] 0.0
        %278 = vst [vmem:[%s5 + $0x108] sm:$0xff] 0.0
        %279 = vst.msk [vmem:[%s5 + $0x110] sm:$0xff] %vm250, 0.0
        %280 = vst [vmem:[%s5 + $0x118] sm:$0xff] 0.0
        %281 = vst [vmem:[%s5 + $0x120] sm:$0xff] 0.0
        %282 = vst [vmem:[%s5 + $0x128] sm:$0xff] 0.0
        %283 = vst [vmem:[%s5 + $0x130] sm:$0xff] 0.0
        %284 = vst [vmem:[%s5 + $0x138] sm:$0xff] 0.0
        %285 = vst [vmem:[%s5 + $0x140] sm:$0xff] 0.0
        %286 = vst.msk [vmem:[%s5 + $0x148] sm:$0xff] %vm250, 0.0
        %287 = vst [vmem:[%s5 + $0x150] sm:$0xff] 0.0
        %288 = vst [vmem:[%s5 + $0x158] sm:$0xff] 0.0
        %289 = vst [vmem:[%s5 + $0x160] sm:$0xff] 0.0
        %290 = vst [vmem:[%s5 + $0x168] sm:$0xff] 0.0
        %291 = vst [vmem:[%s5 + $0x170] sm:$0xff] 0.0
        %292 = vst [vmem:[%s5 + $0x178] sm:$0xff] 0.0
        %293 = vst.msk [vmem:[%s5 + $0x180] sm:$0xff] %vm250, 0.0
        %294 = vst [vmem:[%s5 + $0x188] sm:$0xff] 0.0
        %295 = vst [vmem:[%s5 + $0x190] sm:$0xff] 0.0
        %296 = vst [vmem:[%s5 + $0x198] sm:$0xff] 0.0
        %297 = vst [vmem:[%s5 + $0x1a0] sm:$0xff] 0.0
        %298 = vst [vmem:[%s5 + $0x1a8] sm:$0xff] 0.0
        %299 = vst [vmem:[%s5 + $0x1b0] sm:$0xff] 0.0
        %300 = vst.msk [vmem:[%s5 + $0x1b8] sm:$0xff] %vm250, 0.0
        %301 = vst [vmem:[%s5 + $0x1c0] sm:$0xff] 0.0
        %302 = vst [vmem:[%s5 + $0x1c8] sm:$0xff] 0.0
        %303 = vst [vmem:[%s5 + $0x1d0] sm:$0xff] 0.0
        %304 = vst [vmem:[%s5 + $0x1d8] sm:$0xff] 0.0
        %305 = vst [vmem:[%s5 + $0x1e0] sm:$0xff] 0.0
        %306 = vst [vmem:[%s5 + $0x1e8] sm:$0xff] 0.0
        %307 = vst.msk [vmem:[%s5 + $0x1f0] sm:$0xff] %vm250, 0.0
        %308 = vst [vmem:[%s5 + $0x1f8] sm:$0xff] 0.0
        %309 = vst [vmem:[%s5 + $0x200] sm:$0xff] 0.0
        %310 = vst [vmem:[%s5 + $0x208] sm:$0xff] 0.0
        %311 = vst [vmem:[%s5 + $0x210] sm:$0xff] 0.0
        %312 = vst [vmem:[%s5 + $0x218] sm:$0xff] 0.0
        %313 = vst [vmem:[%s5 + $0x220] sm:$0xff] 0.0
        %314 = vst.msk [vmem:[%s5 + $0x228] sm:$0xff] %vm250, 0.0
        %315 = vst [vmem:[%s5 + $0x230] sm:$0xff] 0.0
        %316 = vst [vmem:[%s5 + $0x238] sm:$0xff] 0.0
        %317 = vst [vmem:[%s5 + $0x240] sm:$0xff] 0.0
        %318 = vst [vmem:[%s5 + $0x248] sm:$0xff] 0.0
        %319 = vst [vmem:[%s5 + $0x250] sm:$0xff] 0.0
        %320 = vst [vmem:[%s5 + $0x258] sm:$0xff] 0.0
        %321 = vst.msk [vmem:[%s5 + $0x260] sm:$0xff] %vm250, 0.0
        %322 = vst [vmem:[%s5 + $0x268] sm:$0xff] 0.0
        %323 = vst [vmem:[%s5 + $0x270] sm:$0xff] 0.0
        %324 = vst [vmem:[%s5 + $0x278] sm:$0xff] 0.0
        %325 = vst [vmem:[%s5 + $0x280] sm:$0xff] 0.0
        %326 = vst [vmem:[%s5 + $0x288] sm:$0xff] 0.0
        %327 = vst [vmem:[%s5 + $0x290] sm:$0xff] 0.0
        %328 = vst.msk [vmem:[%s5 + $0x298] sm:$0xff] %vm250, 0.0
        %329 = vst [vmem:[%s5 + $0x2a0] sm:$0xff] 0.0
        %330 = vst [vmem:[%s5 + $0x2a8] sm:$0xff] 0.0
        %331 = vst [vmem:[%s5 + $0x2b0] sm:$0xff] 0.0
        %332 = vst [vmem:[%s5 + $0x2b8] sm:$0xff] 0.0
        %333 = vst [vmem:[%s5 + $0x2c0] sm:$0xff] 0.0
        %334 = vst [vmem:[%s5 + $0x2c8] sm:$0xff] 0.0
        %335 = vst.msk [vmem:[%s5 + $0x2d0] sm:$0xff] %vm250, 0.0
        %336 = vst [vmem:[%s5 + $0x2d8] sm:$0xff] 0.0
        %337 = vst [vmem:[%s5 + $0x2e0] sm:$0xff] 0.0
        %338 = vst [vmem:[%s5 + $0x2e8] sm:$0xff] 0.0
        %339 = vst [vmem:[%s5 + $0x2f0] sm:$0xff] 0.0
        %340 = vst [vmem:[%s5 + $0x2f8] sm:$0xff] 0.0
        %341 = vst [vmem:[%s5 + $0x300] sm:$0xff] 0.0
        %342 = vst.msk [vmem:[%s5 + $0x308] sm:$0xff] %vm250, 0.0
        %343 = vst [vmem:[%s5 + $0x310] sm:$0xff] 0.0
        %344 = vst [vmem:[%s5 + $0x318] sm:$0xff] 0.0
        %345 = vst [vmem:[%s5 + $0x320] sm:$0xff] 0.0
        %346 = vst [vmem:[%s5 + $0x328] sm:$0xff] 0.0
        %347 = vst [vmem:[%s5 + $0x330] sm:$0xff] 0.0
        %348 = vst [vmem:[%s5 + $0x338] sm:$0xff] 0.0
        %349 = vst.msk [vmem:[%s5 + $0x340] sm:$0xff] %vm250, 0.0
        %350 = vst [vmem:[%s5 + $0x348] sm:$0xff] 0.0
        %351 = vst [vmem:[%s5 + $0x350] sm:$0xff] 0.0
        %352 = vst [vmem:[%s5 + $0x358] sm:$0xff] 0.0
        %353 = vst [vmem:[%s5 + $0x360] sm:$0xff] 0.0
        %354 = vst [vmem:[%s5 + $0x368] sm:$0xff] 0.0
        %355 = vst [vmem:[%s5 + $0x370] sm:$0xff] 0.0
        %356 = vst.msk [vmem:[%s5 + $0x378] sm:$0xff] %vm250, 0.0
      $region44: #{tpu_custom_call.1} parent=39 // pred_fallthru
        _
      %v357 = vld [vmem:[%s231] sm:$0xff]
      %v358 = vld [vmem:[%s231 + $0x8] sm:$0xff]
      %v359 = vld [vmem:[%s231 + $0x10] sm:$0xff]
      %v360 = vld [vmem:[%s231 + $0x18] sm:$0xff]
      %v361 = vld [vmem:[%s231 + $0x20] sm:$0xff]
      %v362 = vld [vmem:[%s231 + $0x28] sm:$0xff]
      %v363 = vld [vmem:[%s231 + $0x30] sm:$0xff]
      %v364 = vld [vmem:[%s231 + $0x38] sm:$0xff]
      %v365 = vld [vmem:[%s231 + $0x40] sm:$0xff]
      %v366 = vld [vmem:[%s231 + $0x48] sm:$0xff]
      %v367 = vld [vmem:[%s231 + $0x50] sm:$0xff]
      %v368 = vld [vmem:[%s231 + $0x58] sm:$0xff]
      %v369 = vld [vmem:[%s231 + $0x60] sm:$0xff]
      %v370 = vld [vmem:[%s231 + $0x68] sm:$0xff]
      %v371 = vld [vmem:[%s231 + $0x70] sm:$0xff]
      %v372 = vld [vmem:[%s231 + $0x78] sm:$0xff]
      %v373 = vld [vmem:[%s231 + $0x80] sm:$0xff]
      %v374 = vld [vmem:[%s231 + $0x88] sm:$0xff]
      %v375 = vld [vmem:[%s231 + $0x90] sm:$0xff]
      %v376 = vld [vmem:[%s231 + $0x98] sm:$0xff]
      %v377 = vld [vmem:[%s231 + $0xa0] sm:$0xff]
      %v378 = vld [vmem:[%s231 + $0xa8] sm:$0xff]
      %v379 = vld [vmem:[%s231 + $0xb0] sm:$0xff]
      %v380 = vld [vmem:[%s231 + $0xb8] sm:$0xff]
      %v381 = vld [vmem:[%s231 + $0xc0] sm:$0xff]
      %v382 = vld [vmem:[%s231 + $0xc8] sm:$0xff]
      %v383 = vld [vmem:[%s231 + $0xd0] sm:$0xff]
      %v384 = vld [vmem:[%s231 + $0xd8] sm:$0xff]
      %v385 = vld [vmem:[%s231 + $0xe0] sm:$0xff]
      %v386 = vld [vmem:[%s231 + $0xe8] sm:$0xff]
      %v387 = vld [vmem:[%s231 + $0xf0] sm:$0xff]
      %v388 = vld [vmem:[%s231 + $0xf8] sm:$0xff]
      %v389 = vld [vmem:[%s231 + $0x100] sm:$0xff]
      %v390 = vld [vmem:[%s231 + $0x108] sm:$0xff]
      %v391 = vld [vmem:[%s231 + $0x110] sm:$0xff]
      %v392 = vld [vmem:[%s231 + $0x118] sm:$0xff]
      %v393 = vld [vmem:[%s231 + $0x120] sm:$0xff]
      %v394 = vld [vmem:[%s231 + $0x128] sm:$0xff]
      %v395 = vld [vmem:[%s231 + $0x130] sm:$0xff]
      %v396 = vld [vmem:[%s231 + $0x138] sm:$0xff]
      %v397 = vld [vmem:[%s231 + $0x140] sm:$0xff]
      %v398 = vld [vmem:[%s231 + $0x148] sm:$0xff]
      %v399 = vld [vmem:[%s231 + $0x150] sm:$0xff]
      %v400 = vld [vmem:[%s231 + $0x158] sm:$0xff]
      %v401 = vld [vmem:[%s231 + $0x160] sm:$0xff]
      %v402 = vld [vmem:[%s231 + $0x168] sm:$0xff]
      %v403 = vld [vmem:[%s231 + $0x170] sm:$0xff]
      %v404 = vld [vmem:[%s231 + $0x178] sm:$0xff]
      %v405 = vld [vmem:[%s231 + $0x180] sm:$0xff]
      %v406 = vld [vmem:[%s231 + $0x188] sm:$0xff]
      %v407 = vld [vmem:[%s231 + $0x190] sm:$0xff]
      %v408 = vld [vmem:[%s231 + $0x198] sm:$0xff]
      %v409 = vld [vmem:[%s231 + $0x1a0] sm:$0xff]
      %v410 = vld [vmem:[%s231 + $0x1a8] sm:$0xff]
      %v411 = vld [vmem:[%s231 + $0x1b0] sm:$0xff]
      %v412 = vld [vmem:[%s231 + $0x1b8] sm:$0xff]
      %v413 = vld [vmem:[%s231 + $0x1c0] sm:$0xff]
      %v414 = vld [vmem:[%s231 + $0x1c8] sm:$0xff]
      %v415 = vld [vmem:[%s231 + $0x1d0] sm:$0xff]
      %v416 = vld [vmem:[%s231 + $0x1d8] sm:$0xff]
      %v417 = vld [vmem:[%s231 + $0x1e0] sm:$0xff]
      %v418 = vld [vmem:[%s231 + $0x1e8] sm:$0xff]
      %v419 = vld [vmem:[%s231 + $0x1f0] sm:$0xff]
      %v420 = vld [vmem:[%s231 + $0x1f8] sm:$0xff]
      %v421 = vld [vmem:[%s231 + $0x200] sm:$0xff]
      %v422 = vld [vmem:[%s231 + $0x208] sm:$0xff]
      %v423 = vld [vmem:[%s231 + $0x210] sm:$0xff]
      %v424 = vld [vmem:[%s231 + $0x218] sm:$0xff]
      %v425 = vld [vmem:[%s231 + $0x220] sm:$0xff]
      %v426 = vld [vmem:[%s231 + $0x228] sm:$0xff]
      %v427 = vld [vmem:[%s231 + $0x230] sm:$0xff]
      %v428 = vld [vmem:[%s231 + $0x238] sm:$0xff]
      %v429 = vld [vmem:[%s231 + $0x240] sm:$0xff]
      %v430 = vld [vmem:[%s231 + $0x248] sm:$0xff]
      %v431 = vld [vmem:[%s231 + $0x250] sm:$0xff]
      %v432 = vld [vmem:[%s231 + $0x258] sm:$0xff]
      %v433 = vld [vmem:[%s231 + $0x260] sm:$0xff]
      %v434 = vld [vmem:[%s231 + $0x268] sm:$0xff]
      %v435 = vld [vmem:[%s231 + $0x270] sm:$0xff]
      %v436 = vld [vmem:[%s231 + $0x278] sm:$0xff]
      %v437 = vld [vmem:[%s231 + $0x280] sm:$0xff]
      %v438 = vld [vmem:[%s231 + $0x288] sm:$0xff]
      %v439 = vld [vmem:[%s231 + $0x290] sm:$0xff]
      %v440 = vld [vmem:[%s231 + $0x298] sm:$0xff]
      %v441 = vld [vmem:[%s231 + $0x2a0] sm:$0xff]
      %v442 = vld [vmem:[%s231 + $0x2a8] sm:$0xff]
      %v443 = vld [vmem:[%s231 + $0x2b0] sm:$0xff]
      %v444 = vld [vmem:[%s231 + $0x2b8] sm:$0xff]
      %v445 = vld [vmem:[%s231 + $0x2c0] sm:$0xff]
      %v446 = vld [vmem:[%s231 + $0x2c8] sm:$0xff]
      %v447 = vld [vmem:[%s231 + $0x2d0] sm:$0xff]
      %v448 = vld [vmem:[%s231 + $0x2d8] sm:$0xff]
      %v449 = vld [vmem:[%s231 + $0x2e0] sm:$0xff]
      %v450 = vld [vmem:[%s231 + $0x2e8] sm:$0xff]
      %v451 = vld [vmem:[%s231 + $0x2f0] sm:$0xff]
      %v452 = vld [vmem:[%s231 + $0x2f8] sm:$0xff]
      %v453 = vld [vmem:[%s231 + $0x300] sm:$0xff]
      %v454 = vld [vmem:[%s231 + $0x308] sm:$0xff]
      %v455 = vld [vmem:[%s231 + $0x310] sm:$0xff]
      %v456 = vld [vmem:[%s231 + $0x318] sm:$0xff]
      %v457 = vld [vmem:[%s231 + $0x320] sm:$0xff]
      %v458 = vld [vmem:[%s231 + $0x328] sm:$0xff]
      %v459 = vld [vmem:[%s231 + $0x330] sm:$0xff]
      %v460 = vld [vmem:[%s231 + $0x338] sm:$0xff]
      %v461 = vld [vmem:[%s231 + $0x340] sm:$0xff]
      %v462 = vld [vmem:[%s231 + $0x348] sm:$0xff]
      %v463 = vld [vmem:[%s231 + $0x350] sm:$0xff]
      %v464 = vld [vmem:[%s231 + $0x358] sm:$0xff]
      %v465 = vld [vmem:[%s231 + $0x360] sm:$0xff]
      %v466 = vld [vmem:[%s231 + $0x368] sm:$0xff]
      %v467 = vld [vmem:[%s231 + $0x370] sm:$0xff]
      %v468 = vld [vmem:[%s231 + $0x378] sm:$0xff]
      %v469 = vld [vmem:[%s231 + $0x380] sm:$0xff]
      %v470 = vld [vmem:[%s231 + $0x388] sm:$0xff]
      %v471 = vld [vmem:[%s231 + $0x390] sm:$0xff]
      %v472 = vld [vmem:[%s231 + $0x398] sm:$0xff]
      %v473 = vld [vmem:[%s231 + $0x3a0] sm:$0xff]
      %v474 = vld [vmem:[%s231 + $0x3a8] sm:$0xff]
      %v475 = vld [vmem:[%s231 + $0x3b0] sm:$0xff]
      %v476 = vld [vmem:[%s231 + $0x3b8] sm:$0xff]
      %v477 = vld [vmem:[%s231 + $0x3c0] sm:$0xff]
      %v478 = vld [vmem:[%s231 + $0x3c8] sm:$0xff]
      %v479 = vld [vmem:[%s231 + $0x3d0] sm:$0xff]
      %v480 = vld [vmem:[%s231 + $0x3d8] sm:$0xff]
      %v481 = vld [vmem:[%s231 + $0x3e0] sm:$0xff]
      %v482 = vld [vmem:[%s231 + $0x3e8] sm:$0xff]
      %v483 = vld [vmem:[%s231 + $0x3f0] sm:$0xff]
      %v484 = vld [vmem:[%s231 + $0x3f8] sm:$0xff]
      %v485 = vld [vmem:[%s231 + $0x400] sm:$0xff]
      %v486 = vld [vmem:[%s231 + $0x408] sm:$0xff]
      %v487 = vld [vmem:[%s231 + $0x410] sm:$0xff]
      %v488 = vld [vmem:[%s231 + $0x418] sm:$0xff]
      %v489 = vld [vmem:[%s231 + $0x420] sm:$0xff]
      %v490 = vld [vmem:[%s231 + $0x428] sm:$0xff]
      %v491 = vld [vmem:[%s231 + $0x430] sm:$0xff]
      %v492 = vld [vmem:[%s231 + $0x438] sm:$0xff]
      %v493 = vld [vmem:[%s231 + $0x440] sm:$0xff]
      %v494 = vld [vmem:[%s231 + $0x448] sm:$0xff]
      %v495 = vld [vmem:[%s231 + $0x450] sm:$0xff]
      %v496 = vld [vmem:[%s231 + $0x458] sm:$0xff]
      %v497 = vld [vmem:[%s231 + $0x460] sm:$0xff]
      %v498 = vld [vmem:[%s231 + $0x468] sm:$0xff]
      %v499 = vld [vmem:[%s231 + $0x470] sm:$0xff]
      %v500 = vld [vmem:[%s231 + $0x478] sm:$0xff]
      %v501 = vld [vmem:[%s231 + $0x480] sm:$0xff]
      %v502 = vld [vmem:[%s231 + $0x488] sm:$0xff]
      %v503 = vld [vmem:[%s231 + $0x490] sm:$0xff]
      %v504 = vld [vmem:[%s231 + $0x498] sm:$0xff]
      %v505 = vld [vmem:[%s231 + $0x4a0] sm:$0xff]
      %v506 = vld [vmem:[%s231 + $0x4a8] sm:$0xff]
      %v507 = vld [vmem:[%s231 + $0x4b0] sm:$0xff]
      %v508 = vld [vmem:[%s231 + $0x4b8] sm:$0xff]
      %v509 = vld [vmem:[%s231 + $0x4c0] sm:$0xff]
      %v510 = vld [vmem:[%s231 + $0x4c8] sm:$0xff]
      %v511 = vld [vmem:[%s231 + $0x4d0] sm:$0xff]
      %v512 = vld [vmem:[%s231 + $0x4d8] sm:$0xff]
      %v513 = vld [vmem:[%s231 + $0x4e0] sm:$0xff]
      %v514 = vld [vmem:[%s231 + $0x4e8] sm:$0xff]
      %v515 = vld [vmem:[%s231 + $0x4f0] sm:$0xff]
      %v516 = vld [vmem:[%s231 + $0x4f8] sm:$0xff]
      %v517 = vld [vmem:[%s231 + $0x500] sm:$0xff]
      %v518 = vld [vmem:[%s231 + $0x508] sm:$0xff]
      %v519 = vld [vmem:[%s231 + $0x510] sm:$0xff]
      %v520 = vld [vmem:[%s231 + $0x518] sm:$0xff]
      %v521 = vld [vmem:[%s231 + $0x520] sm:$0xff]
      %v522 = vld [vmem:[%s231 + $0x528] sm:$0xff]
      %v523 = vld [vmem:[%s231 + $0x530] sm:$0xff]
      %v524 = vld [vmem:[%s231 + $0x538] sm:$0xff]
      %v525 = vld [vmem:[%s231 + $0x540] sm:$0xff]
      %v526 = vld [vmem:[%s231 + $0x548] sm:$0xff]
      %v527 = vld [vmem:[%s231 + $0x550] sm:$0xff]
      %v528 = vld [vmem:[%s231 + $0x558] sm:$0xff]
      %v529 = vld [vmem:[%s231 + $0x560] sm:$0xff]
      %v530 = vld [vmem:[%s231 + $0x568] sm:$0xff]
      %v531 = vld [vmem:[%s231 + $0x570] sm:$0xff]
      %v532 = vld [vmem:[%s231 + $0x578] sm:$0xff]
      %v533 = vld [vmem:[%s231 + $0x580] sm:$0xff]
      %v534 = vld [vmem:[%s231 + $0x588] sm:$0xff]
      %v535 = vld [vmem:[%s231 + $0x590] sm:$0xff]
      %v536 = vld [vmem:[%s231 + $0x598] sm:$0xff]
      %v537 = vld [vmem:[%s231 + $0x5a0] sm:$0xff]
      %v538 = vld [vmem:[%s231 + $0x5a8] sm:$0xff]
      %v539 = vld [vmem:[%s231 + $0x5b0] sm:$0xff]
      %v540 = vld [vmem:[%s231 + $0x5b8] sm:$0xff]
      %v541 = vld [vmem:[%s231 + $0x5c0] sm:$0xff]
      %v542 = vld [vmem:[%s231 + $0x5c8] sm:$0xff]
      %v543 = vld [vmem:[%s231 + $0x5d0] sm:$0xff]
      %v544 = vld [vmem:[%s231 + $0x5d8] sm:$0xff]
      %v545 = vld [vmem:[%s231 + $0x5e0] sm:$0xff]
      %v546 = vld [vmem:[%s231 + $0x5e8] sm:$0xff]
      %v547 = vld [vmem:[%s231 + $0x5f0] sm:$0xff]
      %v548 = vld [vmem:[%s231 + $0x5f8] sm:$0xff]
      %v549 = vld [vmem:[%s231 + $0x600] sm:$0xff]
      %v550 = vld [vmem:[%s231 + $0x608] sm:$0xff]
      %v551 = vld [vmem:[%s231 + $0x610] sm:$0xff]
      %v552 = vld [vmem:[%s231 + $0x618] sm:$0xff]
      %v553 = vld [vmem:[%s231 + $0x620] sm:$0xff]
      %v554 = vld [vmem:[%s231 + $0x628] sm:$0xff]
      %v555 = vld [vmem:[%s231 + $0x630] sm:$0xff]
      %v556 = vld [vmem:[%s231 + $0x638] sm:$0xff]
      %v557 = vld [vmem:[%s231 + $0x640] sm:$0xff]
      %v558 = vld [vmem:[%s231 + $0x648] sm:$0xff]
      %v559 = vld [vmem:[%s231 + $0x650] sm:$0xff]
      %v560 = vld [vmem:[%s231 + $0x658] sm:$0xff]
      %v561 = vld [vmem:[%s231 + $0x660] sm:$0xff]
      %v562 = vld [vmem:[%s231 + $0x668] sm:$0xff]
      %v563 = vld [vmem:[%s231 + $0x670] sm:$0xff]
      %v564 = vld [vmem:[%s231 + $0x678] sm:$0xff]
      %v565 = vld [vmem:[%s231 + $0x680] sm:$0xff]
      %v566 = vld [vmem:[%s231 + $0x688] sm:$0xff]
      %v567 = vld [vmem:[%s231 + $0x690] sm:$0xff]
      %v568 = vld [vmem:[%s231 + $0x698] sm:$0xff]
      %v569 = vld [vmem:[%s231 + $0x6a0] sm:$0xff]
      %v570 = vld [vmem:[%s231 + $0x6a8] sm:$0xff]
      %v571 = vld [vmem:[%s231 + $0x6b0] sm:$0xff]
      %v572 = vld [vmem:[%s231 + $0x6b8] sm:$0xff]
      %v573 = vld [vmem:[%s231 + $0x6c0] sm:$0xff]
      %v574 = vld [vmem:[%s231 + $0x6c8] sm:$0xff]
      %v575 = vld [vmem:[%s231 + $0x6d0] sm:$0xff]
      %v576 = vld [vmem:[%s231 + $0x6d8] sm:$0xff]
      %v577 = vld [vmem:[%s231 + $0x6e0] sm:$0xff]
      %v578 = vld [vmem:[%s231 + $0x6e8] sm:$0xff]
      %v579 = vld [vmem:[%s231 + $0x6f0] sm:$0xff]
      %v580 = vld [vmem:[%s231 + $0x6f8] sm:$0xff]
      %v581 = vld [vmem:[%s238] sm:$0xff]
      %v582 = vld [vmem:[%s238 + $0x8] sm:$0xff]
      %v583 = vld [vmem:[%s238 + $0x10] sm:$0xff]
      %v584 = vld [vmem:[%s238 + $0x18] sm:$0xff]
      %v585 = vld [vmem:[%s238 + $0x20] sm:$0xff]
      %v586 = vld [vmem:[%s238 + $0x28] sm:$0xff]
      %v587 = vld [vmem:[%s238 + $0x30] sm:$0xff]
      %v588 = vld [vmem:[%s238 + $0x38] sm:$0xff]
      %v589 = vld [vmem:[%s238 + $0x40] sm:$0xff]
      %v590 = vld [vmem:[%s238 + $0x48] sm:$0xff]
      %v591 = vld [vmem:[%s238 + $0x50] sm:$0xff]
      %v592 = vld [vmem:[%s238 + $0x58] sm:$0xff]
      %v593 = vld [vmem:[%s238 + $0x60] sm:$0xff]
      %v594 = vld [vmem:[%s238 + $0x68] sm:$0xff]
      %v595 = vld [vmem:[%s238 + $0x70] sm:$0xff]
      %v596 = vld [vmem:[%s238 + $0x78] sm:$0xff]
      %v597 = vld [vmem:[%s238 + $0x80] sm:$0xff]
      %v598 = vld [vmem:[%s238 + $0x88] sm:$0xff]
      %v599 = vld [vmem:[%s238 + $0x90] sm:$0xff]
      %v600 = vld [vmem:[%s238 + $0x98] sm:$0xff]
      %v601 = vld [vmem:[%s238 + $0xa0] sm:$0xff]
      %v602 = vld [vmem:[%s238 + $0xa8] sm:$0xff]
      %v603 = vld [vmem:[%s238 + $0xb0] sm:$0xff]
      %v604 = vld [vmem:[%s238 + $0xb8] sm:$0xff]
      %v605 = vld [vmem:[%s238 + $0xc0] sm:$0xff]
      %v606 = vld [vmem:[%s238 + $0xc8] sm:$0xff]
      %v607 = vld [vmem:[%s238 + $0xd0] sm:$0xff]
      %v608 = vld [vmem:[%s238 + $0xd8] sm:$0xff]
      %v609 = vld [vmem:[%s238 + $0xe0] sm:$0xff]
      %v610 = vld [vmem:[%s238 + $0xe8] sm:$0xff]
      %v611 = vld [vmem:[%s238 + $0xf0] sm:$0xff]
      %v612 = vld [vmem:[%s238 + $0xf8] sm:$0xff]
      %v613 = vld [vmem:[%s238 + $0x100] sm:$0xff]
      %v614 = vld [vmem:[%s238 + $0x108] sm:$0xff]
      %v615 = vld [vmem:[%s238 + $0x110] sm:$0xff]
      %v616 = vld [vmem:[%s238 + $0x118] sm:$0xff]
      %v617 = vld [vmem:[%s238 + $0x120] sm:$0xff]
      %v618 = vld [vmem:[%s238 + $0x128] sm:$0xff]
      %v619 = vld [vmem:[%s238 + $0x130] sm:$0xff]
      %v620 = vld [vmem:[%s238 + $0x138] sm:$0xff]
      %v621 = vld [vmem:[%s238 + $0x140] sm:$0xff]
      %v622 = vld [vmem:[%s238 + $0x148] sm:$0xff]
      %v623 = vld [vmem:[%s238 + $0x150] sm:$0xff]
      %v624 = vld [vmem:[%s238 + $0x158] sm:$0xff]
      %v625 = vld [vmem:[%s238 + $0x160] sm:$0xff]
      %v626 = vld [vmem:[%s238 + $0x168] sm:$0xff]
      %v627 = vld [vmem:[%s238 + $0x170] sm:$0xff]
      %v628 = vld [vmem:[%s238 + $0x178] sm:$0xff]
      %v629 = vld [vmem:[%s238 + $0x180] sm:$0xff]
      %v630 = vld [vmem:[%s238 + $0x188] sm:$0xff]
      %v631 = vld [vmem:[%s238 + $0x190] sm:$0xff]
      %v632 = vld [vmem:[%s238 + $0x198] sm:$0xff]
      %v633 = vld [vmem:[%s238 + $0x1a0] sm:$0xff]
      %v634 = vld [vmem:[%s238 + $0x1a8] sm:$0xff]
      %v635 = vld [vmem:[%s238 + $0x1b0] sm:$0xff]
      %v636 = vld [vmem:[%s238 + $0x1b8] sm:$0xff]
      %v637 = vld [vmem:[%s238 + $0x1c0] sm:$0xff]
      %v638 = vld [vmem:[%s238 + $0x1c8] sm:$0xff]
      %v639 = vld [vmem:[%s238 + $0x1d0] sm:$0xff]
      %v640 = vld [vmem:[%s238 + $0x1d8] sm:$0xff]
      %v641 = vld [vmem:[%s238 + $0x1e0] sm:$0xff]
      %v642 = vld [vmem:[%s238 + $0x1e8] sm:$0xff]
      %v643 = vld [vmem:[%s238 + $0x1f0] sm:$0xff]
      %v644 = vld [vmem:[%s238 + $0x1f8] sm:$0xff]
      %v645 = vld [vmem:[%s238 + $0x200] sm:$0xff]
      %v646 = vld [vmem:[%s238 + $0x208] sm:$0xff]
      %v647 = vld [vmem:[%s238 + $0x210] sm:$0xff]
      %v648 = vld [vmem:[%s238 + $0x218] sm:$0xff]
      %v649 = vld [vmem:[%s238 + $0x220] sm:$0xff]
      %v650 = vld [vmem:[%s238 + $0x228] sm:$0xff]
      %v651 = vld [vmem:[%s238 + $0x230] sm:$0xff]
      %v652 = vld [vmem:[%s238 + $0x238] sm:$0xff]
      %v653 = vld [vmem:[%s238 + $0x240] sm:$0xff]
      %v654 = vld [vmem:[%s238 + $0x248] sm:$0xff]
      %v655 = vld [vmem:[%s238 + $0x250] sm:$0xff]
      %v656 = vld [vmem:[%s238 + $0x258] sm:$0xff]
      %v657 = vld [vmem:[%s238 + $0x260] sm:$0xff]
      %v658 = vld [vmem:[%s238 + $0x268] sm:$0xff]
      %v659 = vld [vmem:[%s238 + $0x270] sm:$0xff]
      %v660 = vld [vmem:[%s238 + $0x278] sm:$0xff]
      %v661 = vld [vmem:[%s238 + $0x280] sm:$0xff]
      %v662 = vld [vmem:[%s238 + $0x288] sm:$0xff]
      %v663 = vld [vmem:[%s238 + $0x290] sm:$0xff]
      %v664 = vld [vmem:[%s238 + $0x298] sm:$0xff]
      %v665 = vld [vmem:[%s238 + $0x2a0] sm:$0xff]
      %v666 = vld [vmem:[%s238 + $0x2a8] sm:$0xff]
      %v667 = vld [vmem:[%s238 + $0x2b0] sm:$0xff]
      %v668 = vld [vmem:[%s238 + $0x2b8] sm:$0xff]
      %v669 = vld [vmem:[%s238 + $0x2c0] sm:$0xff]
      %v670 = vld [vmem:[%s238 + $0x2c8] sm:$0xff]
      %v671 = vld [vmem:[%s238 + $0x2d0] sm:$0xff]
      %v672 = vld [vmem:[%s238 + $0x2d8] sm:$0xff]
      %v673 = vld [vmem:[%s238 + $0x2e0] sm:$0xff]
      %v674 = vld [vmem:[%s238 + $0x2e8] sm:$0xff]
      %v675 = vld [vmem:[%s238 + $0x2f0] sm:$0xff]
      %v676 = vld [vmem:[%s238 + $0x2f8] sm:$0xff]
      %v677 = vld [vmem:[%s238 + $0x300] sm:$0xff]
      %v678 = vld [vmem:[%s238 + $0x308] sm:$0xff]
      %v679 = vld [vmem:[%s238 + $0x310] sm:$0xff]
      %v680 = vld [vmem:[%s238 + $0x318] sm:$0xff]
      %v681 = vld [vmem:[%s238 + $0x320] sm:$0xff]
      %v682 = vld [vmem:[%s238 + $0x328] sm:$0xff]
      %v683 = vld [vmem:[%s238 + $0x330] sm:$0xff]
      %v684 = vld [vmem:[%s238 + $0x338] sm:$0xff]
      %v685 = vld [vmem:[%s238 + $0x340] sm:$0xff]
      %v686 = vld [vmem:[%s238 + $0x348] sm:$0xff]
      %v687 = vld [vmem:[%s238 + $0x350] sm:$0xff]
      %v688 = vld [vmem:[%s238 + $0x358] sm:$0xff]
      %v689 = vld [vmem:[%s238 + $0x360] sm:$0xff]
      %v690 = vld [vmem:[%s238 + $0x368] sm:$0xff]
      %v691 = vld [vmem:[%s238 + $0x370] sm:$0xff]
      %v692 = vld [vmem:[%s238 + $0x378] sm:$0xff]
      %v693 = vld [vmem:[%s238 + $0x380] sm:$0xff]
      %v694 = vld [vmem:[%s238 + $0x388] sm:$0xff]
      %v695 = vld [vmem:[%s238 + $0x390] sm:$0xff]
      %v696 = vld [vmem:[%s238 + $0x398] sm:$0xff]
      %v697 = vld [vmem:[%s238 + $0x3a0] sm:$0xff]
      %v698 = vld [vmem:[%s238 + $0x3a8] sm:$0xff]
      %v699 = vld [vmem:[%s238 + $0x3b0] sm:$0xff]
      %v700 = vld [vmem:[%s238 + $0x3b8] sm:$0xff]
      %v701 = vld [vmem:[%s238 + $0x3c0] sm:$0xff]
      %v702 = vld [vmem:[%s238 + $0x3c8] sm:$0xff]
      %v703 = vld [vmem:[%s238 + $0x3d0] sm:$0xff]
      %v704 = vld [vmem:[%s238 + $0x3d8] sm:$0xff]
      %v705 = vld [vmem:[%s238 + $0x3e0] sm:$0xff]
      %v706 = vld [vmem:[%s238 + $0x3e8] sm:$0xff]
      %v707 = vld [vmem:[%s238 + $0x3f0] sm:$0xff]
      %v708 = vld [vmem:[%s238 + $0x3f8] sm:$0xff]
      %v709 = vld [vmem:[%s238 + $0x400] sm:$0xff]
      %v710 = vld [vmem:[%s238 + $0x408] sm:$0xff]
      %v711 = vld [vmem:[%s238 + $0x410] sm:$0xff]
      %v712 = vld [vmem:[%s238 + $0x418] sm:$0xff]
      %v713 = vld [vmem:[%s238 + $0x420] sm:$0xff]
      %v714 = vld [vmem:[%s238 + $0x428] sm:$0xff]
      %v715 = vld [vmem:[%s238 + $0x430] sm:$0xff]
      %v716 = vld [vmem:[%s238 + $0x438] sm:$0xff]
      %v717 = vld [vmem:[%s238 + $0x440] sm:$0xff]
      %v718 = vld [vmem:[%s238 + $0x448] sm:$0xff]
      %v719 = vld [vmem:[%s238 + $0x450] sm:$0xff]
      %v720 = vld [vmem:[%s238 + $0x458] sm:$0xff]
      %v721 = vld [vmem:[%s238 + $0x460] sm:$0xff]
      %v722 = vld [vmem:[%s238 + $0x468] sm:$0xff]
      %v723 = vld [vmem:[%s238 + $0x470] sm:$0xff]
      %v724 = vld [vmem:[%s238 + $0x478] sm:$0xff]
      %v725 = vld [vmem:[%s238 + $0x480] sm:$0xff]
      %v726 = vld [vmem:[%s238 + $0x488] sm:$0xff]
      %v727 = vld [vmem:[%s238 + $0x490] sm:$0xff]
      %v728 = vld [vmem:[%s238 + $0x498] sm:$0xff]
      %v729 = vld [vmem:[%s238 + $0x4a0] sm:$0xff]
      %v730 = vld [vmem:[%s238 + $0x4a8] sm:$0xff]
      %v731 = vld [vmem:[%s238 + $0x4b0] sm:$0xff]
      %v732 = vld [vmem:[%s238 + $0x4b8] sm:$0xff]
      %v733 = vld [vmem:[%s238 + $0x4c0] sm:$0xff]
      %v734 = vld [vmem:[%s238 + $0x4c8] sm:$0xff]
      %v735 = vld [vmem:[%s238 + $0x4d0] sm:$0xff]
      %v736 = vld [vmem:[%s238 + $0x4d8] sm:$0xff]
      %v737 = vld [vmem:[%s238 + $0x4e0] sm:$0xff]
      %v738 = vld [vmem:[%s238 + $0x4e8] sm:$0xff]
      %v739 = vld [vmem:[%s238 + $0x4f0] sm:$0xff]
      %v740 = vld [vmem:[%s238 + $0x4f8] sm:$0xff]
      %v741 = vld [vmem:[%s238 + $0x500] sm:$0xff]
      %v742 = vld [vmem:[%s238 + $0x508] sm:$0xff]
      %v743 = vld [vmem:[%s238 + $0x510] sm:$0xff]
      %v744 = vld [vmem:[%s238 + $0x518] sm:$0xff]
      %v745 = vld [vmem:[%s238 + $0x520] sm:$0xff]
      %v746 = vld [vmem:[%s238 + $0x528] sm:$0xff]
      %v747 = vld [vmem:[%s238 + $0x530] sm:$0xff]
      %v748 = vld [vmem:[%s238 + $0x538] sm:$0xff]
      %v749 = vld [vmem:[%s238 + $0x540] sm:$0xff]
      %v750 = vld [vmem:[%s238 + $0x548] sm:$0xff]
      %v751 = vld [vmem:[%s238 + $0x550] sm:$0xff]
      %v752 = vld [vmem:[%s238 + $0x558] sm:$0xff]
      %v753 = vld [vmem:[%s238 + $0x560] sm:$0xff]
      %v754 = vld [vmem:[%s238 + $0x568] sm:$0xff]
      %v755 = vld [vmem:[%s238 + $0x570] sm:$0xff]
      %v756 = vld [vmem:[%s238 + $0x578] sm:$0xff]
      %v757 = vld [vmem:[%s238 + $0x580] sm:$0xff]
      %v758 = vld [vmem:[%s238 + $0x588] sm:$0xff]
      %v759 = vld [vmem:[%s238 + $0x590] sm:$0xff]
      %v760 = vld [vmem:[%s238 + $0x598] sm:$0xff]
      %v761 = vld [vmem:[%s238 + $0x5a0] sm:$0xff]
      %v762 = vld [vmem:[%s238 + $0x5a8] sm:$0xff]
      %v763 = vld [vmem:[%s238 + $0x5b0] sm:$0xff]
      %v764 = vld [vmem:[%s238 + $0x5b8] sm:$0xff]
      %v765 = vld [vmem:[%s238 + $0x5c0] sm:$0xff]
      %v766 = vld [vmem:[%s238 + $0x5c8] sm:$0xff]
      %v767 = vld [vmem:[%s238 + $0x5d0] sm:$0xff]
      %v768 = vld [vmem:[%s238 + $0x5d8] sm:$0xff]
      %v769 = vld [vmem:[%s238 + $0x5e0] sm:$0xff]
      %v770 = vld [vmem:[%s238 + $0x5e8] sm:$0xff]
      %v771 = vld [vmem:[%s238 + $0x5f0] sm:$0xff]
      %v772 = vld [vmem:[%s238 + $0x5f8] sm:$0xff]
      %v773 = vld [vmem:[%s238 + $0x600] sm:$0xff]
      %v774 = vld [vmem:[%s238 + $0x608] sm:$0xff]
      %v775 = vld [vmem:[%s238 + $0x610] sm:$0xff]
      %v776 = vld [vmem:[%s238 + $0x618] sm:$0xff]
      %v777 = vld [vmem:[%s238 + $0x620] sm:$0xff]
      %v778 = vld [vmem:[%s238 + $0x628] sm:$0xff]
      %v779 = vld [vmem:[%s238 + $0x630] sm:$0xff]
      %v780 = vld [vmem:[%s238 + $0x638] sm:$0xff]
      %v781 = vld [vmem:[%s238 + $0x640] sm:$0xff]
      %v782 = vld [vmem:[%s238 + $0x648] sm:$0xff]
      %v783 = vld [vmem:[%s238 + $0x650] sm:$0xff]
      %v784 = vld [vmem:[%s238 + $0x658] sm:$0xff]
      %v785 = vld [vmem:[%s238 + $0x660] sm:$0xff]
      %v786 = vld [vmem:[%s238 + $0x668] sm:$0xff]
      %v787 = vld [vmem:[%s238 + $0x670] sm:$0xff]
      %v788 = vld [vmem:[%s238 + $0x678] sm:$0xff]
      %v789 = vld [vmem:[%s238 + $0x680] sm:$0xff]
      %v790 = vld [vmem:[%s238 + $0x688] sm:$0xff]
      %v791 = vld [vmem:[%s238 + $0x690] sm:$0xff]
      %v792 = vld [vmem:[%s238 + $0x698] sm:$0xff]
      %v793 = vld [vmem:[%s238 + $0x6a0] sm:$0xff]
      %v794 = vld [vmem:[%s238 + $0x6a8] sm:$0xff]
      %v795 = vld [vmem:[%s238 + $0x6b0] sm:$0xff]
      %v796 = vld [vmem:[%s238 + $0x6b8] sm:$0xff]
      %v797 = vld [vmem:[%s238 + $0x6c0] sm:$0xff]
      %v798 = vld [vmem:[%s238 + $0x6c8] sm:$0xff]
      %v799 = vld [vmem:[%s238 + $0x6d0] sm:$0xff]
      %v800 = vld [vmem:[%s238 + $0x6d8] sm:$0xff]
      %v801 = vld [vmem:[%s238 + $0x6e0] sm:$0xff]
      %v802 = vld [vmem:[%s238 + $0x6e8] sm:$0xff]
      %v803 = vld [vmem:[%s238 + $0x6f0] sm:$0xff]
      %v804 = vld [vmem:[%s238 + $0x6f8] sm:$0xff]
      %v805 = vadd.f32 %v357, %v581
      %v806 = vadd.f32 %v358, %v582
      %v807 = vadd.f32 %v359, %v583
      %v808 = vadd.f32 %v360, %v584
      %v809 = vadd.f32 %v361, %v585
      %v810 = vadd.f32 %v362, %v586
      %v811 = vadd.f32 %v363, %v587
      %v812 = vadd.f32 %v364, %v588
      %v813 = vadd.f32 %v365, %v589
      %v814 = vadd.f32 %v366, %v590
      %v815 = vadd.f32 %v367, %v591
      %v816 = vadd.f32 %v368, %v592
      %v817 = vadd.f32 %v369, %v593
      %v818 = vadd.f32 %v370, %v594
      %v819 = vadd.f32 %v371, %v595
      %v820 = vadd.f32 %v372, %v596
      %v821 = vadd.f32 %v373, %v597
      %v822 = vadd.f32 %v374, %v598
      %v823 = vadd.f32 %v375, %v599
      %v824 = vadd.f32 %v376, %v600
      %v825 = vadd.f32 %v377, %v601
      %v826 = vadd.f32 %v378, %v602
      %v827 = vadd.f32 %v379, %v603
      %v828 = vadd.f32 %v380, %v604
      %v829 = vadd.f32 %v381, %v605
      %v830 = vadd.f32 %v382, %v606
      %v831 = vadd.f32 %v383, %v607
      %v832 = vadd.f32 %v384, %v608
      %v833 = vadd.f32 %v385, %v609
      %v834 = vadd.f32 %v386, %v610
      %v835 = vadd.f32 %v387, %v611
      %v836 = vadd.f32 %v388, %v612
      %v837 = vadd.f32 %v389, %v613
      %v838 = vadd.f32 %v390, %v614
      %v839 = vadd.f32 %v391, %v615
      %v840 = vadd.f32 %v392, %v616
      %v841 = vadd.f32 %v393, %v617
      %v842 = vadd.f32 %v394, %v618
      %v843 = vadd.f32 %v395, %v619
      %v844 = vadd.f32 %v396, %v620
      %v845 = vadd.f32 %v397, %v621
      %v846 = vadd.f32 %v398, %v622
      %v847 = vadd.f32 %v399, %v623
      %v848 = vadd.f32 %v400, %v624
      %v849 = vadd.f32 %v401, %v625
      %v850 = vadd.f32 %v402, %v626
      %v851 = vadd.f32 %v403, %v627
      %v852 = vadd.f32 %v404, %v628
      %v853 = vadd.f32 %v405, %v629
      %v854 = vadd.f32 %v406, %v630
      %v855 = vadd.f32 %v407, %v631
      %v856 = vadd.f32 %v408, %v632
      %v857 = vadd.f32 %v409, %v633
      %v858 = vadd.f32 %v410, %v634
      %v859 = vadd.f32 %v411, %v635
      %v860 = vadd.f32 %v412, %v636
      %v861 = vadd.f32 %v413, %v637
      %v862 = vadd.f32 %v414, %v638
      %v863 = vadd.f32 %v415, %v639
      %v864 = vadd.f32 %v416, %v640
      %v865 = vadd.f32 %v417, %v641
      %v866 = vadd.f32 %v418, %v642
      %v867 = vadd.f32 %v419, %v643
      %v868 = vadd.f32 %v420, %v644
      %v869 = vadd.f32 %v421, %v645
      %v870 = vadd.f32 %v422, %v646
      %v871 = vadd.f32 %v423, %v647
      %v872 = vadd.f32 %v424, %v648
      %v873 = vadd.f32 %v425, %v649
      %v874 = vadd.f32 %v426, %v650
      %v875 = vadd.f32 %v427, %v651
      %v876 = vadd.f32 %v428, %v652
      %v877 = vadd.f32 %v429, %v653
      %v878 = vadd.f32 %v430, %v654
      %v879 = vadd.f32 %v431, %v655
      %v880 = vadd.f32 %v432, %v656
      %v881 = vadd.f32 %v433, %v657
      %v882 = vadd.f32 %v434, %v658
      %v883 = vadd.f32 %v435, %v659
      %v884 = vadd.f32 %v436, %v660
      %v885 = vadd.f32 %v437, %v661
      %v886 = vadd.f32 %v438, %v662
      %v887 = vadd.f32 %v439, %v663
      %v888 = vadd.f32 %v440, %v664
      %v889 = vadd.f32 %v441, %v665
      %v890 = vadd.f32 %v442, %v666
      %v891 = vadd.f32 %v443, %v667
      %v892 = vadd.f32 %v444, %v668
      %v893 = vadd.f32 %v445, %v669
      %v894 = vadd.f32 %v446, %v670
      %v895 = vadd.f32 %v447, %v671
      %v896 = vadd.f32 %v448, %v672
      %v897 = vadd.f32 %v449, %v673
      %v898 = vadd.f32 %v450, %v674
      %v899 = vadd.f32 %v451, %v675
      %v900 = vadd.f32 %v452, %v676
      %v901 = vadd.f32 %v453, %v677
      %v902 = vadd.f32 %v454, %v678
      %v903 = vadd.f32 %v455, %v679
      %v904 = vadd.f32 %v456, %v680
      %v905 = vadd.f32 %v457, %v681
      %v906 = vadd.f32 %v458, %v682
      %v907 = vadd.f32 %v459, %v683
      %v908 = vadd.f32 %v460, %v684
      %v909 = vadd.f32 %v461, %v685
      %v910 = vadd.f32 %v462, %v686
      %v911 = vadd.f32 %v463, %v687
      %v912 = vadd.f32 %v464, %v688
      %v913 = vadd.f32 %v465, %v689
      %v914 = vadd.f32 %v466, %v690
      %v915 = vadd.f32 %v467, %v691
      %v916 = vadd.f32 %v468, %v692
      %v917 = vadd.f32 %v469, %v693
      %v918 = vadd.f32 %v470, %v694
      %v919 = vadd.f32 %v471, %v695
      %v920 = vadd.f32 %v472, %v696
      %v921 = vadd.f32 %v473, %v697
      %v922 = vadd.f32 %v474, %v698
      %v923 = vadd.f32 %v475, %v699
      %v924 = vadd.f32 %v476, %v700
      %v925 = vadd.f32 %v477, %v701
      %v926 = vadd.f32 %v478, %v702
      %v927 = vadd.f32 %v479, %v703
      %v928 = vadd.f32 %v480, %v704
      %v929 = vadd.f32 %v481, %v705
      %v930 = vadd.f32 %v482, %v706
      %v931 = vadd.f32 %v483, %v707
      %v932 = vadd.f32 %v484, %v708
      %v933 = vadd.f32 %v485, %v709
      %v934 = vadd.f32 %v486, %v710
      %v935 = vadd.f32 %v487, %v711
      %v936 = vadd.f32 %v488, %v712
      %v937 = vadd.f32 %v489, %v713
      %v938 = vadd.f32 %v490, %v714
      %v939 = vadd.f32 %v491, %v715
      %v940 = vadd.f32 %v492, %v716
      %v941 = vadd.f32 %v493, %v717
      %v942 = vadd.f32 %v494, %v718
      %v943 = vadd.f32 %v495, %v719
      %v944 = vadd.f32 %v496, %v720
      %v945 = vadd.f32 %v497, %v721
      %v946 = vadd.f32 %v498, %v722
      %v947 = vadd.f32 %v499, %v723
      %v948 = vadd.f32 %v500, %v724
      %v949 = vadd.f32 %v501, %v725
      %v950 = vadd.f32 %v502, %v726
      %v951 = vadd.f32 %v503, %v727
      %v952 = vadd.f32 %v504, %v728
      %v953 = vadd.f32 %v505, %v729
      %v954 = vadd.f32 %v506, %v730
      %v955 = vadd.f32 %v507, %v731
      %v956 = vadd.f32 %v508, %v732
      %v957 = vadd.f32 %v509, %v733
      %v958 = vadd.f32 %v510, %v734
      %v959 = vadd.f32 %v511, %v735
      %v960 = vadd.f32 %v512, %v736
      %v961 = vadd.f32 %v513, %v737
      %v962 = vadd.f32 %v514, %v738
      %v963 = vadd.f32 %v515, %v739
      %v964 = vadd.f32 %v516, %v740
      %v965 = vadd.f32 %v517, %v741
      %v966 = vadd.f32 %v518, %v742
      %v967 = vadd.f32 %v519, %v743
      %v968 = vadd.f32 %v520, %v744
      %v969 = vadd.f32 %v521, %v745
      %v970 = vadd.f32 %v522, %v746
      %v971 = vadd.f32 %v523, %v747
      %v972 = vadd.f32 %v524, %v748
      %v973 = vadd.f32 %v525, %v749
      %v974 = vadd.f32 %v526, %v750
      %v975 = vadd.f32 %v527, %v751
      %v976 = vadd.f32 %v528, %v752
      %v977 = vadd.f32 %v529, %v753
      %v978 = vadd.f32 %v530, %v754
      %v979 = vadd.f32 %v531, %v755
      %v980 = vadd.f32 %v532, %v756
      %v981 = vadd.f32 %v533, %v757
      %v982 = vadd.f32 %v534, %v758
      %v983 = vadd.f32 %v535, %v759
      %v984 = vadd.f32 %v536, %v760
      %v985 = vadd.f32 %v537, %v761
      %v986 = vadd.f32 %v538, %v762
      %v987 = vadd.f32 %v539, %v763
      %v988 = vadd.f32 %v540, %v764
      %v989 = vadd.f32 %v541, %v765
      %v990 = vadd.f32 %v542, %v766
      %v991 = vadd.f32 %v543, %v767
      %v992 = vadd.f32 %v544, %v768
      %v993 = vadd.f32 %v545, %v769
      %v994 = vadd.f32 %v546, %v770
      %v995 = vadd.f32 %v547, %v771
      %v996 = vadd.f32 %v548, %v772
      %v997 = vadd.f32 %v549, %v773
      %v998 = vadd.f32 %v550, %v774
      %v999 = vadd.f32 %v551, %v775
      %v1000 = vadd.f32 %v552, %v776
      %v1001 = vadd.f32 %v553, %v777
      %v1002 = vadd.f32 %v554, %v778
      %v1003 = vadd.f32 %v555, %v779
      %v1004 = vadd.f32 %v556, %v780
      %v1005 = vadd.f32 %v557, %v781
      %v1006 = vadd.f32 %v558, %v782
      %v1007 = vadd.f32 %v559, %v783
      %v1008 = vadd.f32 %v560, %v784
      %v1009 = vadd.f32 %v561, %v785
      %v1010 = vadd.f32 %v562, %v786
      %v1011 = vadd.f32 %v563, %v787
      %v1012 = vadd.f32 %v564, %v788
      %v1013 = vadd.f32 %v565, %v789
      %v1014 = vadd.f32 %v566, %v790
      %v1015 = vadd.f32 %v567, %v791
      %v1016 = vadd.f32 %v568, %v792
      %v1017 = vadd.f32 %v569, %v793
      %v1018 = vadd.f32 %v570, %v794
      %v1019 = vadd.f32 %v571, %v795
      %v1020 = vadd.f32 %v572, %v796
      %v1021 = vadd.f32 %v573, %v797
      %v1022 = vadd.f32 %v574, %v798
      %v1023 = vadd.f32 %v575, %v799
      %v1024 = vadd.f32 %v576, %v800
      %v1025 = vadd.f32 %v577, %v801
      %v1026 = vadd.f32 %v578, %v802
      %v1027 = vadd.f32 %v579, %v803
      %v1028 = vadd.f32 %v580, %v804
      %v1029 = vmax.f32 %v805, 0.0
      %v1030 = vmax.f32 %v806, 0.0
      %v1031 = vmax.f32 %v807, 0.0
      %v1032 = vmax.f32 %v808, 0.0
      %v1033 = vmax.f32 %v809, 0.0
      %v1034 = vmax.f32 %v810, 0.0
      %v1035 = vmax.f32 %v811, 0.0
      %v1036 = vmax.f32 %v812, 0.0
      %v1037 = vmax.f32 %v813, 0.0
      %v1038 = vmax.f32 %v814, 0.0
      %v1039 = vmax.f32 %v815, 0.0
      %v1040 = vmax.f32 %v816, 0.0
      %v1041 = vmax.f32 %v817, 0.0
      %v1042 = vmax.f32 %v818, 0.0
      %v1043 = vmax.f32 %v819, 0.0
      %v1044 = vmax.f32 %v820, 0.0
      %v1045 = vmax.f32 %v821, 0.0
      %v1046 = vmax.f32 %v822, 0.0
      %v1047 = vmax.f32 %v823, 0.0
      %v1048 = vmax.f32 %v824, 0.0
      %v1049 = vmax.f32 %v825, 0.0
      %v1050 = vmax.f32 %v826, 0.0
      %v1051 = vmax.f32 %v827, 0.0
      %v1052 = vmax.f32 %v828, 0.0
      %v1053 = vmax.f32 %v829, 0.0
      %v1054 = vmax.f32 %v830, 0.0
      %v1055 = vmax.f32 %v831, 0.0
      %v1056 = vmax.f32 %v832, 0.0
      %v1057 = vmax.f32 %v833, 0.0
      %v1058 = vmax.f32 %v834, 0.0
      %v1059 = vmax.f32 %v835, 0.0
      %v1060 = vmax.f32 %v836, 0.0
      %v1061 = vmax.f32 %v837, 0.0
      %v1062 = vmax.f32 %v838, 0.0
      %v1063 = vmax.f32 %v839, 0.0
      %v1064 = vmax.f32 %v840, 0.0
      %v1065 = vmax.f32 %v841, 0.0
      %v1066 = vmax.f32 %v842, 0.0
      %v1067 = vmax.f32 %v843, 0.0
      %v1068 = vmax.f32 %v844, 0.0
      %v1069 = vmax.f32 %v845, 0.0
      %v1070 = vmax.f32 %v846, 0.0
      %v1071 = vmax.f32 %v847, 0.0
      %v1072 = vmax.f32 %v848, 0.0
      %v1073 = vmax.f32 %v849, 0.0
      %v1074 = vmax.f32 %v850, 0.0
      %v1075 = vmax.f32 %v851, 0.0
      %v1076 = vmax.f32 %v852, 0.0
      %v1077 = vmax.f32 %v853, 0.0
      %v1078 = vmax.f32 %v854, 0.0
      %v1079 = vmax.f32 %v855, 0.0
      %v1080 = vmax.f32 %v856, 0.0
      %v1081 = vmax.f32 %v857, 0.0
      %v1082 = vmax.f32 %v858, 0.0
      %v1083 = vmax.f32 %v859, 0.0
      %v1084 = vmax.f32 %v860, 0.0
      %v1085 = vmax.f32 %v861, 0.0
      %v1086 = vmax.f32 %v862, 0.0
      %v1087 = vmax.f32 %v863, 0.0
      %v1088 = vmax.f32 %v864, 0.0
      %v1089 = vmax.f32 %v865, 0.0
      %v1090 = vmax.f32 %v866, 0.0
      %v1091 = vmax.f32 %v867, 0.0
      %v1092 = vmax.f32 %v868, 0.0
      %v1093 = vmax.f32 %v869, 0.0
      %v1094 = vmax.f32 %v870, 0.0
      %v1095 = vmax.f32 %v871, 0.0
      %v1096 = vmax.f32 %v872, 0.0
      %v1097 = vmax.f32 %v873, 0.0
      %v1098 = vmax.f32 %v874, 0.0
      %v1099 = vmax.f32 %v875, 0.0
      %v1100 = vmax.f32 %v876, 0.0
      %v1101 = vmax.f32 %v877, 0.0
      %v1102 = vmax.f32 %v878, 0.0
      %v1103 = vmax.f32 %v879, 0.0
      %v1104 = vmax.f32 %v880, 0.0
      %v1105 = vmax.f32 %v881, 0.0
      %v1106 = vmax.f32 %v882, 0.0
      %v1107 = vmax.f32 %v883, 0.0
      %v1108 = vmax.f32 %v884, 0.0
      %v1109 = vmax.f32 %v885, 0.0
      %v1110 = vmax.f32 %v886, 0.0
      %v1111 = vmax.f32 %v887, 0.0
      %v1112 = vmax.f32 %v888, 0.0
      %v1113 = vmax.f32 %v889, 0.0
      %v1114 = vmax.f32 %v890, 0.0
      %v1115 = vmax.f32 %v891, 0.0
      %v1116 = vmax.f32 %v892, 0.0
      %v1117 = vmax.f32 %v893, 0.0
      %v1118 = vmax.f32 %v894, 0.0
      %v1119 = vmax.f32 %v895, 0.0
      %v1120 = vmax.f32 %v896, 0.0
      %v1121 = vmax.f32 %v897, 0.0
      %v1122 = vmax.f32 %v898, 0.0
      %v1123 = vmax.f32 %v899, 0.0
      %v1124 = vmax.f32 %v900, 0.0
      %v1125 = vmax.f32 %v901, 0.0
      %v1126 = vmax.f32 %v902, 0.0
      %v1127 = vmax.f32 %v903, 0.0
      %v1128 = vmax.f32 %v904, 0.0
      %v1129 = vmax.f32 %v905, 0.0
      %v1130 = vmax.f32 %v906, 0.0
      %v1131 = vmax.f32 %v907, 0.0
      %v1132 = vmax.f32 %v908, 0.0
      %v1133 = vmax.f32 %v909, 0.0
      %v1134 = vmax.f32 %v910, 0.0
      %v1135 = vmax.f32 %v911, 0.0
      %v1136 = vmax.f32 %v912, 0.0
      %v1137 = vmax.f32 %v913, 0.0
      %v1138 = vmax.f32 %v914, 0.0
      %v1139 = vmax.f32 %v915, 0.0
      %v1140 = vmax.f32 %v916, 0.0
      %v1141 = vmax.f32 %v917, 0.0
      %v1142 = vmax.f32 %v918, 0.0
      %v1143 = vmax.f32 %v919, 0.0
      %v1144 = vmax.f32 %v920, 0.0
      %v1145 = vmax.f32 %v921, 0.0
      %v1146 = vmax.f32 %v922, 0.0
      %v1147 = vmax.f32 %v923, 0.0
      %v1148 = vmax.f32 %v924, 0.0
      %v1149 = vmax.f32 %v925, 0.0
      %v1150 = vmax.f32 %v926, 0.0
      %v1151 = vmax.f32 %v927, 0.0
      %v1152 = vmax.f32 %v928, 0.0
      %v1153 = vmax.f32 %v929, 0.0
      %v1154 = vmax.f32 %v930, 0.0
      %v1155 = vmax.f32 %v931, 0.0
      %v1156 = vmax.f32 %v932, 0.0
      %v1157 = vmax.f32 %v933, 0.0
      %v1158 = vmax.f32 %v934, 0.0
      %v1159 = vmax.f32 %v935, 0.0
      %v1160 = vmax.f32 %v936, 0.0
      %v1161 = vmax.f32 %v937, 0.0
      %v1162 = vmax.f32 %v938, 0.0
      %v1163 = vmax.f32 %v939, 0.0
      %v1164 = vmax.f32 %v940, 0.0
      %v1165 = vmax.f32 %v941, 0.0
      %v1166 = vmax.f32 %v942, 0.0
      %v1167 = vmax.f32 %v943, 0.0
      %v1168 = vmax.f32 %v944, 0.0
      %v1169 = vmax.f32 %v945, 0.0
      %v1170 = vmax.f32 %v946, 0.0
      %v1171 = vmax.f32 %v947, 0.0
      %v1172 = vmax.f32 %v948, 0.0
      %v1173 = vmax.f32 %v949, 0.0
      %v1174 = vmax.f32 %v950, 0.0
      %v1175 = vmax.f32 %v951, 0.0
      %v1176 = vmax.f32 %v952, 0.0
      %v1177 = vmax.f32 %v953, 0.0
      %v1178 = vmax.f32 %v954, 0.0
      %v1179 = vmax.f32 %v955, 0.0
      %v1180 = vmax.f32 %v956, 0.0
      %v1181 = vmax.f32 %v957, 0.0
      %v1182 = vmax.f32 %v958, 0.0
      %v1183 = vmax.f32 %v959, 0.0
      %v1184 = vmax.f32 %v960, 0.0
      %v1185 = vmax.f32 %v961, 0.0
      %v1186 = vmax.f32 %v962, 0.0
      %v1187 = vmax.f32 %v963, 0.0
      %v1188 = vmax.f32 %v964, 0.0
      %v1189 = vmax.f32 %v965, 0.0
      %v1190 = vmax.f32 %v966, 0.0
      %v1191 = vmax.f32 %v967, 0.0
      %v1192 = vmax.f32 %v968, 0.0
      %v1193 = vmax.f32 %v969, 0.0
      %v1194 = vmax.f32 %v970, 0.0
      %v1195 = vmax.f32 %v971, 0.0
      %v1196 = vmax.f32 %v972, 0.0
      %v1197 = vmax.f32 %v973, 0.0
      %v1198 = vmax.f32 %v974, 0.0
      %v1199 = vmax.f32 %v975, 0.0
      %v1200 = vmax.f32 %v976, 0.0
      %v1201 = vmax.f32 %v977, 0.0
      %v1202 = vmax.f32 %v978, 0.0
      %v1203 = vmax.f32 %v979, 0.0
      %v1204 = vmax.f32 %v980, 0.0
      %v1205 = vmax.f32 %v981, 0.0
      %v1206 = vmax.f32 %v982, 0.0
      %v1207 = vmax.f32 %v983, 0.0
      %v1208 = vmax.f32 %v984, 0.0
      %v1209 = vmax.f32 %v985, 0.0
      %v1210 = vmax.f32 %v986, 0.0
      %v1211 = vmax.f32 %v987, 0.0
      %v1212 = vmax.f32 %v988, 0.0
      %v1213 = vmax.f32 %v989, 0.0
      %v1214 = vmax.f32 %v990, 0.0
      %v1215 = vmax.f32 %v991, 0.0
      %v1216 = vmax.f32 %v992, 0.0
      %v1217 = vmax.f32 %v993, 0.0
      %v1218 = vmax.f32 %v994, 0.0
      %v1219 = vmax.f32 %v995, 0.0
      %v1220 = vmax.f32 %v996, 0.0
      %v1221 = vmax.f32 %v997, 0.0
      %v1222 = vmax.f32 %v998, 0.0
      %v1223 = vmax.f32 %v999, 0.0
      %v1224 = vmax.f32 %v1000, 0.0
      %v1225 = vmax.f32 %v1001, 0.0
      %v1226 = vmax.f32 %v1002, 0.0
      %v1227 = vmax.f32 %v1003, 0.0
      %v1228 = vmax.f32 %v1004, 0.0
      %v1229 = vmax.f32 %v1005, 0.0
      %v1230 = vmax.f32 %v1006, 0.0
      %v1231 = vmax.f32 %v1007, 0.0
      %v1232 = vmax.f32 %v1008, 0.0
      %v1233 = vmax.f32 %v1009, 0.0
      %v1234 = vmax.f32 %v1010, 0.0
      %v1235 = vmax.f32 %v1011, 0.0
      %v1236 = vmax.f32 %v1012, 0.0
      %v1237 = vmax.f32 %v1013, 0.0
      %v1238 = vmax.f32 %v1014, 0.0
      %v1239 = vmax.f32 %v1015, 0.0
      %v1240 = vmax.f32 %v1016, 0.0
      %v1241 = vmax.f32 %v1017, 0.0
      %v1242 = vmax.f32 %v1018, 0.0
      %v1243 = vmax.f32 %v1019, 0.0
      %v1244 = vmax.f32 %v1020, 0.0
      %v1245 = vmax.f32 %v1021, 0.0
      %v1246 = vmax.f32 %v1022, 0.0
      %v1247 = vmax.f32 %v1023, 0.0
      %v1248 = vmax.f32 %v1024, 0.0
      %v1249 = vmax.f32 %v1025, 0.0
      %v1250 = vmax.f32 %v1026, 0.0
      %v1251 = vmax.f32 %v1027, 0.0
      %v1252 = vmax.f32 %v1028, 0.0
      %s1253 = smul.u32 %s16, 256
      %s1254 = sshra.s32 %s1253, 7
      %s1255 = sand.u32 %s1253, 127
      %s1256 = smul.addr %s1254, 8
      %s1257 = scalar_lea.vmem %s2, %s1256
      %v1258 = vld [vmem:[%s1257] sm:$0xff]
      %v1259 = vld [vmem:[%s1257 + $0x8] sm:$0xff]
      %v1260 = vld [vmem:[%s1257 + $0x20] sm:$0xff]
      %v1261 = vld [vmem:[%s1257 + $0x28] sm:$0xff]
      %v1262 = vld [vmem:[%s1257 + $0x40] sm:$0xff]
      %v1263 = vld [vmem:[%s1257 + $0x48] sm:$0xff]
      %v1264 = vld [vmem:[%s1257 + $0x60] sm:$0xff]
      %v1265 = vld [vmem:[%s1257 + $0x68] sm:$0xff]
      %v1266 = vld [vmem:[%s1257 + $0x80] sm:$0xff]
      %v1267 = vld [vmem:[%s1257 + $0x88] sm:$0xff]
      %v1268 = vld [vmem:[%s1257 + $0xa0] sm:$0xff]
      %v1269 = vld [vmem:[%s1257 + $0xa8] sm:$0xff]
      %v1270 = vld [vmem:[%s1257 + $0xc0] sm:$0xff]
      %v1271 = vld [vmem:[%s1257 + $0xc8] sm:$0xff]
      %v1272 = vld [vmem:[%s1257 + $0xe0] sm:$0xff]
      %v1273 = vld [vmem:[%s1257 + $0xe8] sm:$0xff]
      %v1274 = vld [vmem:[%s1257 + $0x100] sm:$0xff]
      %v1275 = vld [vmem:[%s1257 + $0x108] sm:$0xff]
      %v1276 = vld [vmem:[%s1257 + $0x120] sm:$0xff]
      %v1277 = vld [vmem:[%s1257 + $0x128] sm:$0xff]
      %v1278 = vld [vmem:[%s1257 + $0x140] sm:$0xff]
      %v1279 = vld [vmem:[%s1257 + $0x148] sm:$0xff]
      %v1280 = vld [vmem:[%s1257 + $0x160] sm:$0xff]
      %v1281 = vld [vmem:[%s1257 + $0x168] sm:$0xff]
      %v1282 = vld [vmem:[%s1257 + $0x180] sm:$0xff]
      %v1283 = vld [vmem:[%s1257 + $0x188] sm:$0xff]
      %v1284 = vld [vmem:[%s1257 + $0x1a0] sm:$0xff]
      %v1285 = vld [vmem:[%s1257 + $0x1a8] sm:$0xff]
      %v1286 = vld [vmem:[%s1257 + $0x1c0] sm:$0xff]
      %v1287 = vld [vmem:[%s1257 + $0x1c8] sm:$0xff]
      %v1288 = vld [vmem:[%s1257 + $0x1e0] sm:$0xff]
      %v1289 = vld [vmem:[%s1257 + $0x1e8] sm:$0xff]
      %v1290 = vld [vmem:[%s5] sm:$0xff]
      %v1291 = vld [vmem:[%s5 + $0x8] sm:$0xff]
      %v1292 = vld [vmem:[%s5 + $0x10] sm:$0xff]
      %v1293 = vld [vmem:[%s5 + $0x18] sm:$0xff]
      %v1294 = vld [vmem:[%s5 + $0x20] sm:$0xff]
      %v1295 = vld [vmem:[%s5 + $0x28] sm:$0xff]
      %v1296 = vld [vmem:[%s5 + $0x30] sm:$0xff]
      %v1297 = vld [vmem:[%s5 + $0x38] sm:$0xff]
      %v1298 = vld [vmem:[%s5 + $0x40] sm:$0xff]
      %v1299 = vld [vmem:[%s5 + $0x48] sm:$0xff]
      %v1300 = vld [vmem:[%s5 + $0x50] sm:$0xff]
      %v1301 = vld [vmem:[%s5 + $0x58] sm:$0xff]
      %v1302 = vld [vmem:[%s5 + $0x60] sm:$0xff]
      %v1303 = vld [vmem:[%s5 + $0x68] sm:$0xff]
      %v1304 = vld [vmem:[%s5 + $0x70] sm:$0xff]
      %v1305 = vld [vmem:[%s5 + $0x78] sm:$0xff]
      %v1306 = vld [vmem:[%s5 + $0x80] sm:$0xff]
      %v1307 = vld [vmem:[%s5 + $0x88] sm:$0xff]
      %v1308 = vld [vmem:[%s5 + $0x90] sm:$0xff]
      %v1309 = vld [vmem:[%s5 + $0x98] sm:$0xff]
      %v1310 = vld [vmem:[%s5 + $0xa0] sm:$0xff]
      %v1311 = vld [vmem:[%s5 + $0xa8] sm:$0xff]
      %v1312 = vld [vmem:[%s5 + $0xb0] sm:$0xff]
      %v1313 = vld [vmem:[%s5 + $0xb8] sm:$0xff]
      %v1314 = vld [vmem:[%s5 + $0xc0] sm:$0xff]
      %v1315 = vld [vmem:[%s5 + $0xc8] sm:$0xff]
      %v1316 = vld [vmem:[%s5 + $0xd0] sm:$0xff]
      %v1317 = vld [vmem:[%s5 + $0xd8] sm:$0xff]
      %v1318 = vld [vmem:[%s5 + $0xe0] sm:$0xff]
      %v1319 = vld [vmem:[%s5 + $0xe8] sm:$0xff]
      %v1320 = vld [vmem:[%s5 + $0xf0] sm:$0xff]
      %v1321 = vld [vmem:[%s5 + $0xf8] sm:$0xff]
      %v1322 = vld [vmem:[%s5 + $0x100] sm:$0xff]
      %v1323 = vld [vmem:[%s5 + $0x108] sm:$0xff]
      %v1324 = vld [vmem:[%s5 + $0x110] sm:$0xff]
      %v1325 = vld [vmem:[%s5 + $0x118] sm:$0xff]
      %v1326 = vld [vmem:[%s5 + $0x120] sm:$0xff]
      %v1327 = vld [vmem:[%s5 + $0x128] sm:$0xff]
      %v1328 = vld [vmem:[%s5 + $0x130] sm:$0xff]
      %v1329 = vld [vmem:[%s5 + $0x138] sm:$0xff]
      %v1330 = vld [vmem:[%s5 + $0x140] sm:$0xff]
      %v1331 = vld [vmem:[%s5 + $0x148] sm:$0xff]
      %v1332 = vld [vmem:[%s5 + $0x150] sm:$0xff]
      %v1333 = vld [vmem:[%s5 + $0x158] sm:$0xff]
      %v1334 = vld [vmem:[%s5 + $0x160] sm:$0xff]
      %v1335 = vld [vmem:[%s5 + $0x168] sm:$0xff]
      %v1336 = vld [vmem:[%s5 + $0x170] sm:$0xff]
      %v1337 = vld [vmem:[%s5 + $0x178] sm:$0xff]
      %v1338 = vld [vmem:[%s5 + $0x180] sm:$0xff]
      %v1339 = vld [vmem:[%s5 + $0x188] sm:$0xff]
      %v1340 = vld [vmem:[%s5 + $0x190] sm:$0xff]
      %v1341 = vld [vmem:[%s5 + $0x198] sm:$0xff]
      %v1342 = vld [vmem:[%s5 + $0x1a0] sm:$0xff]
      %v1343 = vld [vmem:[%s5 + $0x1a8] sm:$0xff]
      %v1344 = vld [vmem:[%s5 + $0x1b0] sm:$0xff]
      %v1345 = vld [vmem:[%s5 + $0x1b8] sm:$0xff]
      %v1346 = vld [vmem:[%s5 + $0x1c0] sm:$0xff]
      %v1347 = vld [vmem:[%s5 + $0x1c8] sm:$0xff]
      %v1348 = vld [vmem:[%s5 + $0x1d0] sm:$0xff]
      %v1349 = vld [vmem:[%s5 + $0x1d8] sm:$0xff]
      %v1350 = vld [vmem:[%s5 + $0x1e0] sm:$0xff]
      %v1351 = vld [vmem:[%s5 + $0x1e8] sm:$0xff]
      %v1352 = vld [vmem:[%s5 + $0x1f0] sm:$0xff]
      %v1353 = vld [vmem:[%s5 + $0x1f8] sm:$0xff]
      %v1354 = vld [vmem:[%s5 + $0x200] sm:$0xff]
      %v1355 = vld [vmem:[%s5 + $0x208] sm:$0xff]
      %v1356 = vld [vmem:[%s5 + $0x210] sm:$0xff]
      %v1357 = vld [vmem:[%s5 + $0x218] sm:$0xff]
      %v1358 = vld [vmem:[%s5 + $0x220] sm:$0xff]
      %v1359 = vld [vmem:[%s5 + $0x228] sm:$0xff]
      %v1360 = vld [vmem:[%s5 + $0x230] sm:$0xff]
      %v1361 = vld [vmem:[%s5 + $0x238] sm:$0xff]
      %v1362 = vld [vmem:[%s5 + $0x240] sm:$0xff]
      %v1363 = vld [vmem:[%s5 + $0x248] sm:$0xff]
      %v1364 = vld [vmem:[%s5 + $0x250] sm:$0xff]
      %v1365 = vld [vmem:[%s5 + $0x258] sm:$0xff]
      %v1366 = vld [vmem:[%s5 + $0x260] sm:$0xff]
      %v1367 = vld [vmem:[%s5 + $0x268] sm:$0xff]
      %v1368 = vld [vmem:[%s5 + $0x270] sm:$0xff]
      %v1369 = vld [vmem:[%s5 + $0x278] sm:$0xff]
      %v1370 = vld [vmem:[%s5 + $0x280] sm:$0xff]
      %v1371 = vld [vmem:[%s5 + $0x288] sm:$0xff]
      %v1372 = vld [vmem:[%s5 + $0x290] sm:$0xff]
      %v1373 = vld [vmem:[%s5 + $0x298] sm:$0xff]
      %v1374 = vld [vmem:[%s5 + $0x2a0] sm:$0xff]
      %v1375 = vld [vmem:[%s5 + $0x2a8] sm:$0xff]
      %v1376 = vld [vmem:[%s5 + $0x2b0] sm:$0xff]
      %v1377 = vld [vmem:[%s5 + $0x2b8] sm:$0xff]
      %v1378 = vld [vmem:[%s5 + $0x2c0] sm:$0xff]
      %v1379 = vld [vmem:[%s5 + $0x2c8] sm:$0xff]
      %v1380 = vld [vmem:[%s5 + $0x2d0] sm:$0xff]
      %v1381 = vld [vmem:[%s5 + $0x2d8] sm:$0xff]
      %v1382 = vld [vmem:[%s5 + $0x2e0] sm:$0xff]
      %v1383 = vld [vmem:[%s5 + $0x2e8] sm:$0xff]
      %v1384 = vld [vmem:[%s5 + $0x2f0] sm:$0xff]
      %v1385 = vld [vmem:[%s5 + $0x2f8] sm:$0xff]
      %v1386 = vld [vmem:[%s5 + $0x300] sm:$0xff]
      %v1387 = vld [vmem:[%s5 + $0x308] sm:$0xff]
      %v1388 = vld [vmem:[%s5 + $0x310] sm:$0xff]
      %v1389 = vld [vmem:[%s5 + $0x318] sm:$0xff]
      %v1390 = vld [vmem:[%s5 + $0x320] sm:$0xff]
      %v1391 = vld [vmem:[%s5 + $0x328] sm:$0xff]
      %v1392 = vld [vmem:[%s5 + $0x330] sm:$0xff]
      %v1393 = vld [vmem:[%s5 + $0x338] sm:$0xff]
      %v1394 = vld [vmem:[%s5 + $0x340] sm:$0xff]
      %v1395 = vld [vmem:[%s5 + $0x348] sm:$0xff]
      %v1396 = vld [vmem:[%s5 + $0x350] sm:$0xff]
      %v1397 = vld [vmem:[%s5 + $0x358] sm:$0xff]
      %v1398 = vld [vmem:[%s5 + $0x360] sm:$0xff]
      %v1399 = vld [vmem:[%s5 + $0x368] sm:$0xff]
      %v1400 = vld [vmem:[%s5 + $0x370] sm:$0xff]
      %v1401 = vld [vmem:[%s5 + $0x378] sm:$0xff]
      %1402 = vmatprep.subr.mxu0 %v1135
      %1403 = vmatpush1.msra.mxu0 %v1134
      %1404 = vmatprep.subr.mxu0 %v1128
      %1405 = vmatpush1.msra.mxu0 %v1127
      %1406 = vmatprep.subr.mxu0 %v1121
      %1407 = vmatpush1.msra.mxu0 %v1120
      %1408 = vmatprep.subr.mxu0 %v1114
      %1409 = vmatpush1.msra.mxu0 %v1113
      %1410 = vmatprep.subr.mxu0 %v1107
      %1411 = vmatpush1.msra.mxu0 %v1106
      %1412 = vmatprep.subr.mxu0 %v1100
      %1413 = vmatpush1.msra.mxu0 %v1099
      %1414 = vmatprep.subr.mxu0 %v1093
      %1415 = vmatpush1.msra.mxu0 %v1092
      %1416 = vmatprep.subr.mxu0 %v1086
      %1417 = vmatpush1.msra.mxu0 %v1085
      %1418 = vmatprep.subr.mxu0 %v1079
      %1419 = vmatpush1.msra.mxu0 %v1078
      %1420 = vmatprep.subr.mxu0 %v1072
      %1421 = vmatpush1.msra.mxu0 %v1071
      %1422 = vmatprep.subr.mxu0 %v1065
      %1423 = vmatpush1.msra.mxu0 %v1064
      %1424 = vmatprep.subr.mxu0 %v1058
      %1425 = vmatpush1.msra.mxu0 %v1057
      %1426 = vmatprep.subr.mxu0 %v1051
      %1427 = vmatpush1.msra.mxu0 %v1050
      %1428 = vmatprep.subr.mxu0 %v1044
      %1429 = vmatpush1.msra.mxu0 %v1043
      %1430 = vmatprep.subr.mxu0 %v1037
      %1431 = vmatpush1.msra.mxu0 %v1036
      %1432 = vmatprep.subr.mxu0 %v1030
      %1433 = vmatpush1.msra.mxu0 %v1029
      %1434 = vmatprep.subr.mxu0 %v1247
      %1435 = vmatpush2.msra.mxu0 %v1246
      %1436 = vmatprep.subr.mxu0 %v1240
      %1437 = vmatpush2.msra.mxu0 %v1239
      %1438 = vmatprep.subr.mxu0 %v1233
      %1439 = vmatpush2.msra.mxu0 %v1232
      %1440 = vmatprep.subr.mxu0 %v1226
      %1441 = vmatpush2.msra.mxu0 %v1225
      %1442 = vmatprep.subr.mxu0 %v1219
      %1443 = vmatpush2.msra.mxu0 %v1218
      %1444 = vmatprep.subr.mxu0 %v1212
      %1445 = vmatpush2.msra.mxu0 %v1211
      %1446 = vmatprep.subr.mxu0 %v1205
      %1447 = vmatpush2.msra.mxu0 %v1204
      %1448 = vmatprep.subr.mxu0 %v1198
      %1449 = vmatpush2.msra.mxu0 %v1197
      %1450 = vmatprep.subr.mxu0 %v1191
      %1451 = vmatpush2.msra.mxu0 %v1190
      %1452 = vmatprep.subr.mxu0 %v1184
      %1453 = vmatpush2.msra.mxu0 %v1183
      %1454 = vmatprep.subr.mxu0 %v1177
      %1455 = vmatpush2.msra.mxu0 %v1176
      %1456 = vmatprep.subr.mxu0 %v1170
      %1457 = vmatpush2.msra.mxu0 %v1169
      %1458 = vmatprep.subr.mxu0 %v1163
      %1459 = vmatpush2.msra.mxu0 %v1162
      %1460 = vmatprep.subr.mxu0 %v1156
      %1461 = vmatpush2.msra.mxu0 %v1155
      %1462 = vmatprep.subr.mxu0 %v1149
      %1463 = vmatpush2.msra.mxu0 %v1148
      %1464 = vmatprep.subr.mxu0 %v1142
      %1465 = vmatpush2.msra.mxu0 %v1141
      %1466 = vmatprep.mubr.f32.mxu0 %v1259
      %1467 = vmatmul.mubr.f32.gmra.mxu0 %v1258
      %v1468 = vpop.f32.mrf.mxu0
      %v1469 = vadd.f32 0.0, %v1468
      %v1470 = vpop.f32.mrf.mxu0
      %v1471 = vadd.f32 0.0, %v1470
      %1472 = vmatprep.mubr.f32.mxu0 %v1261
      %1473 = vmatmul.mubr.f32.gmra.mxu0 %v1260
      %v1474 = vpop.f32.mrf.mxu0
      %v1475 = vadd.f32 0.0, %v1474
      %v1476 = vpop.f32.mrf.mxu0
      %v1477 = vadd.f32 0.0, %v1476
      %1478 = vmatprep.mubr.f32.mxu0 %v1263
      %1479 = vmatmul.mubr.f32.gmra.mxu0 %v1262
      %v1480 = vpop.f32.mrf.mxu0
      %v1481 = vadd.f32 0.0, %v1480
      %v1482 = vpop.f32.mrf.mxu0
      %v1483 = vadd.f32 0.0, %v1482
      %1484 = vmatprep.mubr.f32.mxu0 %v1265
      %1485 = vmatmul.mubr.f32.gmra.mxu0 %v1264
      %v1486 = vpop.f32.mrf.mxu0
      %v1487 = vadd.f32 0.0, %v1486
      %v1488 = vpop.f32.mrf.mxu0
      %v1489 = vadd.f32 0.0, %v1488
      %1490 = vmatprep.mubr.f32.mxu0 %v1267
      %1491 = vmatmul.mubr.f32.gmra.mxu0 %v1266
      %v1492 = vpop.f32.mrf.mxu0
      %v1493 = vadd.f32 0.0, %v1492
      %v1494 = vpop.f32.mrf.mxu0
      %v1495 = vadd.f32 0.0, %v1494
      %1496 = vmatprep.mubr.f32.mxu0 %v1269
      %1497 = vmatmul.mubr.f32.gmra.mxu0 %v1268
      %v1498 = vpop.f32.mrf.mxu0
      %v1499 = vadd.f32 0.0, %v1498
      %v1500 = vpop.f32.mrf.mxu0
      %v1501 = vadd.f32 0.0, %v1500
      %1502 = vmatprep.mubr.f32.mxu0 %v1271
      %1503 = vmatmul.mubr.f32.gmra.mxu0 %v1270
      %v1504 = vpop.f32.mrf.mxu0
      %v1505 = vadd.f32 0.0, %v1504
      %v1506 = vpop.f32.mrf.mxu0
      %v1507 = vadd.f32 0.0, %v1506
      %1508 = vmatprep.mubr.f32.mxu0 %v1273
      %1509 = vmatmul.mubr.f32.gmra.mxu0 %v1272
      %v1510 = vpop.f32.mrf.mxu0
      %v1511 = vadd.f32 0.0, %v1510
      %v1512 = vpop.f32.mrf.mxu0
      %v1513 = vadd.f32 0.0, %v1512
      %1514 = vmatprep.mubr.f32.mxu0 %v1275
      %1515 = vmatmul.mubr.f32.gmra.mxu0 %v1274
      %v1516 = vpop.f32.mrf.mxu0
      %v1517 = vadd.f32 0.0, %v1516
      %v1518 = vpop.f32.mrf.mxu0
      %v1519 = vadd.f32 0.0, %v1518
      %1520 = vmatprep.mubr.f32.mxu0 %v1277
      %1521 = vmatmul.mubr.f32.gmra.mxu0 %v1276
      %v1522 = vpop.f32.mrf.mxu0
      %v1523 = vadd.f32 0.0, %v1522
      %v1524 = vpop.f32.mrf.mxu0
      %v1525 = vadd.f32 0.0, %v1524
      %1526 = vmatprep.mubr.f32.mxu0 %v1279
      %1527 = vmatmul.mubr.f32.gmra.mxu0 %v1278
      %v1528 = vpop.f32.mrf.mxu0
      %v1529 = vadd.f32 0.0, %v1528
      %v1530 = vpop.f32.mrf.mxu0
      %v1531 = vadd.f32 0.0, %v1530
      %1532 = vmatprep.mubr.f32.mxu0 %v1281
      %1533 = vmatmul.mubr.f32.gmra.mxu0 %v1280
      %v1534 = vpop.f32.mrf.mxu0
      %v1535 = vadd.f32 0.0, %v1534
      %v1536 = vpop.f32.mrf.mxu0
      %v1537 = vadd.f32 0.0, %v1536
      %1538 = vmatprep.mubr.f32.mxu0 %v1283
      %1539 = vmatmul.mubr.f32.gmra.mxu0 %v1282
      %v1540 = vpop.f32.mrf.mxu0
      %v1541 = vadd.f32 0.0, %v1540
      %v1542 = vpop.f32.mrf.mxu0
      %v1543 = vadd.f32 0.0, %v1542
      %1544 = vmatprep.mubr.f32.mxu0 %v1285
      %1545 = vmatmul.mubr.f32.gmra.mxu0 %v1284
      %v1546 = vpop.f32.mrf.mxu0
      %v1547 = vadd.f32 0.0, %v1546
      %v1548 = vpop.f32.mrf.mxu0
      %v1549 = vadd.f32 0.0, %v1548
      %1550 = vmatprep.mubr.f32.mxu0 %v1287
      %1551 = vmatmul.mubr.f32.gmra.mxu0 %v1286
      %v1552 = vpop.f32.mrf.mxu0
      %v1553 = vadd.f32 0.0, %v1552
      %v1554 = vpop.f32.mrf.mxu0
      %v1555 = vadd.f32 0.0, %v1554
      %1556 = vmatprep.mubr.f32.mxu0 %v1289
      %1557 = vmatmul.mubr.f32.gmra.mxu0 %v1288
      %v1558 = vpop.f32.mrf.mxu0
      %v1559 = vadd.f32 0.0, %v1558
      %v1560 = vpop.f32.mrf.mxu0
      %v1561 = vadd.f32 0.0, %v1560
      %1562 = vdwg.mxu0
      %1563 = vmatprep.subr.mxu0 %v1137
      %1564 = vmatpush1.msra.mxu0 %v1136
      %1565 = vmatprep.subr.mxu0 %v1130
      %1566 = vmatpush1.msra.mxu0 %v1129
      %1567 = vmatprep.subr.mxu0 %v1123
      %1568 = vmatpush1.msra.mxu0 %v1122
      %1569 = vmatprep.subr.mxu0 %v1116
      %1570 = vmatpush1.msra.mxu0 %v1115
      %1571 = vmatprep.subr.mxu0 %v1109
      %1572 = vmatpush1.msra.mxu0 %v1108
      %1573 = vmatprep.subr.mxu0 %v1102
      %1574 = vmatpush1.msra.mxu0 %v1101
      %1575 = vmatprep.subr.mxu0 %v1095
      %1576 = vmatpush1.msra.mxu0 %v1094
      %1577 = vmatprep.subr.mxu0 %v1088
      %1578 = vmatpush1.msra.mxu0 %v1087
      %1579 = vmatprep.subr.mxu0 %v1081
      %1580 = vmatpush1.msra.mxu0 %v1080
      %1581 = vmatprep.subr.mxu0 %v1074
      %1582 = vmatpush1.msra.mxu0 %v1073
      %1583 = vmatprep.subr.mxu0 %v1067
      %1584 = vmatpush1.msra.mxu0 %v1066
      %1585 = vmatprep.subr.mxu0 %v1060
      %1586 = vmatpush1.msra.mxu0 %v1059
      %1587 = vmatprep.subr.mxu0 %v1053
      %1588 = vmatpush1.msra.mxu0 %v1052
      %1589 = vmatprep.subr.mxu0 %v1046
      %1590 = vmatpush1.msra.mxu0 %v1045
      %1591 = vmatprep.subr.mxu0 %v1039
      %1592 = vmatpush1.msra.mxu0 %v1038
      %1593 = vmatprep.subr.mxu0 %v1032
      %1594 = vmatpush1.msra.mxu0 %v1031
      %1595 = vmatprep.subr.mxu0 %v1249
      %1596 = vmatpush2.msra.mxu0 %v1248
      %1597 = vmatprep.subr.mxu0 %v1242
      %1598 = vmatpush2.msra.mxu0 %v1241
      %1599 = vmatprep.subr.mxu0 %v1235
      %1600 = vmatpush2.msra.mxu0 %v1234
      %1601 = vmatprep.subr.mxu0 %v1228
      %1602 = vmatpush2.msra.mxu0 %v1227
      %1603 = vmatprep.subr.mxu0 %v1221
      %1604 = vmatpush2.msra.mxu0 %v1220
      %1605 = vmatprep.subr.mxu0 %v1214
      %1606 = vmatpush2.msra.mxu0 %v1213
      %1607 = vmatprep.subr.mxu0 %v1207
      %1608 = vmatpush2.msra.mxu0 %v1206
      %1609 = vmatprep.subr.mxu0 %v1200
      %1610 = vmatpush2.msra.mxu0 %v1199
      %1611 = vmatprep.subr.mxu0 %v1193
      %1612 = vmatpush2.msra.mxu0 %v1192
      %1613 = vmatprep.subr.mxu0 %v1186
      %1614 = vmatpush2.msra.mxu0 %v1185
      %1615 = vmatprep.subr.mxu0 %v1179
      %1616 = vmatpush2.msra.mxu0 %v1178
      %1617 = vmatprep.subr.mxu0 %v1172
      %1618 = vmatpush2.msra.mxu0 %v1171
      %1619 = vmatprep.subr.mxu0 %v1165
      %1620 = vmatpush2.msra.mxu0 %v1164
      %1621 = vmatprep.subr.mxu0 %v1158
      %1622 = vmatpush2.msra.mxu0 %v1157
      %1623 = vmatprep.subr.mxu0 %v1151
      %1624 = vmatpush2.msra.mxu0 %v1150
      %1625 = vmatprep.subr.mxu0 %v1144
      %1626 = vmatpush2.msra.mxu0 %v1143
      %1627 = vmatprep.mubr.f32.mxu0 %v1259
      %1628 = vmatmul.mubr.f32.gmra.mxu0 %v1258
      %v1629 = vpop.f32.mrf.mxu0
      %v1630 = vadd.f32 0.0, %v1629
      %v1631 = vpop.f32.mrf.mxu0
      %v1632 = vadd.f32 0.0, %v1631
      %1633 = vmatprep.mubr.f32.mxu0 %v1261
      %1634 = vmatmul.mubr.f32.gmra.mxu0 %v1260
      %v1635 = vpop.f32.mrf.mxu0
      %v1636 = vadd.f32 0.0, %v1635
      %v1637 = vpop.f32.mrf.mxu0
      %v1638 = vadd.f32 0.0, %v1637
      %1639 = vmatprep.mubr.f32.mxu0 %v1263
      %1640 = vmatmul.mubr.f32.gmra.mxu0 %v1262
      %v1641 = vpop.f32.mrf.mxu0
      %v1642 = vadd.f32 0.0, %v1641
      %v1643 = vpop.f32.mrf.mxu0
      %v1644 = vadd.f32 0.0, %v1643
      %1645 = vmatprep.mubr.f32.mxu0 %v1265
      %1646 = vmatmul.mubr.f32.gmra.mxu0 %v1264
      %v1647 = vpop.f32.mrf.mxu0
      %v1648 = vadd.f32 0.0, %v1647
      %v1649 = vpop.f32.mrf.mxu0
      %v1650 = vadd.f32 0.0, %v1649
      %1651 = vmatprep.mubr.f32.mxu0 %v1267
      %1652 = vmatmul.mubr.f32.gmra.mxu0 %v1266
      %v1653 = vpop.f32.mrf.mxu0
      %v1654 = vadd.f32 0.0, %v1653
      %v1655 = vpop.f32.mrf.mxu0
      %v1656 = vadd.f32 0.0, %v1655
      %1657 = vmatprep.mubr.f32.mxu0 %v1269
      %1658 = vmatmul.mubr.f32.gmra.mxu0 %v1268
      %v1659 = vpop.f32.mrf.mxu0
      %v1660 = vadd.f32 0.0, %v1659
      %v1661 = vpop.f32.mrf.mxu0
      %v1662 = vadd.f32 0.0, %v1661
      %1663 = vmatprep.mubr.f32.mxu0 %v1271
      %1664 = vmatmul.mubr.f32.gmra.mxu0 %v1270
      %v1665 = vpop.f32.mrf.mxu0
      %v1666 = vadd.f32 0.0, %v1665
      %v1667 = vpop.f32.mrf.mxu0
      %v1668 = vadd.f32 0.0, %v1667
      %1669 = vmatprep.mubr.f32.mxu0 %v1273
      %1670 = vmatmul.mubr.f32.gmra.mxu0 %v1272
      %v1671 = vpop.f32.mrf.mxu0
      %v1672 = vadd.f32 0.0, %v1671
      %v1673 = vpop.f32.mrf.mxu0
      %v1674 = vadd.f32 0.0, %v1673
      %1675 = vmatprep.mubr.f32.mxu0 %v1275
      %1676 = vmatmul.mubr.f32.gmra.mxu0 %v1274
      %v1677 = vpop.f32.mrf.mxu0
      %v1678 = vadd.f32 0.0, %v1677
      %v1679 = vpop.f32.mrf.mxu0
      %v1680 = vadd.f32 0.0, %v1679
      %1681 = vmatprep.mubr.f32.mxu0 %v1277
      %1682 = vmatmul.mubr.f32.gmra.mxu0 %v1276
      %v1683 = vpop.f32.mrf.mxu0
      %v1684 = vadd.f32 0.0, %v1683
      %v1685 = vpop.f32.mrf.mxu0
      %v1686 = vadd.f32 0.0, %v1685
      %1687 = vmatprep.mubr.f32.mxu0 %v1279
      %1688 = vmatmul.mubr.f32.gmra.mxu0 %v1278
      %v1689 = vpop.f32.mrf.mxu0
      %v1690 = vadd.f32 0.0, %v1689
      %v1691 = vpop.f32.mrf.mxu0
      %v1692 = vadd.f32 0.0, %v1691
      %1693 = vmatprep.mubr.f32.mxu0 %v1281
      %1694 = vmatmul.mubr.f32.gmra.mxu0 %v1280
      %v1695 = vpop.f32.mrf.mxu0
      %v1696 = vadd.f32 0.0, %v1695
      %v1697 = vpop.f32.mrf.mxu0
      %v1698 = vadd.f32 0.0, %v1697
      %1699 = vmatprep.mubr.f32.mxu0 %v1283
      %1700 = vmatmul.mubr.f32.gmra.mxu0 %v1282
      %v1701 = vpop.f32.mrf.mxu0
      %v1702 = vadd.f32 0.0, %v1701
      %v1703 = vpop.f32.mrf.mxu0
      %v1704 = vadd.f32 0.0, %v1703
      %1705 = vmatprep.mubr.f32.mxu0 %v1285
      %1706 = vmatmul.mubr.f32.gmra.mxu0 %v1284
      %v1707 = vpop.f32.mrf.mxu0
      %v1708 = vadd.f32 0.0, %v1707
      %v1709 = vpop.f32.mrf.mxu0
      %v1710 = vadd.f32 0.0, %v1709
      %1711 = vmatprep.mubr.f32.mxu0 %v1287
      %1712 = vmatmul.mubr.f32.gmra.mxu0 %v1286
      %v1713 = vpop.f32.mrf.mxu0
      %v1714 = vadd.f32 0.0, %v1713
      %v1715 = vpop.f32.mrf.mxu0
      %v1716 = vadd.f32 0.0, %v1715
      %1717 = vmatprep.mubr.f32.mxu0 %v1289
      %1718 = vmatmul.mubr.f32.gmra.mxu0 %v1288
      %v1719 = vpop.f32.mrf.mxu0
      %v1720 = vadd.f32 0.0, %v1719
      %v1721 = vpop.f32.mrf.mxu0
      %v1722 = vadd.f32 0.0, %v1721
      %1723 = vdwg.mxu0
      %1724 = vmatprep.subr.mxu0 %v1139
      %1725 = vmatpush1.msra.mxu0 %v1138
      %1726 = vmatprep.subr.mxu0 %v1132
      %1727 = vmatpush1.msra.mxu0 %v1131
      %1728 = vmatprep.subr.mxu0 %v1125
      %1729 = vmatpush1.msra.mxu0 %v1124
      %1730 = vmatprep.subr.mxu0 %v1118
      %1731 = vmatpush1.msra.mxu0 %v1117
      %1732 = vmatprep.subr.mxu0 %v1111
      %1733 = vmatpush1.msra.mxu0 %v1110
      %1734 = vmatprep.subr.mxu0 %v1104
      %1735 = vmatpush1.msra.mxu0 %v1103
      %1736 = vmatprep.subr.mxu0 %v1097
      %1737 = vmatpush1.msra.mxu0 %v1096
      %1738 = vmatprep.subr.mxu0 %v1090
      %1739 = vmatpush1.msra.mxu0 %v1089
      %1740 = vmatprep.subr.mxu0 %v1083
      %1741 = vmatpush1.msra.mxu0 %v1082
      %1742 = vmatprep.subr.mxu0 %v1076
      %1743 = vmatpush1.msra.mxu0 %v1075
      %1744 = vmatprep.subr.mxu0 %v1069
      %1745 = vmatpush1.msra.mxu0 %v1068
      %1746 = vmatprep.subr.mxu0 %v1062
      %1747 = vmatpush1.msra.mxu0 %v1061
      %1748 = vmatprep.subr.mxu0 %v1055
      %1749 = vmatpush1.msra.mxu0 %v1054
      %1750 = vmatprep.subr.mxu0 %v1048
      %1751 = vmatpush1.msra.mxu0 %v1047
      %1752 = vmatprep.subr.mxu0 %v1041
      %1753 = vmatpush1.msra.mxu0 %v1040
      %1754 = vmatprep.subr.mxu0 %v1034
      %1755 = vmatpush1.msra.mxu0 %v1033
      %1756 = vmatprep.subr.mxu0 %v1251
      %1757 = vmatpush2.msra.mxu0 %v1250
      %1758 = vmatprep.subr.mxu0 %v1244
      %1759 = vmatpush2.msra.mxu0 %v1243
      %1760 = vmatprep.subr.mxu0 %v1237
      %1761 = vmatpush2.msra.mxu0 %v1236
      %1762 = vmatprep.subr.mxu0 %v1230
      %1763 = vmatpush2.msra.mxu0 %v1229
      %1764 = vmatprep.subr.mxu0 %v1223
      %1765 = vmatpush2.msra.mxu0 %v1222
      %1766 = vmatprep.subr.mxu0 %v1216
      %1767 = vmatpush2.msra.mxu0 %v1215
      %1768 = vmatprep.subr.mxu0 %v1209
      %1769 = vmatpush2.msra.mxu0 %v1208
      %1770 = vmatprep.subr.mxu0 %v1202
      %1771 = vmatpush2.msra.mxu0 %v1201
      %1772 = vmatprep.subr.mxu0 %v1195
      %1773 = vmatpush2.msra.mxu0 %v1194
      %1774 = vmatprep.subr.mxu0 %v1188
      %1775 = vmatpush2.msra.mxu0 %v1187
      %1776 = vmatprep.subr.mxu0 %v1181
      %1777 = vmatpush2.msra.mxu0 %v1180
      %1778 = vmatprep.subr.mxu0 %v1174
      %1779 = vmatpush2.msra.mxu0 %v1173
      %1780 = vmatprep.subr.mxu0 %v1167
      %1781 = vmatpush2.msra.mxu0 %v1166
      %1782 = vmatprep.subr.mxu0 %v1160
      %1783 = vmatpush2.msra.mxu0 %v1159
      %1784 = vmatprep.subr.mxu0 %v1153
      %1785 = vmatpush2.msra.mxu0 %v1152
      %1786 = vmatprep.subr.mxu0 %v1146
      %1787 = vmatpush2.msra.mxu0 %v1145
      %1788 = vmatprep.mubr.f32.mxu0 %v1259
      %1789 = vmatmul.mubr.f32.gmra.mxu0 %v1258
      %v1790 = vpop.f32.mrf.mxu0
      %v1791 = vadd.f32 0.0, %v1790
      %v1792 = vpop.f32.mrf.mxu0
      %v1793 = vadd.f32 0.0, %v1792
      %1794 = vmatprep.mubr.f32.mxu0 %v1261
      %1795 = vmatmul.mubr.f32.gmra.mxu0 %v1260
      %v1796 = vpop.f32.mrf.mxu0
      %v1797 = vadd.f32 0.0, %v1796
      %v1798 = vpop.f32.mrf.mxu0
      %v1799 = vadd.f32 0.0, %v1798
      %1800 = vmatprep.mubr.f32.mxu0 %v1263
      %1801 = vmatmul.mubr.f32.gmra.mxu0 %v1262
      %v1802 = vpop.f32.mrf.mxu0
      %v1803 = vadd.f32 0.0, %v1802
      %v1804 = vpop.f32.mrf.mxu0
      %v1805 = vadd.f32 0.0, %v1804
      %1806 = vmatprep.mubr.f32.mxu0 %v1265
      %1807 = vmatmul.mubr.f32.gmra.mxu0 %v1264
      %v1808 = vpop.f32.mrf.mxu0
      %v1809 = vadd.f32 0.0, %v1808
      %v1810 = vpop.f32.mrf.mxu0
      %v1811 = vadd.f32 0.0, %v1810
      %1812 = vmatprep.mubr.f32.mxu0 %v1267
      %1813 = vmatmul.mubr.f32.gmra.mxu0 %v1266
      %v1814 = vpop.f32.mrf.mxu0
      %v1815 = vadd.f32 0.0, %v1814
      %v1816 = vpop.f32.mrf.mxu0
      %v1817 = vadd.f32 0.0, %v1816
      %1818 = vmatprep.mubr.f32.mxu0 %v1269
      %1819 = vmatmul.mubr.f32.gmra.mxu0 %v1268
      %v1820 = vpop.f32.mrf.mxu0
      %v1821 = vadd.f32 0.0, %v1820
      %v1822 = vpop.f32.mrf.mxu0
      %v1823 = vadd.f32 0.0, %v1822
      %1824 = vmatprep.mubr.f32.mxu0 %v1271
      %1825 = vmatmul.mubr.f32.gmra.mxu0 %v1270
      %v1826 = vpop.f32.mrf.mxu0
      %v1827 = vadd.f32 0.0, %v1826
      %v1828 = vpop.f32.mrf.mxu0
      %v1829 = vadd.f32 0.0, %v1828
      %1830 = vmatprep.mubr.f32.mxu0 %v1273
      %1831 = vmatmul.mubr.f32.gmra.mxu0 %v1272
      %v1832 = vpop.f32.mrf.mxu0
      %v1833 = vadd.f32 0.0, %v1832
      %v1834 = vpop.f32.mrf.mxu0
      %v1835 = vadd.f32 0.0, %v1834
      %1836 = vmatprep.mubr.f32.mxu0 %v1275
      %1837 = vmatmul.mubr.f32.gmra.mxu0 %v1274
      %v1838 = vpop.f32.mrf.mxu0
      %v1839 = vadd.f32 0.0, %v1838
      %v1840 = vpop.f32.mrf.mxu0
      %v1841 = vadd.f32 0.0, %v1840
      %1842 = vmatprep.mubr.f32.mxu0 %v1277
      %1843 = vmatmul.mubr.f32.gmra.mxu0 %v1276
      %v1844 = vpop.f32.mrf.mxu0
      %v1845 = vadd.f32 0.0, %v1844
      %v1846 = vpop.f32.mrf.mxu0
      %v1847 = vadd.f32 0.0, %v1846
      %1848 = vmatprep.mubr.f32.mxu0 %v1279
      %1849 = vmatmul.mubr.f32.gmra.mxu0 %v1278
      %v1850 = vpop.f32.mrf.mxu0
      %v1851 = vadd.f32 0.0, %v1850
      %v1852 = vpop.f32.mrf.mxu0
      %v1853 = vadd.f32 0.0, %v1852
      %1854 = vmatprep.mubr.f32.mxu0 %v1281
      %1855 = vmatmul.mubr.f32.gmra.mxu0 %v1280
      %v1856 = vpop.f32.mrf.mxu0
      %v1857 = vadd.f32 0.0, %v1856
      %v1858 = vpop.f32.mrf.mxu0
      %v1859 = vadd.f32 0.0, %v1858
      %1860 = vmatprep.mubr.f32.mxu0 %v1283
      %1861 = vmatmul.mubr.f32.gmra.mxu0 %v1282
      %v1862 = vpop.f32.mrf.mxu0
      %v1863 = vadd.f32 0.0, %v1862
      %v1864 = vpop.f32.mrf.mxu0
      %v1865 = vadd.f32 0.0, %v1864
      %1866 = vmatprep.mubr.f32.mxu0 %v1285
      %1867 = vmatmul.mubr.f32.gmra.mxu0 %v1284
      %v1868 = vpop.f32.mrf.mxu0
      %v1869 = vadd.f32 0.0, %v1868
      %v1870 = vpop.f32.mrf.mxu0
      %v1871 = vadd.f32 0.0, %v1870
      %1872 = vmatprep.mubr.f32.mxu0 %v1287
      %1873 = vmatmul.mubr.f32.gmra.mxu0 %v1286
      %v1874 = vpop.f32.mrf.mxu0
      %v1875 = vadd.f32 0.0, %v1874
      %v1876 = vpop.f32.mrf.mxu0
      %v1877 = vadd.f32 0.0, %v1876
      %1878 = vmatprep.mubr.f32.mxu0 %v1289
      %1879 = vmatmul.mubr.f32.gmra.mxu0 %v1288
      %v1880 = vpop.f32.mrf.mxu0
      %v1881 = vadd.f32 0.0, %v1880
      %v1882 = vpop.f32.mrf.mxu0
      %v1883 = vadd.f32 0.0, %v1882
      %1884 = vdwg.mxu0
      %1885 = vmatprep.subr.mxu0 0.0
      %1886 = vmatpush1.msra.mxu0 %v1140
      %1887 = vmatprep.subr.mxu0 0.0
      %1888 = vmatpush1.msra.mxu0 %v1133
      %1889 = vmatprep.subr.mxu0 0.0
      %1890 = vmatpush1.msra.mxu0 %v1126
      %1891 = vmatprep.subr.mxu0 0.0
      %1892 = vmatpush1.msra.mxu0 %v1119
      %1893 = vmatprep.subr.mxu0 0.0
      %1894 = vmatpush1.msra.mxu0 %v1112
      %1895 = vmatprep.subr.mxu0 0.0
      %1896 = vmatpush1.msra.mxu0 %v1105
      %1897 = vmatprep.subr.mxu0 0.0
      %1898 = vmatpush1.msra.mxu0 %v1098
      %1899 = vmatprep.subr.mxu0 0.0
      %1900 = vmatpush1.msra.mxu0 %v1091
      %1901 = vmatprep.subr.mxu0 0.0
      %1902 = vmatpush1.msra.mxu0 %v1084
      %1903 = vmatprep.subr.mxu0 0.0
      %1904 = vmatpush1.msra.mxu0 %v1077
      %1905 = vmatprep.subr.mxu0 0.0
      %1906 = vmatpush1.msra.mxu0 %v1070
      %1907 = vmatprep.subr.mxu0 0.0
      %1908 = vmatpush1.msra.mxu0 %v1063
      %1909 = vmatprep.subr.mxu0 0.0
      %1910 = vmatpush1.msra.mxu0 %v1056
      %1911 = vmatprep.subr.mxu0 0.0
      %1912 = vmatpush1.msra.mxu0 %v1049
      %1913 = vmatprep.subr.mxu0 0.0
      %1914 = vmatpush1.msra.mxu0 %v1042
      %1915 = vmatprep.subr.mxu0 0.0
      %1916 = vmatpush1.msra.mxu0 %v1035
      %1917 = vmatprep.subr.mxu0 0.0
      %1918 = vmatpush2.msra.mxu0 %v1252
      %1919 = vmatprep.subr.mxu0 0.0
      %1920 = vmatpush2.msra.mxu0 %v1245
      %1921 = vmatprep.subr.mxu0 0.0
      %1922 = vmatpush2.msra.mxu0 %v1238
      %1923 = vmatprep.subr.mxu0 0.0
      %1924 = vmatpush2.msra.mxu0 %v1231
      %1925 = vmatprep.subr.mxu0 0.0
      %1926 = vmatpush2.msra.mxu0 %v1224
      %1927 = vmatprep.subr.mxu0 0.0
      %1928 = vmatpush2.msra.mxu0 %v1217
      %1929 = vmatprep.subr.mxu0 0.0
      %1930 = vmatpush2.msra.mxu0 %v1210
      %1931 = vmatprep.subr.mxu0 0.0
      %1932 = vmatpush2.msra.mxu0 %v1203
      %1933 = vmatprep.subr.mxu0 0.0
      %1934 = vmatpush2.msra.mxu0 %v1196
      %1935 = vmatprep.subr.mxu0 0.0
      %1936 = vmatpush2.msra.mxu0 %v1189
      %1937 = vmatprep.subr.mxu0 0.0
      %1938 = vmatpush2.msra.mxu0 %v1182
      %1939 = vmatprep.subr.mxu0 0.0
      %1940 = vmatpush2.msra.mxu0 %v1175
      %1941 = vmatprep.subr.mxu0 0.0
      %1942 = vmatpush2.msra.mxu0 %v1168
      %1943 = vmatprep.subr.mxu0 0.0
      %1944 = vmatpush2.msra.mxu0 %v1161
      %1945 = vmatprep.subr.mxu0 0.0
      %1946 = vmatpush2.msra.mxu0 %v1154
      %1947 = vmatprep.subr.mxu0 0.0
      %1948 = vmatpush2.msra.mxu0 %v1147
      %1949 = vmatprep.mubr.f32.mxu0 %v1259
      %1950 = vmatmul.mubr.f32.gmra.mxu0 %v1258
      %v1951 = vpop.f32.mrf.mxu0
      %v1952 = vadd.f32 0.0, %v1951
      %v1953 = vpop.f32.mrf.mxu0
      %1954 = vmatprep.mubr.f32.mxu0 %v1261
      %1955 = vmatmul.mubr.f32.gmra.mxu0 %v1260
      %v1956 = vpop.f32.mrf.mxu0
      %v1957 = vadd.f32 0.0, %v1956
      %v1958 = vpop.f32.mrf.mxu0
      %1959 = vmatprep.mubr.f32.mxu0 %v1263
      %1960 = vmatmul.mubr.f32.gmra.mxu0 %v1262
      %v1961 = vpop.f32.mrf.mxu0
      %v1962 = vadd.f32 0.0, %v1961
      %v1963 = vpop.f32.mrf.mxu0
      %1964 = vmatprep.mubr.f32.mxu0 %v1265
      %1965 = vmatmul.mubr.f32.gmra.mxu0 %v1264
      %v1966 = vpop.f32.mrf.mxu0
      %v1967 = vadd.f32 0.0, %v1966
      %v1968 = vpop.f32.mrf.mxu0
      %1969 = vmatprep.mubr.f32.mxu0 %v1267
      %1970 = vmatmul.mubr.f32.gmra.mxu0 %v1266
      %v1971 = vpop.f32.mrf.mxu0
      %v1972 = vadd.f32 0.0, %v1971
      %v1973 = vpop.f32.mrf.mxu0
      %1974 = vmatprep.mubr.f32.mxu0 %v1269
      %1975 = vmatmul.mubr.f32.gmra.mxu0 %v1268
      %v1976 = vpop.f32.mrf.mxu0
      %v1977 = vadd.f32 0.0, %v1976
      %v1978 = vpop.f32.mrf.mxu0
      %1979 = vmatprep.mubr.f32.mxu0 %v1271
      %1980 = vmatmul.mubr.f32.gmra.mxu0 %v1270
      %v1981 = vpop.f32.mrf.mxu0
      %v1982 = vadd.f32 0.0, %v1981
      %v1983 = vpop.f32.mrf.mxu0
      %1984 = vmatprep.mubr.f32.mxu0 %v1273
      %1985 = vmatmul.mubr.f32.gmra.mxu0 %v1272
      %v1986 = vpop.f32.mrf.mxu0
      %v1987 = vadd.f32 0.0, %v1986
      %v1988 = vpop.f32.mrf.mxu0
      %1989 = vmatprep.mubr.f32.mxu0 %v1275
      %1990 = vmatmul.mubr.f32.gmra.mxu0 %v1274
      %v1991 = vpop.f32.mrf.mxu0
      %v1992 = vadd.f32 0.0, %v1991
      %v1993 = vpop.f32.mrf.mxu0
      %1994 = vmatprep.mubr.f32.mxu0 %v1277
      %1995 = vmatmul.mubr.f32.gmra.mxu0 %v1276
      %v1996 = vpop.f32.mrf.mxu0
      %v1997 = vadd.f32 0.0, %v1996
      %v1998 = vpop.f32.mrf.mxu0
      %1999 = vmatprep.mubr.f32.mxu0 %v1279
      %2000 = vmatmul.mubr.f32.gmra.mxu0 %v1278
      %v2001 = vpop.f32.mrf.mxu0
      %v2002 = vadd.f32 0.0, %v2001
      %v2003 = vpop.f32.mrf.mxu0
      %2004 = vmatprep.mubr.f32.mxu0 %v1281
      %2005 = vmatmul.mubr.f32.gmra.mxu0 %v1280
      %v2006 = vpop.f32.mrf.mxu0
      %v2007 = vadd.f32 0.0, %v2006
      %v2008 = vpop.f32.mrf.mxu0
      %2009 = vmatprep.mubr.f32.mxu0 %v1283
      %2010 = vmatmul.mubr.f32.gmra.mxu0 %v1282
      %v2011 = vpop.f32.mrf.mxu0
      %v2012 = vadd.f32 0.0, %v2011
      %v2013 = vpop.f32.mrf.mxu0
      %2014 = vmatprep.mubr.f32.mxu0 %v1285
      %2015 = vmatmul.mubr.f32.gmra.mxu0 %v1284
      %v2016 = vpop.f32.mrf.mxu0
      %v2017 = vadd.f32 0.0, %v2016
      %v2018 = vpop.f32.mrf.mxu0
      %2019 = vmatprep.mubr.f32.mxu0 %v1287
      %2020 = vmatmul.mubr.f32.gmra.mxu0 %v1286
      %v2021 = vpop.f32.mrf.mxu0
      %v2022 = vadd.f32 0.0, %v2021
      %v2023 = vpop.f32.mrf.mxu0
      %2024 = vmatprep.mubr.f32.mxu0 %v1289
      %2025 = vmatmul.mubr.f32.gmra.mxu0 %v1288
      %v2026 = vpop.f32.mrf.mxu0
      %v2027 = vadd.f32 0.0, %v2026
      %v2028 = vpop.f32.mrf.mxu0
      %2029 = vdwg.mxu0
      %v2030 = vadd.f32 %v1290, %v1469
      %v2031 = vadd.f32 %v1291, %v1471
      %v2032 = vadd.f32 %v1292, %v1630
      %v2033 = vadd.f32 %v1293, %v1632
      %v2034 = vadd.f32 %v1294, %v1791
      %v2035 = vadd.f32 %v1295, %v1793
      %v2036 = vadd.f32 %v1296, %v1952
      %v2037 = vadd.f32 %v1297, %v1475
      %v2038 = vadd.f32 %v1298, %v1477
      %v2039 = vadd.f32 %v1299, %v1636
      %v2040 = vadd.f32 %v1300, %v1638
      %v2041 = vadd.f32 %v1301, %v1797
      %v2042 = vadd.f32 %v1302, %v1799
      %v2043 = vadd.f32 %v1303, %v1957
      %v2044 = vadd.f32 %v1304, %v1481
      %v2045 = vadd.f32 %v1305, %v1483
      %v2046 = vadd.f32 %v1306, %v1642
      %v2047 = vadd.f32 %v1307, %v1644
      %v2048 = vadd.f32 %v1308, %v1803
      %v2049 = vadd.f32 %v1309, %v1805
      %v2050 = vadd.f32 %v1310, %v1962
      %v2051 = vadd.f32 %v1311, %v1487
      %v2052 = vadd.f32 %v1312, %v1489
      %v2053 = vadd.f32 %v1313, %v1648
      %v2054 = vadd.f32 %v1314, %v1650
      %v2055 = vadd.f32 %v1315, %v1809
      %v2056 = vadd.f32 %v1316, %v1811
      %v2057 = vadd.f32 %v1317, %v1967
      %v2058 = vadd.f32 %v1318, %v1493
      %v2059 = vadd.f32 %v1319, %v1495
      %v2060 = vadd.f32 %v1320, %v1654
      %v2061 = vadd.f32 %v1321, %v1656
      %v2062 = vadd.f32 %v1322, %v1815
      %v2063 = vadd.f32 %v1323, %v1817
      %v2064 = vadd.f32 %v1324, %v1972
      %v2065 = vadd.f32 %v1325, %v1499
      %v2066 = vadd.f32 %v1326, %v1501
      %v2067 = vadd.f32 %v1327, %v1660
      %v2068 = vadd.f32 %v1328, %v1662
      %v2069 = vadd.f32 %v1329, %v1821
      %v2070 = vadd.f32 %v1330, %v1823
      %v2071 = vadd.f32 %v1331, %v1977
      %v2072 = vadd.f32 %v1332, %v1505
      %v2073 = vadd.f32 %v1333, %v1507
      %v2074 = vadd.f32 %v1334, %v1666
      %v2075 = vadd.f32 %v1335, %v1668
      %v2076 = vadd.f32 %v1336, %v1827
      %v2077 = vadd.f32 %v1337, %v1829
      %v2078 = vadd.f32 %v1338, %v1982
      %v2079 = vadd.f32 %v1339, %v1511
      %v2080 = vadd.f32 %v1340, %v1513
      %v2081 = vadd.f32 %v1341, %v1672
      %v2082 = vadd.f32 %v1342, %v1674
      %v2083 = vadd.f32 %v1343, %v1833
      %v2084 = vadd.f32 %v1344, %v1835
      %v2085 = vadd.f32 %v1345, %v1987
      %v2086 = vadd.f32 %v1346, %v1517
      %v2087 = vadd.f32 %v1347, %v1519
      %v2088 = vadd.f32 %v1348, %v1678
      %v2089 = vadd.f32 %v1349, %v1680
      %v2090 = vadd.f32 %v1350, %v1839
      %v2091 = vadd.f32 %v1351, %v1841
      %v2092 = vadd.f32 %v1352, %v1992
      %v2093 = vadd.f32 %v1353, %v1523
      %v2094 = vadd.f32 %v1354, %v1525
      %v2095 = vadd.f32 %v1355, %v1684
      %v2096 = vadd.f32 %v1356, %v1686
      %v2097 = vadd.f32 %v1357, %v1845
      %v2098 = vadd.f32 %v1358, %v1847
      %v2099 = vadd.f32 %v1359, %v1997
      %v2100 = vadd.f32 %v1360, %v1529
      %v2101 = vadd.f32 %v1361, %v1531
      %v2102 = vadd.f32 %v1362, %v1690
      %v2103 = vadd.f32 %v1363, %v1692
      %v2104 = vadd.f32 %v1364, %v1851
      %v2105 = vadd.f32 %v1365, %v1853
      %v2106 = vadd.f32 %v1366, %v2002
      %v2107 = vadd.f32 %v1367, %v1535
      %v2108 = vadd.f32 %v1368, %v1537
      %v2109 = vadd.f32 %v1369, %v1696
      %v2110 = vadd.f32 %v1370, %v1698
      %v2111 = vadd.f32 %v1371, %v1857
      %v2112 = vadd.f32 %v1372, %v1859
      %v2113 = vadd.f32 %v1373, %v2007
      %v2114 = vadd.f32 %v1374, %v1541
      %v2115 = vadd.f32 %v1375, %v1543
      %v2116 = vadd.f32 %v1376, %v1702
      %v2117 = vadd.f32 %v1377, %v1704
      %v2118 = vadd.f32 %v1378, %v1863
      %v2119 = vadd.f32 %v1379, %v1865
      %v2120 = vadd.f32 %v1380, %v2012
      %v2121 = vadd.f32 %v1381, %v1547
      %v2122 = vadd.f32 %v1382, %v1549
      %v2123 = vadd.f32 %v1383, %v1708
      %v2124 = vadd.f32 %v1384, %v1710
      %v2125 = vadd.f32 %v1385, %v1869
      %v2126 = vadd.f32 %v1386, %v1871
      %v2127 = vadd.f32 %v1387, %v2017
      %v2128 = vadd.f32 %v1388, %v1553
      %v2129 = vadd.f32 %v1389, %v1555
      %v2130 = vadd.f32 %v1390, %v1714
      %v2131 = vadd.f32 %v1391, %v1716
      %v2132 = vadd.f32 %v1392, %v1875
      %v2133 = vadd.f32 %v1393, %v1877
      %v2134 = vadd.f32 %v1394, %v2022
      %v2135 = vadd.f32 %v1395, %v1559
      %v2136 = vadd.f32 %v1396, %v1561
      %v2137 = vadd.f32 %v1397, %v1720
      %v2138 = vadd.f32 %v1398, %v1722
      %v2139 = vadd.f32 %v1399, %v1881
      %v2140 = vadd.f32 %v1400, %v1883
      %v2141 = vadd.f32 %v1401, %v2027
      %2142 = vst [vmem:[%s5] sm:$0xff] %v2030
      %2143 = vst [vmem:[%s5 + $0x8] sm:$0xff] %v2031
      %2144 = vst [vmem:[%s5 + $0x10] sm:$0xff] %v2032
      %2145 = vst [vmem:[%s5 + $0x18] sm:$0xff] %v2033
      %2146 = vst [vmem:[%s5 + $0x20] sm:$0xff] %v2034
      %2147 = vst [vmem:[%s5 + $0x28] sm:$0xff] %v2035
      %vm2148 = vcmask 130048
      %2149 = vst.msk [vmem:[%s5 + $0x30] sm:$0xff] %vm2148, %v2036
      %2150 = vst [vmem:[%s5 + $0x38] sm:$0xff] %v2037
      %2151 = vst [vmem:[%s5 + $0x40] sm:$0xff] %v2038
      %2152 = vst [vmem:[%s5 + $0x48] sm:$0xff] %v2039
      %2153 = vst [vmem:[%s5 + $0x50] sm:$0xff] %v2040
      %2154 = vst [vmem:[%s5 + $0x58] sm:$0xff] %v2041
      %2155 = vst [vmem:[%s5 + $0x60] sm:$0xff] %v2042
      %2156 = vst.msk [vmem:[%s5 + $0x68] sm:$0xff] %vm2148, %v2043
      %2157 = vst [vmem:[%s5 + $0x70] sm:$0xff] %v2044
      %2158 = vst [vmem:[%s5 + $0x78] sm:$0xff] %v2045
      %2159 = vst [vmem:[%s5 + $0x80] sm:$0xff] %v2046
      %2160 = vst [vmem:[%s5 + $0x88] sm:$0xff] %v2047
      %2161 = vst [vmem:[%s5 + $0x90] sm:$0xff] %v2048
      %2162 = vst [vmem:[%s5 + $0x98] sm:$0xff] %v2049
      %2163 = vst.msk [vmem:[%s5 + $0xa0] sm:$0xff] %vm2148, %v2050
      %2164 = vst [vmem:[%s5 + $0xa8] sm:$0xff] %v2051
      %2165 = vst [vmem:[%s5 + $0xb0] sm:$0xff] %v2052
      %2166 = vst [vmem:[%s5 + $0xb8] sm:$0xff] %v2053
      %2167 = vst [vmem:[%s5 + $0xc0] sm:$0xff] %v2054
      %2168 = vst [vmem:[%s5 + $0xc8] sm:$0xff] %v2055
      %2169 = vst [vmem:[%s5 + $0xd0] sm:$0xff] %v2056
      %2170 = vst.msk [vmem:[%s5 + $0xd8] sm:$0xff] %vm2148, %v2057
      %2171 = vst [vmem:[%s5 + $0xe0] sm:$0xff] %v2058
      %2172 = vst [vmem:[%s5 + $0xe8] sm:$0xff] %v2059
      %2173 = vst [vmem:[%s5 + $0xf0] sm:$0xff] %v2060
      %2174 = vst [vmem:[%s5 + $0xf8] sm:$0xff] %v2061
      %2175 = vst [vmem:[%s5 + $0x100] sm:$0xff] %v2062
      %2176 = vst [vmem:[%s5 + $0x108] sm:$0xff] %v2063
      %2177 = vst.msk [vmem:[%s5 + $0x110] sm:$0xff] %vm2148, %v2064
      %2178 = vst [vmem:[%s5 + $0x118] sm:$0xff] %v2065
      %2179 = vst [vmem:[%s5 + $0x120] sm:$0xff] %v2066
      %2180 = vst [vmem:[%s5 + $0x128] sm:$0xff] %v2067
      %2181 = vst [vmem:[%s5 + $0x130] sm:$0xff] %v2068
      %2182 = vst [vmem:[%s5 + $0x138] sm:$0xff] %v2069
      %2183 = vst [vmem:[%s5 + $0x140] sm:$0xff] %v2070
      %2184 = vst.msk [vmem:[%s5 + $0x148] sm:$0xff] %vm2148, %v2071
      %2185 = vst [vmem:[%s5 + $0x150] sm:$0xff] %v2072
      %2186 = vst [vmem:[%s5 + $0x158] sm:$0xff] %v2073
      %2187 = vst [vmem:[%s5 + $0x160] sm:$0xff] %v2074
      %2188 = vst [vmem:[%s5 + $0x168] sm:$0xff] %v2075
      %2189 = vst [vmem:[%s5 + $0x170] sm:$0xff] %v2076
      %2190 = vst [vmem:[%s5 + $0x178] sm:$0xff] %v2077
      %2191 = vst.msk [vmem:[%s5 + $0x180] sm:$0xff] %vm2148, %v2078
      %2192 = vst [vmem:[%s5 + $0x188] sm:$0xff] %v2079
      %2193 = vst [vmem:[%s5 + $0x190] sm:$0xff] %v2080
      %2194 = vst [vmem:[%s5 + $0x198] sm:$0xff] %v2081
      %2195 = vst [vmem:[%s5 + $0x1a0] sm:$0xff] %v2082
      %2196 = vst [vmem:[%s5 + $0x1a8] sm:$0xff] %v2083
      %2197 = vst [vmem:[%s5 + $0x1b0] sm:$0xff] %v2084
      %2198 = vst.msk [vmem:[%s5 + $0x1b8] sm:$0xff] %vm2148, %v2085
      %2199 = vst [vmem:[%s5 + $0x1c0] sm:$0xff] %v2086
      %2200 = vst [vmem:[%s5 + $0x1c8] sm:$0xff] %v2087
      %2201 = vst [vmem:[%s5 + $0x1d0] sm:$0xff] %v2088
      %2202 = vst [vmem:[%s5 + $0x1d8] sm:$0xff] %v2089
      %2203 = vst [vmem:[%s5 + $0x1e0] sm:$0xff] %v2090
      %2204 = vst [vmem:[%s5 + $0x1e8] sm:$0xff] %v2091
      %2205 = vst.msk [vmem:[%s5 + $0x1f0] sm:$0xff] %vm2148, %v2092
      %2206 = vst [vmem:[%s5 + $0x1f8] sm:$0xff] %v2093
      %2207 = vst [vmem:[%s5 + $0x200] sm:$0xff] %v2094
      %2208 = vst [vmem:[%s5 + $0x208] sm:$0xff] %v2095
      %2209 = vst [vmem:[%s5 + $0x210] sm:$0xff] %v2096
      %2210 = vst [vmem:[%s5 + $0x218] sm:$0xff] %v2097
      %2211 = vst [vmem:[%s5 + $0x220] sm:$0xff] %v2098
      %2212 = vst.msk [vmem:[%s5 + $0x228] sm:$0xff] %vm2148, %v2099
      %2213 = vst [vmem:[%s5 + $0x230] sm:$0xff] %v2100
      %2214 = vst [vmem:[%s5 + $0x238] sm:$0xff] %v2101
      %2215 = vst [vmem:[%s5 + $0x240] sm:$0xff] %v2102
      %2216 = vst [vmem:[%s5 + $0x248] sm:$0xff] %v2103
      %2217 = vst [vmem:[%s5 + $0x250] sm:$0xff] %v2104
      %2218 = vst [vmem:[%s5 + $0x258] sm:$0xff] %v2105
      %2219 = vst.msk [vmem:[%s5 + $0x260] sm:$0xff] %vm2148, %v2106
      %2220 = vst [vmem:[%s5 + $0x268] sm:$0xff] %v2107
      %2221 = vst [vmem:[%s5 + $0x270] sm:$0xff] %v2108
      %2222 = vst [vmem:[%s5 + $0x278] sm:$0xff] %v2109
      %2223 = vst [vmem:[%s5 + $0x280] sm:$0xff] %v2110
      %2224 = vst [vmem:[%s5 + $0x288] sm:$0xff] %v2111
      %2225 = vst [vmem:[%s5 + $0x290] sm:$0xff] %v2112
      %2226 = vst.msk [vmem:[%s5 + $0x298] sm:$0xff] %vm2148, %v2113
      %2227 = vst [vmem:[%s5 + $0x2a0] sm:$0xff] %v2114
      %2228 = vst [vmem:[%s5 + $0x2a8] sm:$0xff] %v2115
      %2229 = vst [vmem:[%s5 + $0x2b0] sm:$0xff] %v2116
      %2230 = vst [vmem:[%s5 + $0x2b8] sm:$0xff] %v2117
      %2231 = vst [vmem:[%s5 + $0x2c0] sm:$0xff] %v2118
      %2232 = vst [vmem:[%s5 + $0x2c8] sm:$0xff] %v2119
      %2233 = vst.msk [vmem:[%s5 + $0x2d0] sm:$0xff] %vm2148, %v2120
      %2234 = vst [vmem:[%s5 + $0x2d8] sm:$0xff] %v2121
      %2235 = vst [vmem:[%s5 + $0x2e0] sm:$0xff] %v2122
      %2236 = vst [vmem:[%s5 + $0x2e8] sm:$0xff] %v2123
      %2237 = vst [vmem:[%s5 + $0x2f0] sm:$0xff] %v2124
      %2238 = vst [vmem:[%s5 + $0x2f8] sm:$0xff] %v2125
      %2239 = vst [vmem:[%s5 + $0x300] sm:$0xff] %v2126
      %2240 = vst.msk [vmem:[%s5 + $0x308] sm:$0xff] %vm2148, %v2127
      %2241 = vst [vmem:[%s5 + $0x310] sm:$0xff] %v2128
      %2242 = vst [vmem:[%s5 + $0x318] sm:$0xff] %v2129
      %2243 = vst [vmem:[%s5 + $0x320] sm:$0xff] %v2130
      %2244 = vst [vmem:[%s5 + $0x328] sm:$0xff] %v2131
      %2245 = vst [vmem:[%s5 + $0x330] sm:$0xff] %v2132
      %2246 = vst [vmem:[%s5 + $0x338] sm:$0xff] %v2133
      %2247 = vst.msk [vmem:[%s5 + $0x340] sm:$0xff] %vm2148, %v2134
      %2248 = vst [vmem:[%s5 + $0x348] sm:$0xff] %v2135
      %2249 = vst [vmem:[%s5 + $0x350] sm:$0xff] %v2136
      %2250 = vst [vmem:[%s5 + $0x358] sm:$0xff] %v2137
      %2251 = vst [vmem:[%s5 + $0x360] sm:$0xff] %v2138
      %2252 = vst [vmem:[%s5 + $0x368] sm:$0xff] %v2139
      %2253 = vst [vmem:[%s5 + $0x370] sm:$0xff] %v2140
      %2254 = vst.msk [vmem:[%s5 + $0x378] sm:$0xff] %vm2148, %v2141
      %p2255 = scmp.eq.s32.totalorder %s16, 1
      // Predicated region
      $region45: #{tpu_custom_call.1} parent=39 // pred_check
        %p2256 = pneg %p2255
      $region46: #{tpu_custom_call.1} parent=39 // pred_check_branch
        %2258 = sbr.rel (%p2256) target = $region48
      $region47: #{tpu_custom_call.1} parent=39 // pred_region
        %v2259 = vld [vmem:[%s5] sm:$0xff]
        %v2260 = vld [vmem:[%s5 + $0x8] sm:$0xff]
        %v2261 = vld [vmem:[%s5 + $0x10] sm:$0xff]
        %v2262 = vld [vmem:[%s5 + $0x18] sm:$0xff]
        %v2263 = vld [vmem:[%s5 + $0x20] sm:$0xff]
        %v2264 = vld [vmem:[%s5 + $0x28] sm:$0xff]
        %v2265 = vld [vmem:[%s5 + $0x30] sm:$0xff]
        %v2266 = vld [vmem:[%s5 + $0x38] sm:$0xff]
        %v2267 = vld [vmem:[%s5 + $0x40] sm:$0xff]
        %v2268 = vld [vmem:[%s5 + $0x48] sm:$0xff]
        %v2269 = vld [vmem:[%s5 + $0x50] sm:$0xff]
        %v2270 = vld [vmem:[%s5 + $0x58] sm:$0xff]
        %v2271 = vld [vmem:[%s5 + $0x60] sm:$0xff]
        %v2272 = vld [vmem:[%s5 + $0x68] sm:$0xff]
        %v2273 = vld [vmem:[%s5 + $0x70] sm:$0xff]
        %v2274 = vld [vmem:[%s5 + $0x78] sm:$0xff]
        %v2275 = vld [vmem:[%s5 + $0x80] sm:$0xff]
        %v2276 = vld [vmem:[%s5 + $0x88] sm:$0xff]
        %v2277 = vld [vmem:[%s5 + $0x90] sm:$0xff]
        %v2278 = vld [vmem:[%s5 + $0x98] sm:$0xff]
        %v2279 = vld [vmem:[%s5 + $0xa0] sm:$0xff]
        %v2280 = vld [vmem:[%s5 + $0xa8] sm:$0xff]
        %v2281 = vld [vmem:[%s5 + $0xb0] sm:$0xff]
        %v2282 = vld [vmem:[%s5 + $0xb8] sm:$0xff]
        %v2283 = vld [vmem:[%s5 + $0xc0] sm:$0xff]
        %v2284 = vld [vmem:[%s5 + $0xc8] sm:$0xff]
        %v2285 = vld [vmem:[%s5 + $0xd0] sm:$0xff]
        %v2286 = vld [vmem:[%s5 + $0xd8] sm:$0xff]
        %v2287 = vld [vmem:[%s5 + $0xe0] sm:$0xff]
        %v2288 = vld [vmem:[%s5 + $0xe8] sm:$0xff]
        %v2289 = vld [vmem:[%s5 + $0xf0] sm:$0xff]
        %v2290 = vld [vmem:[%s5 + $0xf8] sm:$0xff]
        %v2291 = vld [vmem:[%s5 + $0x100] sm:$0xff]
        %v2292 = vld [vmem:[%s5 + $0x108] sm:$0xff]
        %v2293 = vld [vmem:[%s5 + $0x110] sm:$0xff]
        %v2294 = vld [vmem:[%s5 + $0x118] sm:$0xff]
        %v2295 = vld [vmem:[%s5 + $0x120] sm:$0xff]
        %v2296 = vld [vmem:[%s5 + $0x128] sm:$0xff]
        %v2297 = vld [vmem:[%s5 + $0x130] sm:$0xff]
        %v2298 = vld [vmem:[%s5 + $0x138] sm:$0xff]
        %v2299 = vld [vmem:[%s5 + $0x140] sm:$0xff]
        %v2300 = vld [vmem:[%s5 + $0x148] sm:$0xff]
        %v2301 = vld [vmem:[%s5 + $0x150] sm:$0xff]
        %v2302 = vld [vmem:[%s5 + $0x158] sm:$0xff]
        %v2303 = vld [vmem:[%s5 + $0x160] sm:$0xff]
        %v2304 = vld [vmem:[%s5 + $0x168] sm:$0xff]
        %v2305 = vld [vmem:[%s5 + $0x170] sm:$0xff]
        %v2306 = vld [vmem:[%s5 + $0x178] sm:$0xff]
        %v2307 = vld [vmem:[%s5 + $0x180] sm:$0xff]
        %v2308 = vld [vmem:[%s5 + $0x188] sm:$0xff]
        %v2309 = vld [vmem:[%s5 + $0x190] sm:$0xff]
        %v2310 = vld [vmem:[%s5 + $0x198] sm:$0xff]
        %v2311 = vld [vmem:[%s5 + $0x1a0] sm:$0xff]
        %v2312 = vld [vmem:[%s5 + $0x1a8] sm:$0xff]
        %v2313 = vld [vmem:[%s5 + $0x1b0] sm:$0xff]
        %v2314 = vld [vmem:[%s5 + $0x1b8] sm:$0xff]
        %v2315 = vld [vmem:[%s5 + $0x1c0] sm:$0xff]
        %v2316 = vld [vmem:[%s5 + $0x1c8] sm:$0xff]
        %v2317 = vld [vmem:[%s5 + $0x1d0] sm:$0xff]
        %v2318 = vld [vmem:[%s5 + $0x1d8] sm:$0xff]
        %v2319 = vld [vmem:[%s5 + $0x1e0] sm:$0xff]
        %v2320 = vld [vmem:[%s5 + $0x1e8] sm:$0xff]
        %v2321 = vld [vmem:[%s5 + $0x1f0] sm:$0xff]
        %v2322 = vld [vmem:[%s5 + $0x1f8] sm:$0xff]
        %v2323 = vld [vmem:[%s5 + $0x200] sm:$0xff]
        %v2324 = vld [vmem:[%s5 + $0x208] sm:$0xff]
        %v2325 = vld [vmem:[%s5 + $0x210] sm:$0xff]
        %v2326 = vld [vmem:[%s5 + $0x218] sm:$0xff]
        %v2327 = vld [vmem:[%s5 + $0x220] sm:$0xff]
        %v2328 = vld [vmem:[%s5 + $0x228] sm:$0xff]
        %v2329 = vld [vmem:[%s5 + $0x230] sm:$0xff]
        %v2330 = vld [vmem:[%s5 + $0x238] sm:$0xff]
        %v2331 = vld [vmem:[%s5 + $0x240] sm:$0xff]
        %v2332 = vld [vmem:[%s5 + $0x248] sm:$0xff]
        %v2333 = vld [vmem:[%s5 + $0x250] sm:$0xff]
        %v2334 = vld [vmem:[%s5 + $0x258] sm:$0xff]
        %v2335 = vld [vmem:[%s5 + $0x260] sm:$0xff]
        %v2336 = vld [vmem:[%s5 + $0x268] sm:$0xff]
        %v2337 = vld [vmem:[%s5 + $0x270] sm:$0xff]
        %v2338 = vld [vmem:[%s5 + $0x278] sm:$0xff]
        %v2339 = vld [vmem:[%s5 + $0x280] sm:$0xff]
        %v2340 = vld [vmem:[%s5 + $0x288] sm:$0xff]
        %v2341 = vld [vmem:[%s5 + $0x290] sm:$0xff]
        %v2342 = vld [vmem:[%s5 + $0x298] sm:$0xff]
        %v2343 = vld [vmem:[%s5 + $0x2a0] sm:$0xff]
        %v2344 = vld [vmem:[%s5 + $0x2a8] sm:$0xff]
        %v2345 = vld [vmem:[%s5 + $0x2b0] sm:$0xff]
        %v2346 = vld [vmem:[%s5 + $0x2b8] sm:$0xff]
        %v2347 = vld [vmem:[%s5 + $0x2c0] sm:$0xff]
        %v2348 = vld [vmem:[%s5 + $0x2c8] sm:$0xff]
        %v2349 = vld [vmem:[%s5 + $0x2d0] sm:$0xff]
        %v2350 = vld [vmem:[%s5 + $0x2d8] sm:$0xff]
        %v2351 = vld [vmem:[%s5 + $0x2e0] sm:$0xff]
        %v2352 = vld [vmem:[%s5 + $0x2e8] sm:$0xff]
        %v2353 = vld [vmem:[%s5 + $0x2f0] sm:$0xff]
        %v2354 = vld [vmem:[%s5 + $0x2f8] sm:$0xff]
        %v2355 = vld [vmem:[%s5 + $0x300] sm:$0xff]
        %v2356 = vld [vmem:[%s5 + $0x308] sm:$0xff]
        %v2357 = vld [vmem:[%s5 + $0x310] sm:$0xff]
        %v2358 = vld [vmem:[%s5 + $0x318] sm:$0xff]
        %v2359 = vld [vmem:[%s5 + $0x320] sm:$0xff]
        %v2360 = vld [vmem:[%s5 + $0x328] sm:$0xff]
        %v2361 = vld [vmem:[%s5 + $0x330] sm:$0xff]
        %v2362 = vld [vmem:[%s5 + $0x338] sm:$0xff]
        %v2363 = vld [vmem:[%s5 + $0x340] sm:$0xff]
        %v2364 = vld [vmem:[%s5 + $0x348] sm:$0xff]
        %v2365 = vld [vmem:[%s5 + $0x350] sm:$0xff]
        %v2366 = vld [vmem:[%s5 + $0x358] sm:$0xff]
        %v2367 = vld [vmem:[%s5 + $0x360] sm:$0xff]
        %v2368 = vld [vmem:[%s5 + $0x368] sm:$0xff]
        %v2369 = vld [vmem:[%s5 + $0x370] sm:$0xff]
        %v2370 = vld [vmem:[%s5 + $0x378] sm:$0xff]
        %v2371 = vadd.f32 %v2259, %v2260
        %v2372 = vadd.f32 %v2371, %v2261
        %v2373 = vadd.f32 %v2372, %v2262
        %v2374 = vadd.f32 %v2373, %v2263
        %v2375 = vadd.f32 %v2374, %v2264
        %v2376 = vsel %vm2148, %v2265, 0.0
        %v2377 = vadd.f32 %v2375, %v2376
        %2378 = vadd.xlane.f32.xlu0 %v2377
        %v2379 = vpop.xlane.xlu0 %2378
        %v2380 = vadd.f32 %v2266, %v2267
        %v2381 = vadd.f32 %v2380, %v2268
        %v2382 = vadd.f32 %v2381, %v2269
        %v2383 = vadd.f32 %v2382, %v2270
        %v2384 = vadd.f32 %v2383, %v2271
        %v2385 = vsel %vm2148, %v2272, 0.0
        %v2386 = vadd.f32 %v2384, %v2385
        %2387 = vadd.xlane.f32.xlu0 %v2386
        %v2388 = vpop.xlane.xlu0 %2387
        %v2389 = vadd.f32 %v2273, %v2274
        %v2390 = vadd.f32 %v2389, %v2275
        %v2391 = vadd.f32 %v2390, %v2276
        %v2392 = vadd.f32 %v2391, %v2277
        %v2393 = vadd.f32 %v2392, %v2278
        %v2394 = vsel %vm2148, %v2279, 0.0
        %v2395 = vadd.f32 %v2393, %v2394
        %2396 = vadd.xlane.f32.xlu0 %v2395
        %v2397 = vpop.xlane.xlu0 %2396
        %v2398 = vadd.f32 %v2280, %v2281
        %v2399 = vadd.f32 %v2398, %v2282
        %v2400 = vadd.f32 %v2399, %v2283
        %v2401 = vadd.f32 %v2400, %v2284
        %v2402 = vadd.f32 %v2401, %v2285
        %v2403 = vsel %vm2148, %v2286, 0.0
        %v2404 = vadd.f32 %v2402, %v2403
        %2405 = vadd.xlane.f32.xlu0 %v2404
        %v2406 = vpop.xlane.xlu0 %2405
        %v2407 = vadd.f32 %v2287, %v2288
        %v2408 = vadd.f32 %v2407, %v2289
        %v2409 = vadd.f32 %v2408, %v2290
        %v2410 = vadd.f32 %v2409, %v2291
        %v2411 = vadd.f32 %v2410, %v2292
        %v2412 = vsel %vm2148, %v2293, 0.0
        %v2413 = vadd.f32 %v2411, %v2412
        %2414 = vadd.xlane.f32.xlu0 %v2413
        %v2415 = vpop.xlane.xlu0 %2414
        %v2416 = vadd.f32 %v2294, %v2295
        %v2417 = vadd.f32 %v2416, %v2296
        %v2418 = vadd.f32 %v2417, %v2297
        %v2419 = vadd.f32 %v2418, %v2298
        %v2420 = vadd.f32 %v2419, %v2299
        %v2421 = vsel %vm2148, %v2300, 0.0
        %v2422 = vadd.f32 %v2420, %v2421
        %2423 = vadd.xlane.f32.xlu0 %v2422
        %v2424 = vpop.xlane.xlu0 %2423
        %v2425 = vadd.f32 %v2301, %v2302
        %v2426 = vadd.f32 %v2425, %v2303
        %v2427 = vadd.f32 %v2426, %v2304
        %v2428 = vadd.f32 %v2427, %v2305
        %v2429 = vadd.f32 %v2428, %v2306
        %v2430 = vsel %vm2148, %v2307, 0.0
        %v2431 = vadd.f32 %v2429, %v2430
        %2432 = vadd.xlane.f32.xlu0 %v2431
        %v2433 = vpop.xlane.xlu0 %2432
        %v2434 = vadd.f32 %v2308, %v2309
        %v2435 = vadd.f32 %v2434, %v2310
        %v2436 = vadd.f32 %v2435, %v2311
        %v2437 = vadd.f32 %v2436, %v2312
        %v2438 = vadd.f32 %v2437, %v2313
        %v2439 = vsel %vm2148, %v2314, 0.0
        %v2440 = vadd.f32 %v2438, %v2439
        %2441 = vadd.xlane.f32.xlu0 %v2440
        %v2442 = vpop.xlane.xlu0 %2441
        %v2443 = vadd.f32 %v2315, %v2316
        %v2444 = vadd.f32 %v2443, %v2317
        %v2445 = vadd.f32 %v2444, %v2318
        %v2446 = vadd.f32 %v2445, %v2319
        %v2447 = vadd.f32 %v2446, %v2320
        %v2448 = vsel %vm2148, %v2321, 0.0
        %v2449 = vadd.f32 %v2447, %v2448
        %2450 = vadd.xlane.f32.xlu0 %v2449
        %v2451 = vpop.xlane.xlu0 %2450
        %v2452 = vadd.f32 %v2322, %v2323
        %v2453 = vadd.f32 %v2452, %v2324
        %v2454 = vadd.f32 %v2453, %v2325
        %v2455 = vadd.f32 %v2454, %v2326
        %v2456 = vadd.f32 %v2455, %v2327
        %v2457 = vsel %vm2148, %v2328, 0.0
        %v2458 = vadd.f32 %v2456, %v2457
        %2459 = vadd.xlane.f32.xlu0 %v2458
        %v2460 = vpop.xlane.xlu0 %2459
        %v2461 = vadd.f32 %v2329, %v2330
        %v2462 = vadd.f32 %v2461, %v2331
        %v2463 = vadd.f32 %v2462, %v2332
        %v2464 = vadd.f32 %v2463, %v2333
        %v2465 = vadd.f32 %v2464, %v2334
        %v2466 = vsel %vm2148, %v2335, 0.0
        %v2467 = vadd.f32 %v2465, %v2466
        %2468 = vadd.xlane.f32.xlu0 %v2467
        %v2469 = vpop.xlane.xlu0 %2468
        %v2470 = vadd.f32 %v2336, %v2337
        %v2471 = vadd.f32 %v2470, %v2338
        %v2472 = vadd.f32 %v2471, %v2339
        %v2473 = vadd.f32 %v2472, %v2340
        %v2474 = vadd.f32 %v2473, %v2341
        %v2475 = vsel %vm2148, %v2342, 0.0
        %v2476 = vadd.f32 %v2474, %v2475
        %2477 = vadd.xlane.f32.xlu0 %v2476
        %v2478 = vpop.xlane.xlu0 %2477
        %v2479 = vadd.f32 %v2343, %v2344
        %v2480 = vadd.f32 %v2479, %v2345
        %v2481 = vadd.f32 %v2480, %v2346
        %v2482 = vadd.f32 %v2481, %v2347
        %v2483 = vadd.f32 %v2482, %v2348
        %v2484 = vsel %vm2148, %v2349, 0.0
        %v2485 = vadd.f32 %v2483, %v2484
        %2486 = vadd.xlane.f32.xlu0 %v2485
        %v2487 = vpop.xlane.xlu0 %2486
        %v2488 = vadd.f32 %v2350, %v2351
        %v2489 = vadd.f32 %v2488, %v2352
        %v2490 = vadd.f32 %v2489, %v2353
        %v2491 = vadd.f32 %v2490, %v2354
        %v2492 = vadd.f32 %v2491, %v2355
        %v2493 = vsel %vm2148, %v2356, 0.0
        %v2494 = vadd.f32 %v2492, %v2493
        %2495 = vadd.xlane.f32.xlu0 %v2494
        %v2496 = vpop.xlane.xlu0 %2495
        %v2497 = vadd.f32 %v2357, %v2358
        %v2498 = vadd.f32 %v2497, %v2359
        %v2499 = vadd.f32 %v2498, %v2360
        %v2500 = vadd.f32 %v2499, %v2361
        %v2501 = vadd.f32 %v2500, %v2362
        %v2502 = vsel %vm2148, %v2363, 0.0
        %v2503 = vadd.f32 %v2501, %v2502
        %2504 = vadd.xlane.f32.xlu0 %v2503
        %v2505 = vpop.xlane.xlu0 %2504
        %v2506 = vadd.f32 %v2364, %v2365
        %v2507 = vadd.f32 %v2506, %v2366
        %v2508 = vadd.f32 %v2507, %v2367
        %v2509 = vadd.f32 %v2508, %v2368
        %v2510 = vadd.f32 %v2509, %v2369
        %v2511 = vsel %vm2148, %v2370, 0.0
        %v2512 = vadd.f32 %v2510, %v2511
        %2513 = vadd.xlane.f32.xlu0 %v2512
        %v2514 = vpop.xlane.xlu0 %2513
        %v2515 = vmul.f32 %v2379, 0.0012755102
        %v2516 = vmul.f32 %v2388, 0.0012755102
        %v2517 = vmul.f32 %v2397, 0.0012755102
        %v2518 = vmul.f32 %v2406, 0.0012755102
        %v2519 = vmul.f32 %v2415, 0.0012755102
        %v2520 = vmul.f32 %v2424, 0.0012755102
        %v2521 = vmul.f32 %v2433, 0.0012755102
        %v2522 = vmul.f32 %v2442, 0.0012755102
        %v2523 = vmul.f32 %v2451, 0.0012755102
        %v2524 = vmul.f32 %v2460, 0.0012755102
        %v2525 = vmul.f32 %v2469, 0.0012755102
        %v2526 = vmul.f32 %v2478, 0.0012755102
        %v2527 = vmul.f32 %v2487, 0.0012755102
        %v2528 = vmul.f32 %v2496, 0.0012755102
        %v2529 = vmul.f32 %v2505, 0.0012755102
        %v2530 = vmul.f32 %v2514, 0.0012755102
        %v2531 = vsub.f32 %v2259, %v2515
        %v2532 = vsub.f32 %v2260, %v2515
        %v2533 = vsub.f32 %v2261, %v2515
        %v2534 = vsub.f32 %v2262, %v2515
        %v2535 = vsub.f32 %v2263, %v2515
        %v2536 = vsub.f32 %v2264, %v2515
        %v2537 = vsub.f32 %v2265, %v2515
        %v2538 = vsub.f32 %v2266, %v2516
        %v2539 = vsub.f32 %v2267, %v2516
        %v2540 = vsub.f32 %v2268, %v2516
        %v2541 = vsub.f32 %v2269, %v2516
        %v2542 = vsub.f32 %v2270, %v2516
        %v2543 = vsub.f32 %v2271, %v2516
        %v2544 = vsub.f32 %v2272, %v2516
        %v2545 = vsub.f32 %v2273, %v2517
        %v2546 = vsub.f32 %v2274, %v2517
        %v2547 = vsub.f32 %v2275, %v2517
        %v2548 = vsub.f32 %v2276, %v2517
        %v2549 = vsub.f32 %v2277, %v2517
        %v2550 = vsub.f32 %v2278, %v2517
        %v2551 = vsub.f32 %v2279, %v2517
        %v2552 = vsub.f32 %v2280, %v2518
        %v2553 = vsub.f32 %v2281, %v2518
        %v2554 = vsub.f32 %v2282, %v2518
        %v2555 = vsub.f32 %v2283, %v2518
        %v2556 = vsub.f32 %v2284, %v2518
        %v2557 = vsub.f32 %v2285, %v2518
        %v2558 = vsub.f32 %v2286, %v2518
        %v2559 = vsub.f32 %v2287, %v2519
        %v2560 = vsub.f32 %v2288, %v2519
        %v2561 = vsub.f32 %v2289, %v2519
        %v2562 = vsub.f32 %v2290, %v2519
        %v2563 = vsub.f32 %v2291, %v2519
        %v2564 = vsub.f32 %v2292, %v2519
        %v2565 = vsub.f32 %v2293, %v2519
        %v2566 = vsub.f32 %v2294, %v2520
        %v2567 = vsub.f32 %v2295, %v2520
        %v2568 = vsub.f32 %v2296, %v2520
        %v2569 = vsub.f32 %v2297, %v2520
        %v2570 = vsub.f32 %v2298, %v2520
        %v2571 = vsub.f32 %v2299, %v2520
        %v2572 = vsub.f32 %v2300, %v2520
        %v2573 = vsub.f32 %v2301, %v2521
        %v2574 = vsub.f32 %v2302, %v2521
        %v2575 = vsub.f32 %v2303, %v2521
        %v2576 = vsub.f32 %v2304, %v2521
        %v2577 = vsub.f32 %v2305, %v2521
        %v2578 = vsub.f32 %v2306, %v2521
        %v2579 = vsub.f32 %v2307, %v2521
        %v2580 = vsub.f32 %v2308, %v2522
        %v2581 = vsub.f32 %v2309, %v2522
        %v2582 = vsub.f32 %v2310, %v2522
        %v2583 = vsub.f32 %v2311, %v2522
        %v2584 = vsub.f32 %v2312, %v2522
        %v2585 = vsub.f32 %v2313, %v2522
        %v2586 = vsub.f32 %v2314, %v2522
        %v2587 = vsub.f32 %v2315, %v2523
        %v2588 = vsub.f32 %v2316, %v2523
        %v2589 = vsub.f32 %v2317, %v2523
        %v2590 = vsub.f32 %v2318, %v2523
        %v2591 = vsub.f32 %v2319, %v2523
        %v2592 = vsub.f32 %v2320, %v2523
        %v2593 = vsub.f32 %v2321, %v2523
        %v2594 = vsub.f32 %v2322, %v2524
        %v2595 = vsub.f32 %v2323, %v2524
        %v2596 = vsub.f32 %v2324, %v2524
        %v2597 = vsub.f32 %v2325, %v2524
        %v2598 = vsub.f32 %v2326, %v2524
        %v2599 = vsub.f32 %v2327, %v2524
        %v2600 = vsub.f32 %v2328, %v2524
        %v2601 = vsub.f32 %v2329, %v2525
        %v2602 = vsub.f32 %v2330, %v2525
        %v2603 = vsub.f32 %v2331, %v2525
        %v2604 = vsub.f32 %v2332, %v2525
        %v2605 = vsub.f32 %v2333, %v2525
        %v2606 = vsub.f32 %v2334, %v2525
        %v2607 = vsub.f32 %v2335, %v2525
        %v2608 = vsub.f32 %v2336, %v2526
        %v2609 = vsub.f32 %v2337, %v2526
        %v2610 = vsub.f32 %v2338, %v2526
        %v2611 = vsub.f32 %v2339, %v2526
        %v2612 = vsub.f32 %v2340, %v2526
        %v2613 = vsub.f32 %v2341, %v2526
        %v2614 = vsub.f32 %v2342, %v2526
        %v2615 = vsub.f32 %v2343, %v2527
        %v2616 = vsub.f32 %v2344, %v2527
        %v2617 = vsub.f32 %v2345, %v2527
        %v2618 = vsub.f32 %v2346, %v2527
        %v2619 = vsub.f32 %v2347, %v2527
        %v2620 = vsub.f32 %v2348, %v2527
        %v2621 = vsub.f32 %v2349, %v2527
        %v2622 = vsub.f32 %v2350, %v2528
        %v2623 = vsub.f32 %v2351, %v2528
        %v2624 = vsub.f32 %v2352, %v2528
        %v2625 = vsub.f32 %v2353, %v2528
        %v2626 = vsub.f32 %v2354, %v2528
        %v2627 = vsub.f32 %v2355, %v2528
        %v2628 = vsub.f32 %v2356, %v2528
        %v2629 = vsub.f32 %v2357, %v2529
        %v2630 = vsub.f32 %v2358, %v2529
        %v2631 = vsub.f32 %v2359, %v2529
        %v2632 = vsub.f32 %v2360, %v2529
        %v2633 = vsub.f32 %v2361, %v2529
        %v2634 = vsub.f32 %v2362, %v2529
        %v2635 = vsub.f32 %v2363, %v2529
        %v2636 = vsub.f32 %v2364, %v2530
        %v2637 = vsub.f32 %v2365, %v2530
        %v2638 = vsub.f32 %v2366, %v2530
        %v2639 = vsub.f32 %v2367, %v2530
        %v2640 = vsub.f32 %v2368, %v2530
        %v2641 = vsub.f32 %v2369, %v2530
        %v2642 = vsub.f32 %v2370, %v2530
        %v2643 = vmul.f32 %v2531, %v2531
        %v2644 = vmul.f32 %v2532, %v2532
        %v2645 = vmul.f32 %v2533, %v2533
        %v2646 = vmul.f32 %v2534, %v2534
        %v2647 = vmul.f32 %v2535, %v2535
        %v2648 = vmul.f32 %v2536, %v2536
        %v2649 = vmul.f32 %v2537, %v2537
        %v2650 = vmul.f32 %v2538, %v2538
        %v2651 = vmul.f32 %v2539, %v2539
        %v2652 = vmul.f32 %v2540, %v2540
        %v2653 = vmul.f32 %v2541, %v2541
        %v2654 = vmul.f32 %v2542, %v2542
        %v2655 = vmul.f32 %v2543, %v2543
        %v2656 = vmul.f32 %v2544, %v2544
        %v2657 = vmul.f32 %v2545, %v2545
        %v2658 = vmul.f32 %v2546, %v2546
        %v2659 = vmul.f32 %v2547, %v2547
        %v2660 = vmul.f32 %v2548, %v2548
        %v2661 = vmul.f32 %v2549, %v2549
        %v2662 = vmul.f32 %v2550, %v2550
        %v2663 = vmul.f32 %v2551, %v2551
        %v2664 = vmul.f32 %v2552, %v2552
        %v2665 = vmul.f32 %v2553, %v2553
        %v2666 = vmul.f32 %v2554, %v2554
        %v2667 = vmul.f32 %v2555, %v2555
        %v2668 = vmul.f32 %v2556, %v2556
        %v2669 = vmul.f32 %v2557, %v2557
        %v2670 = vmul.f32 %v2558, %v2558
        %v2671 = vmul.f32 %v2559, %v2559
        %v2672 = vmul.f32 %v2560, %v2560
        %v2673 = vmul.f32 %v2561, %v2561
        %v2674 = vmul.f32 %v2562, %v2562
        %v2675 = vmul.f32 %v2563, %v2563
        %v2676 = vmul.f32 %v2564, %v2564
        %v2677 = vmul.f32 %v2565, %v2565
        %v2678 = vmul.f32 %v2566, %v2566
        %v2679 = vmul.f32 %v2567, %v2567
        %v2680 = vmul.f32 %v2568, %v2568
        %v2681 = vmul.f32 %v2569, %v2569
        %v2682 = vmul.f32 %v2570, %v2570
        %v2683 = vmul.f32 %v2571, %v2571
        %v2684 = vmul.f32 %v2572, %v2572
        %v2685 = vmul.f32 %v2573, %v2573
        %v2686 = vmul.f32 %v2574, %v2574
        %v2687 = vmul.f32 %v2575, %v2575
        %v2688 = vmul.f32 %v2576, %v2576
        %v2689 = vmul.f32 %v2577, %v2577
        %v2690 = vmul.f32 %v2578, %v2578
        %v2691 = vmul.f32 %v2579, %v2579
        %v2692 = vmul.f32 %v2580, %v2580
        %v2693 = vmul.f32 %v2581, %v2581
        %v2694 = vmul.f32 %v2582, %v2582
        %v2695 = vmul.f32 %v2583, %v2583
        %v2696 = vmul.f32 %v2584, %v2584
        %v2697 = vmul.f32 %v2585, %v2585
        %v2698 = vmul.f32 %v2586, %v2586
        %v2699 = vmul.f32 %v2587, %v2587
        %v2700 = vmul.f32 %v2588, %v2588
        %v2701 = vmul.f32 %v2589, %v2589
        %v2702 = vmul.f32 %v2590, %v2590
        %v2703 = vmul.f32 %v2591, %v2591
        %v2704 = vmul.f32 %v2592, %v2592
        %v2705 = vmul.f32 %v2593, %v2593
        %v2706 = vmul.f32 %v2594, %v2594
        %v2707 = vmul.f32 %v2595, %v2595
        %v2708 = vmul.f32 %v2596, %v2596
        %v2709 = vmul.f32 %v2597, %v2597
        %v2710 = vmul.f32 %v2598, %v2598
        %v2711 = vmul.f32 %v2599, %v2599
        %v2712 = vmul.f32 %v2600, %v2600
        %v2713 = vmul.f32 %v2601, %v2601
        %v2714 = vmul.f32 %v2602, %v2602
        %v2715 = vmul.f32 %v2603, %v2603
        %v2716 = vmul.f32 %v2604, %v2604
        %v2717 = vmul.f32 %v2605, %v2605
        %v2718 = vmul.f32 %v2606, %v2606
        %v2719 = vmul.f32 %v2607, %v2607
        %v2720 = vmul.f32 %v2608, %v2608
        %v2721 = vmul.f32 %v2609, %v2609
        %v2722 = vmul.f32 %v2610, %v2610
        %v2723 = vmul.f32 %v2611, %v2611
        %v2724 = vmul.f32 %v2612, %v2612
        %v2725 = vmul.f32 %v2613, %v2613
        %v2726 = vmul.f32 %v2614, %v2614
        %v2727 = vmul.f32 %v2615, %v2615
        %v2728 = vmul.f32 %v2616, %v2616
        %v2729 = vmul.f32 %v2617, %v2617
        %v2730 = vmul.f32 %v2618, %v2618
        %v2731 = vmul.f32 %v2619, %v2619
        %v2732 = vmul.f32 %v2620, %v2620
        %v2733 = vmul.f32 %v2621, %v2621
        %v2734 = vmul.f32 %v2622, %v2622
        %v2735 = vmul.f32 %v2623, %v2623
        %v2736 = vmul.f32 %v2624, %v2624
        %v2737 = vmul.f32 %v2625, %v2625
        %v2738 = vmul.f32 %v2626, %v2626
        %v2739 = vmul.f32 %v2627, %v2627
        %v2740 = vmul.f32 %v2628, %v2628
        %v2741 = vmul.f32 %v2629, %v2629
        %v2742 = vmul.f32 %v2630, %v2630
        %v2743 = vmul.f32 %v2631, %v2631
        %v2744 = vmul.f32 %v2632, %v2632
        %v2745 = vmul.f32 %v2633, %v2633
        %v2746 = vmul.f32 %v2634, %v2634
        %v2747 = vmul.f32 %v2635, %v2635
        %v2748 = vmul.f32 %v2636, %v2636
        %v2749 = vmul.f32 %v2637, %v2637
        %v2750 = vmul.f32 %v2638, %v2638
        %v2751 = vmul.f32 %v2639, %v2639
        %v2752 = vmul.f32 %v2640, %v2640
        %v2753 = vmul.f32 %v2641, %v2641
        %v2754 = vmul.f32 %v2642, %v2642
        %v2755 = vadd.f32 %v2643, %v2644
        %v2756 = vadd.f32 %v2755, %v2645
        %v2757 = vadd.f32 %v2756, %v2646
        %v2758 = vadd.f32 %v2757, %v2647
        %v2759 = vadd.f32 %v2758, %v2648
        %v2760 = vsel %vm2148, %v2649, 0.0
        %v2761 = vadd.f32 %v2759, %v2760
        %2762 = vadd.xlane.f32.xlu0 %v2761
        %v2763 = vpop.xlane.xlu0 %2762
        %v2764 = vadd.f32 %v2650, %v2651
        %v2765 = vadd.f32 %v2764, %v2652
        %v2766 = vadd.f32 %v2765, %v2653
        %v2767 = vadd.f32 %v2766, %v2654
        %v2768 = vadd.f32 %v2767, %v2655
        %v2769 = vsel %vm2148, %v2656, 0.0
        %v2770 = vadd.f32 %v2768, %v2769
        %2771 = vadd.xlane.f32.xlu0 %v2770
        %v2772 = vpop.xlane.xlu0 %2771
        %v2773 = vadd.f32 %v2657, %v2658
        %v2774 = vadd.f32 %v2773, %v2659
        %v2775 = vadd.f32 %v2774, %v2660
        %v2776 = vadd.f32 %v2775, %v2661
        %v2777 = vadd.f32 %v2776, %v2662
        %v2778 = vsel %vm2148, %v2663, 0.0
        %v2779 = vadd.f32 %v2777, %v2778
        %2780 = vadd.xlane.f32.xlu0 %v2779
        %v2781 = vpop.xlane.xlu0 %2780
        %v2782 = vadd.f32 %v2664, %v2665
        %v2783 = vadd.f32 %v2782, %v2666
        %v2784 = vadd.f32 %v2783, %v2667
        %v2785 = vadd.f32 %v2784, %v2668
        %v2786 = vadd.f32 %v2785, %v2669
        %v2787 = vsel %vm2148, %v2670, 0.0
        %v2788 = vadd.f32 %v2786, %v2787
        %2789 = vadd.xlane.f32.xlu0 %v2788
        %v2790 = vpop.xlane.xlu0 %2789
        %v2791 = vadd.f32 %v2671, %v2672
        %v2792 = vadd.f32 %v2791, %v2673
        %v2793 = vadd.f32 %v2792, %v2674
        %v2794 = vadd.f32 %v2793, %v2675
        %v2795 = vadd.f32 %v2794, %v2676
        %v2796 = vsel %vm2148, %v2677, 0.0
        %v2797 = vadd.f32 %v2795, %v2796
        %2798 = vadd.xlane.f32.xlu0 %v2797
        %v2799 = vpop.xlane.xlu0 %2798
        %v2800 = vadd.f32 %v2678, %v2679
        %v2801 = vadd.f32 %v2800, %v2680
        %v2802 = vadd.f32 %v2801, %v2681
        %v2803 = vadd.f32 %v2802, %v2682
        %v2804 = vadd.f32 %v2803, %v2683
        %v2805 = vsel %vm2148, %v2684, 0.0
        %v2806 = vadd.f32 %v2804, %v2805
        %2807 = vadd.xlane.f32.xlu0 %v2806
        %v2808 = vpop.xlane.xlu0 %2807
        %v2809 = vadd.f32 %v2685, %v2686
        %v2810 = vadd.f32 %v2809, %v2687
        %v2811 = vadd.f32 %v2810, %v2688
        %v2812 = vadd.f32 %v2811, %v2689
        %v2813 = vadd.f32 %v2812, %v2690
        %v2814 = vsel %vm2148, %v2691, 0.0
        %v2815 = vadd.f32 %v2813, %v2814
        %2816 = vadd.xlane.f32.xlu0 %v2815
        %v2817 = vpop.xlane.xlu0 %2816
        %v2818 = vadd.f32 %v2692, %v2693
        %v2819 = vadd.f32 %v2818, %v2694
        %v2820 = vadd.f32 %v2819, %v2695
        %v2821 = vadd.f32 %v2820, %v2696
        %v2822 = vadd.f32 %v2821, %v2697
        %v2823 = vsel %vm2148, %v2698, 0.0
        %v2824 = vadd.f32 %v2822, %v2823
        %2825 = vadd.xlane.f32.xlu0 %v2824
        %v2826 = vpop.xlane.xlu0 %2825
        %v2827 = vadd.f32 %v2699, %v2700
        %v2828 = vadd.f32 %v2827, %v2701
        %v2829 = vadd.f32 %v2828, %v2702
        %v2830 = vadd.f32 %v2829, %v2703
        %v2831 = vadd.f32 %v2830, %v2704
        %v2832 = vsel %vm2148, %v2705, 0.0
        %v2833 = vadd.f32 %v2831, %v2832
        %2834 = vadd.xlane.f32.xlu0 %v2833
        %v2835 = vpop.xlane.xlu0 %2834
        %v2836 = vadd.f32 %v2706, %v2707
        %v2837 = vadd.f32 %v2836, %v2708
        %v2838 = vadd.f32 %v2837, %v2709
        %v2839 = vadd.f32 %v2838, %v2710
        %v2840 = vadd.f32 %v2839, %v2711
        %v2841 = vsel %vm2148, %v2712, 0.0
        %v2842 = vadd.f32 %v2840, %v2841
        %2843 = vadd.xlane.f32.xlu0 %v2842
        %v2844 = vpop.xlane.xlu0 %2843
        %v2845 = vadd.f32 %v2713, %v2714
        %v2846 = vadd.f32 %v2845, %v2715
        %v2847 = vadd.f32 %v2846, %v2716
        %v2848 = vadd.f32 %v2847, %v2717
        %v2849 = vadd.f32 %v2848, %v2718
        %v2850 = vsel %vm2148, %v2719, 0.0
        %v2851 = vadd.f32 %v2849, %v2850
        %2852 = vadd.xlane.f32.xlu0 %v2851
        %v2853 = vpop.xlane.xlu0 %2852
        %v2854 = vadd.f32 %v2720, %v2721
        %v2855 = vadd.f32 %v2854, %v2722
        %v2856 = vadd.f32 %v2855, %v2723
        %v2857 = vadd.f32 %v2856, %v2724
        %v2858 = vadd.f32 %v2857, %v2725
        %v2859 = vsel %vm2148, %v2726, 0.0
        %v2860 = vadd.f32 %v2858, %v2859
        %2861 = vadd.xlane.f32.xlu0 %v2860
        %v2862 = vpop.xlane.xlu0 %2861
        %v2863 = vadd.f32 %v2727, %v2728
        %v2864 = vadd.f32 %v2863, %v2729
        %v2865 = vadd.f32 %v2864, %v2730
        %v2866 = vadd.f32 %v2865, %v2731
        %v2867 = vadd.f32 %v2866, %v2732
        %v2868 = vsel %vm2148, %v2733, 0.0
        %v2869 = vadd.f32 %v2867, %v2868
        %2870 = vadd.xlane.f32.xlu0 %v2869
        %v2871 = vpop.xlane.xlu0 %2870
        %v2872 = vadd.f32 %v2734, %v2735
        %v2873 = vadd.f32 %v2872, %v2736
        %v2874 = vadd.f32 %v2873, %v2737
        %v2875 = vadd.f32 %v2874, %v2738
        %v2876 = vadd.f32 %v2875, %v2739
        %v2877 = vsel %vm2148, %v2740, 0.0
        %v2878 = vadd.f32 %v2876, %v2877
        %2879 = vadd.xlane.f32.xlu0 %v2878
        %v2880 = vpop.xlane.xlu0 %2879
        %v2881 = vadd.f32 %v2741, %v2742
        %v2882 = vadd.f32 %v2881, %v2743
        %v2883 = vadd.f32 %v2882, %v2744
        %v2884 = vadd.f32 %v2883, %v2745
        %v2885 = vadd.f32 %v2884, %v2746
        %v2886 = vsel %vm2148, %v2747, 0.0
        %v2887 = vadd.f32 %v2885, %v2886
        %2888 = vadd.xlane.f32.xlu0 %v2887
        %v2889 = vpop.xlane.xlu0 %2888
        %v2890 = vadd.f32 %v2748, %v2749
        %v2891 = vadd.f32 %v2890, %v2750
        %v2892 = vadd.f32 %v2891, %v2751
        %v2893 = vadd.f32 %v2892, %v2752
        %v2894 = vadd.f32 %v2893, %v2753
        %v2895 = vsel %vm2148, %v2754, 0.0
        %v2896 = vadd.f32 %v2894, %v2895
        %2897 = vadd.xlane.f32.xlu0 %v2896
        %v2898 = vpop.xlane.xlu0 %2897
        %v2899 = vmul.f32 %v2763, 0.0012755102
        %v2900 = vmul.f32 %v2772, 0.0012755102
        %v2901 = vmul.f32 %v2781, 0.0012755102
        %v2902 = vmul.f32 %v2790, 0.0012755102
        %v2903 = vmul.f32 %v2799, 0.0012755102
        %v2904 = vmul.f32 %v2808, 0.0012755102
        %v2905 = vmul.f32 %v2817, 0.0012755102
        %v2906 = vmul.f32 %v2826, 0.0012755102
        %v2907 = vmul.f32 %v2835, 0.0012755102
        %v2908 = vmul.f32 %v2844, 0.0012755102
        %v2909 = vmul.f32 %v2853, 0.0012755102
        %v2910 = vmul.f32 %v2862, 0.0012755102
        %v2911 = vmul.f32 %v2871, 0.0012755102
        %v2912 = vmul.f32 %v2880, 0.0012755102
        %v2913 = vmul.f32 %v2889, 0.0012755102
        %v2914 = vmul.f32 %v2898, 0.0012755102
        %v2915 = vadd.f32 %v2899, 1e-05
        %v2916 = vadd.f32 %v2900, 1e-05
        %v2917 = vadd.f32 %v2901, 1e-05
        %v2918 = vadd.f32 %v2902, 1e-05
        %v2919 = vadd.f32 %v2903, 1e-05
        %v2920 = vadd.f32 %v2904, 1e-05
        %v2921 = vadd.f32 %v2905, 1e-05
        %v2922 = vadd.f32 %v2906, 1e-05
        %v2923 = vadd.f32 %v2907, 1e-05
        %v2924 = vadd.f32 %v2908, 1e-05
        %v2925 = vadd.f32 %v2909, 1e-05
        %v2926 = vadd.f32 %v2910, 1e-05
        %v2927 = vadd.f32 %v2911, 1e-05
        %v2928 = vadd.f32 %v2912, 1e-05
        %v2929 = vadd.f32 %v2913, 1e-05
        %v2930 = vadd.f32 %v2914, 1e-05
        %v2931 = vrsqrt.pop %v2915
        %v2932 = vrsqrt.pop %v2916
        %v2933 = vrsqrt.pop %v2917
        %v2934 = vrsqrt.pop %v2918
        %v2935 = vrsqrt.pop %v2919
        %v2936 = vrsqrt.pop %v2920
        %v2937 = vrsqrt.pop %v2921
        %v2938 = vrsqrt.pop %v2922
        %v2939 = vrsqrt.pop %v2923
        %v2940 = vrsqrt.pop %v2924
        %v2941 = vrsqrt.pop %v2925
        %v2942 = vrsqrt.pop %v2926
        %v2943 = vrsqrt.pop %v2927
        %v2944 = vrsqrt.pop %v2928
        %v2945 = vrsqrt.pop %v2929
        %v2946 = vrsqrt.pop %v2930
        %v2947 = vld [vmem:[%s3] sm:$0xff]
        %v2948 = vld [vmem:[%s3 + $0x8] sm:$0xff]
        %v2949 = vld [vmem:[%s3 + $0x10] sm:$0xff]
        %v2950 = vld [vmem:[%s3 + $0x18] sm:$0xff]
        %v2951 = vld [vmem:[%s3 + $0x20] sm:$0xff]
        %v2952 = vld [vmem:[%s3 + $0x28] sm:$0xff]
        %v2953 = vld [vmem:[%s3 + $0x30] sm:$0xff]
        %v2954 = vld [vmem:[%s3 + $0x38] sm:$0xff]
        %v2955 = vld [vmem:[%s3 + $0x40] sm:$0xff]
        %v2956 = vld [vmem:[%s3 + $0x48] sm:$0xff]
        %v2957 = vld [vmem:[%s3 + $0x50] sm:$0xff]
        %v2958 = vld [vmem:[%s3 + $0x58] sm:$0xff]
        %v2959 = vld [vmem:[%s3 + $0x60] sm:$0xff]
        %v2960 = vld [vmem:[%s3 + $0x68] sm:$0xff]
        %v2961 = vld [vmem:[%s3 + $0x70] sm:$0xff]
        %v2962 = vld [vmem:[%s3 + $0x78] sm:$0xff]
        %v2963 = vmul.f32 %v2947, %v2931
        %v2964 = vmul.f32 %v2948, %v2932
        %v2965 = vmul.f32 %v2949, %v2933
        %v2966 = vmul.f32 %v2950, %v2934
        %v2967 = vmul.f32 %v2951, %v2935
        %v2968 = vmul.f32 %v2952, %v2936
        %v2969 = vmul.f32 %v2953, %v2937
        %v2970 = vmul.f32 %v2954, %v2938
        %v2971 = vmul.f32 %v2955, %v2939
        %v2972 = vmul.f32 %v2956, %v2940
        %v2973 = vmul.f32 %v2957, %v2941
        %v2974 = vmul.f32 %v2958, %v2942
        %v2975 = vmul.f32 %v2959, %v2943
        %v2976 = vmul.f32 %v2960, %v2944
        %v2977 = vmul.f32 %v2961, %v2945
        %v2978 = vmul.f32 %v2962, %v2946
        %2980 = vset.pattern.permute.xlu0 0
        %2981 = vperm.xlu0 %2980, %v2963
        %v2982 = vpop.permute.xlu0 %2981
        %2985 = vset.pattern.permute.xlu0 0
        %2986 = vperm.xlu0 %2985, %v2964
        %v2987 = vpop.permute.xlu0 %2986
        %2990 = vset.pattern.permute.xlu0 0
        %2991 = vperm.xlu0 %2990, %v2965
        %v2992 = vpop.permute.xlu0 %2991
        %2995 = vset.pattern.permute.xlu0 0
        %2996 = vperm.xlu0 %2995, %v2966
        %v2997 = vpop.permute.xlu0 %2996
        %3000 = vset.pattern.permute.xlu0 0
        %3001 = vperm.xlu0 %3000, %v2967
        %v3002 = vpop.permute.xlu0 %3001
        %3005 = vset.pattern.permute.xlu0 0
        %3006 = vperm.xlu0 %3005, %v2968
        %v3007 = vpop.permute.xlu0 %3006
        %3010 = vset.pattern.permute.xlu0 0
        %3011 = vperm.xlu0 %3010, %v2969
        %v3012 = vpop.permute.xlu0 %3011
        %3015 = vset.pattern.permute.xlu0 0
        %3016 = vperm.xlu0 %3015, %v2970
        %v3017 = vpop.permute.xlu0 %3016
        %3020 = vset.pattern.permute.xlu0 0
        %3021 = vperm.xlu0 %3020, %v2971
        %v3022 = vpop.permute.xlu0 %3021
        %3025 = vset.pattern.permute.xlu0 0
        %3026 = vperm.xlu0 %3025, %v2972
        %v3027 = vpop.permute.xlu0 %3026
        %3030 = vset.pattern.permute.xlu0 0
        %3031 = vperm.xlu0 %3030, %v2973
        %v3032 = vpop.permute.xlu0 %3031
        %3035 = vset.pattern.permute.xlu0 0
        %3036 = vperm.xlu0 %3035, %v2974
        %v3037 = vpop.permute.xlu0 %3036
        %3040 = vset.pattern.permute.xlu0 0
        %3041 = vperm.xlu0 %3040, %v2975
        %v3042 = vpop.permute.xlu0 %3041
        %3045 = vset.pattern.permute.xlu0 0
        %3046 = vperm.xlu0 %3045, %v2976
        %v3047 = vpop.permute.xlu0 %3046
        %3050 = vset.pattern.permute.xlu0 0
        %3051 = vperm.xlu0 %3050, %v2977
        %v3052 = vpop.permute.xlu0 %3051
        %3055 = vset.pattern.permute.xlu0 0
        %3056 = vperm.xlu0 %3055, %v2978
        %v3057 = vpop.permute.xlu0 %3056
        %v3059 = vmul.f32 %v2531, %v2982
        %v3060 = vmul.f32 %v2532, %v2982
        %v3061 = vmul.f32 %v2533, %v2982
        %v3062 = vmul.f32 %v2534, %v2982
        %v3063 = vmul.f32 %v2535, %v2982
        %v3064 = vmul.f32 %v2536, %v2982
        %v3065 = vmul.f32 %v2537, %v2982
        %v3066 = vmul.f32 %v2538, %v2987
        %v3067 = vmul.f32 %v2539, %v2987
        %v3068 = vmul.f32 %v2540, %v2987
        %v3069 = vmul.f32 %v2541, %v2987
        %v3070 = vmul.f32 %v2542, %v2987
        %v3071 = vmul.f32 %v2543, %v2987
        %v3072 = vmul.f32 %v2544, %v2987
        %v3073 = vmul.f32 %v2545, %v2992
        %v3074 = vmul.f32 %v2546, %v2992
        %v3075 = vmul.f32 %v2547, %v2992
        %v3076 = vmul.f32 %v2548, %v2992
        %v3077 = vmul.f32 %v2549, %v2992
        %v3078 = vmul.f32 %v2550, %v2992
        %v3079 = vmul.f32 %v2551, %v2992
        %v3080 = vmul.f32 %v2552, %v2997
        %v3081 = vmul.f32 %v2553, %v2997
        %v3082 = vmul.f32 %v2554, %v2997
        %v3083 = vmul.f32 %v2555, %v2997
        %v3084 = vmul.f32 %v2556, %v2997
        %v3085 = vmul.f32 %v2557, %v2997
        %v3086 = vmul.f32 %v2558, %v2997
        %v3087 = vmul.f32 %v2559, %v3002
        %v3088 = vmul.f32 %v2560, %v3002
        %v3089 = vmul.f32 %v2561, %v3002
        %v3090 = vmul.f32 %v2562, %v3002
        %v3091 = vmul.f32 %v2563, %v3002
        %v3092 = vmul.f32 %v2564, %v3002
        %v3093 = vmul.f32 %v2565, %v3002
        %v3094 = vmul.f32 %v2566, %v3007
        %v3095 = vmul.f32 %v2567, %v3007
        %v3096 = vmul.f32 %v2568, %v3007
        %v3097 = vmul.f32 %v2569, %v3007
        %v3098 = vmul.f32 %v2570, %v3007
        %v3099 = vmul.f32 %v2571, %v3007
        %v3100 = vmul.f32 %v2572, %v3007
        %v3101 = vmul.f32 %v2573, %v3012
        %v3102 = vmul.f32 %v2574, %v3012
        %v3103 = vmul.f32 %v2575, %v3012
        %v3104 = vmul.f32 %v2576, %v3012
        %v3105 = vmul.f32 %v2577, %v3012
        %v3106 = vmul.f32 %v2578, %v3012
        %v3107 = vmul.f32 %v2579, %v3012
        %v3108 = vmul.f32 %v2580, %v3017
        %v3109 = vmul.f32 %v2581, %v3017
        %v3110 = vmul.f32 %v2582, %v3017
        %v3111 = vmul.f32 %v2583, %v3017
        %v3112 = vmul.f32 %v2584, %v3017
        %v3113 = vmul.f32 %v2585, %v3017
        %v3114 = vmul.f32 %v2586, %v3017
        %v3115 = vmul.f32 %v2587, %v3022
        %v3116 = vmul.f32 %v2588, %v3022
        %v3117 = vmul.f32 %v2589, %v3022
        %v3118 = vmul.f32 %v2590, %v3022
        %v3119 = vmul.f32 %v2591, %v3022
        %v3120 = vmul.f32 %v2592, %v3022
        %v3121 = vmul.f32 %v2593, %v3022
        %v3122 = vmul.f32 %v2594, %v3027
        %v3123 = vmul.f32 %v2595, %v3027
        %v3124 = vmul.f32 %v2596, %v3027
        %v3125 = vmul.f32 %v2597, %v3027
        %v3126 = vmul.f32 %v2598, %v3027
        %v3127 = vmul.f32 %v2599, %v3027
        %v3128 = vmul.f32 %v2600, %v3027
        %v3129 = vmul.f32 %v2601, %v3032
        %v3130 = vmul.f32 %v2602, %v3032
        %v3131 = vmul.f32 %v2603, %v3032
        %v3132 = vmul.f32 %v2604, %v3032
        %v3133 = vmul.f32 %v2605, %v3032
        %v3134 = vmul.f32 %v2606, %v3032
        %v3135 = vmul.f32 %v2607, %v3032
        %v3136 = vmul.f32 %v2608, %v3037
        %v3137 = vmul.f32 %v2609, %v3037
        %v3138 = vmul.f32 %v2610, %v3037
        %v3139 = vmul.f32 %v2611, %v3037
        %v3140 = vmul.f32 %v2612, %v3037
        %v3141 = vmul.f32 %v2613, %v3037
        %v3142 = vmul.f32 %v2614, %v3037
        %v3143 = vmul.f32 %v2615, %v3042
        %v3144 = vmul.f32 %v2616, %v3042
        %v3145 = vmul.f32 %v2617, %v3042
        %v3146 = vmul.f32 %v2618, %v3042
        %v3147 = vmul.f32 %v2619, %v3042
        %v3148 = vmul.f32 %v2620, %v3042
        %v3149 = vmul.f32 %v2621, %v3042
        %v3150 = vmul.f32 %v2622, %v3047
        %v3151 = vmul.f32 %v2623, %v3047
        %v3152 = vmul.f32 %v2624, %v3047
        %v3153 = vmul.f32 %v2625, %v3047
        %v3154 = vmul.f32 %v2626, %v3047
        %v3155 = vmul.f32 %v2627, %v3047
        %v3156 = vmul.f32 %v2628, %v3047
        %v3157 = vmul.f32 %v2629, %v3052
        %v3158 = vmul.f32 %v2630, %v3052
        %v3159 = vmul.f32 %v2631, %v3052
        %v3160 = vmul.f32 %v2632, %v3052
        %v3161 = vmul.f32 %v2633, %v3052
        %v3162 = vmul.f32 %v2634, %v3052
        %v3163 = vmul.f32 %v2635, %v3052
        %v3164 = vmul.f32 %v2636, %v3057
        %v3165 = vmul.f32 %v2637, %v3057
        %v3166 = vmul.f32 %v2638, %v3057
        %v3167 = vmul.f32 %v2639, %v3057
        %v3168 = vmul.f32 %v2640, %v3057
        %v3169 = vmul.f32 %v2641, %v3057
        %v3170 = vmul.f32 %v2642, %v3057
        %v3171 = vld [vmem:[%s4] sm:$0xff]
        %v3172 = vld [vmem:[%s4 + $0x8] sm:$0xff]
        %v3173 = vld [vmem:[%s4 + $0x10] sm:$0xff]
        %v3174 = vld [vmem:[%s4 + $0x18] sm:$0xff]
        %v3175 = vld [vmem:[%s4 + $0x20] sm:$0xff]
        %v3176 = vld [vmem:[%s4 + $0x28] sm:$0xff]
        %v3177 = vld [vmem:[%s4 + $0x30] sm:$0xff]
        %v3178 = vld [vmem:[%s4 + $0x38] sm:$0xff]
        %v3179 = vld [vmem:[%s4 + $0x40] sm:$0xff]
        %v3180 = vld [vmem:[%s4 + $0x48] sm:$0xff]
        %v3181 = vld [vmem:[%s4 + $0x50] sm:$0xff]
        %v3182 = vld [vmem:[%s4 + $0x58] sm:$0xff]
        %v3183 = vld [vmem:[%s4 + $0x60] sm:$0xff]
        %v3184 = vld [vmem:[%s4 + $0x68] sm:$0xff]
        %v3185 = vld [vmem:[%s4 + $0x70] sm:$0xff]
        %v3186 = vld [vmem:[%s4 + $0x78] sm:$0xff]
        %3188 = vset.pattern.permute.xlu0 0
        %3189 = vperm.xlu0 %3188, %v3171
        %v3190 = vpop.permute.xlu0 %3189
        %3193 = vset.pattern.permute.xlu0 0
        %3194 = vperm.xlu0 %3193, %v3172
        %v3195 = vpop.permute.xlu0 %3194
        %3198 = vset.pattern.permute.xlu0 0
        %3199 = vperm.xlu0 %3198, %v3173
        %v3200 = vpop.permute.xlu0 %3199
        %3203 = vset.pattern.permute.xlu0 0
        %3204 = vperm.xlu0 %3203, %v3174
        %v3205 = vpop.permute.xlu0 %3204
        %3208 = vset.pattern.permute.xlu0 0
        %3209 = vperm.xlu0 %3208, %v3175
        %v3210 = vpop.permute.xlu0 %3209
        %3213 = vset.pattern.permute.xlu0 0
        %3214 = vperm.xlu0 %3213, %v3176
        %v3215 = vpop.permute.xlu0 %3214
        %3218 = vset.pattern.permute.xlu0 0
        %3219 = vperm.xlu0 %3218, %v3177
        %v3220 = vpop.permute.xlu0 %3219
        %3223 = vset.pattern.permute.xlu0 0
        %3224 = vperm.xlu0 %3223, %v3178
        %v3225 = vpop.permute.xlu0 %3224
        %3228 = vset.pattern.permute.xlu0 0
        %3229 = vperm.xlu0 %3228, %v3179
        %v3230 = vpop.permute.xlu0 %3229
        %3233 = vset.pattern.permute.xlu0 0
        %3234 = vperm.xlu0 %3233, %v3180
        %v3235 = vpop.permute.xlu0 %3234
        %3238 = vset.pattern.permute.xlu0 0
        %3239 = vperm.xlu0 %3238, %v3181
        %v3240 = vpop.permute.xlu0 %3239
        %3243 = vset.pattern.permute.xlu0 0
        %3244 = vperm.xlu0 %3243, %v3182
        %v3245 = vpop.permute.xlu0 %3244
        %3248 = vset.pattern.permute.xlu0 0
        %3249 = vperm.xlu0 %3248, %v3183
        %v3250 = vpop.permute.xlu0 %3249
        %3253 = vset.pattern.permute.xlu0 0
        %3254 = vperm.xlu0 %3253, %v3184
        %v3255 = vpop.permute.xlu0 %3254
        %3258 = vset.pattern.permute.xlu0 0
        %3259 = vperm.xlu0 %3258, %v3185
        %v3260 = vpop.permute.xlu0 %3259
        %3263 = vset.pattern.permute.xlu0 0
        %3264 = vperm.xlu0 %3263, %v3186
        %v3265 = vpop.permute.xlu0 %3264
        %v3267 = vadd.f32 %v3059, %v3190
        %v3268 = vadd.f32 %v3060, %v3190
        %v3269 = vadd.f32 %v3061, %v3190
        %v3270 = vadd.f32 %v3062, %v3190
        %v3271 = vadd.f32 %v3063, %v3190
        %v3272 = vadd.f32 %v3064, %v3190
        %v3273 = vadd.f32 %v3065, %v3190
        %v3274 = vadd.f32 %v3066, %v3195
        %v3275 = vadd.f32 %v3067, %v3195
        %v3276 = vadd.f32 %v3068, %v3195
        %v3277 = vadd.f32 %v3069, %v3195
        %v3278 = vadd.f32 %v3070, %v3195
        %v3279 = vadd.f32 %v3071, %v3195
        %v3280 = vadd.f32 %v3072, %v3195
        %v3281 = vadd.f32 %v3073, %v3200
        %v3282 = vadd.f32 %v3074, %v3200
        %v3283 = vadd.f32 %v3075, %v3200
        %v3284 = vadd.f32 %v3076, %v3200
        %v3285 = vadd.f32 %v3077, %v3200
        %v3286 = vadd.f32 %v3078, %v3200
        %v3287 = vadd.f32 %v3079, %v3200
        %v3288 = vadd.f32 %v3080, %v3205
        %v3289 = vadd.f32 %v3081, %v3205
        %v3290 = vadd.f32 %v3082, %v3205
        %v3291 = vadd.f32 %v3083, %v3205
        %v3292 = vadd.f32 %v3084, %v3205
        %v3293 = vadd.f32 %v3085, %v3205
        %v3294 = vadd.f32 %v3086, %v3205
        %v3295 = vadd.f32 %v3087, %v3210
        %v3296 = vadd.f32 %v3088, %v3210
        %v3297 = vadd.f32 %v3089, %v3210
        %v3298 = vadd.f32 %v3090, %v3210
        %v3299 = vadd.f32 %v3091, %v3210
        %v3300 = vadd.f32 %v3092, %v3210
        %v3301 = vadd.f32 %v3093, %v3210
        %v3302 = vadd.f32 %v3094, %v3215
        %v3303 = vadd.f32 %v3095, %v3215
        %v3304 = vadd.f32 %v3096, %v3215
        %v3305 = vadd.f32 %v3097, %v3215
        %v3306 = vadd.f32 %v3098, %v3215
        %v3307 = vadd.f32 %v3099, %v3215
        %v3308 = vadd.f32 %v3100, %v3215
        %v3309 = vadd.f32 %v3101, %v3220
        %v3310 = vadd.f32 %v3102, %v3220
        %v3311 = vadd.f32 %v3103, %v3220
        %v3312 = vadd.f32 %v3104, %v3220
        %v3313 = vadd.f32 %v3105, %v3220
        %v3314 = vadd.f32 %v3106, %v3220
        %v3315 = vadd.f32 %v3107, %v3220
        %v3316 = vadd.f32 %v3108, %v3225
        %v3317 = vadd.f32 %v3109, %v3225
        %v3318 = vadd.f32 %v3110, %v3225
        %v3319 = vadd.f32 %v3111, %v3225
        %v3320 = vadd.f32 %v3112, %v3225
        %v3321 = vadd.f32 %v3113, %v3225
        %v3322 = vadd.f32 %v3114, %v3225
        %v3323 = vadd.f32 %v3115, %v3230
        %v3324 = vadd.f32 %v3116, %v3230
        %v3325 = vadd.f32 %v3117, %v3230
        %v3326 = vadd.f32 %v3118, %v3230
        %v3327 = vadd.f32 %v3119, %v3230
        %v3328 = vadd.f32 %v3120, %v3230
        %v3329 = vadd.f32 %v3121, %v3230
        %v3330 = vadd.f32 %v3122, %v3235
        %v3331 = vadd.f32 %v3123, %v3235
        %v3332 = vadd.f32 %v3124, %v3235
        %v3333 = vadd.f32 %v3125, %v3235
        %v3334 = vadd.f32 %v3126, %v3235
        %v3335 = vadd.f32 %v3127, %v3235
        %v3336 = vadd.f32 %v3128, %v3235
        %v3337 = vadd.f32 %v3129, %v3240
        %v3338 = vadd.f32 %v3130, %v3240
        %v3339 = vadd.f32 %v3131, %v3240
        %v3340 = vadd.f32 %v3132, %v3240
        %v3341 = vadd.f32 %v3133, %v3240
        %v3342 = vadd.f32 %v3134, %v3240
        %v3343 = vadd.f32 %v3135, %v3240
        %v3344 = vadd.f32 %v3136, %v3245
        %v3345 = vadd.f32 %v3137, %v3245
        %v3346 = vadd.f32 %v3138, %v3245
        %v3347 = vadd.f32 %v3139, %v3245
        %v3348 = vadd.f32 %v3140, %v3245
        %v3349 = vadd.f32 %v3141, %v3245
        %v3350 = vadd.f32 %v3142, %v3245
        %v3351 = vadd.f32 %v3143, %v3250
        %v3352 = vadd.f32 %v3144, %v3250
        %v3353 = vadd.f32 %v3145, %v3250
        %v3354 = vadd.f32 %v3146, %v3250
        %v3355 = vadd.f32 %v3147, %v3250
        %v3356 = vadd.f32 %v3148, %v3250
        %v3357 = vadd.f32 %v3149, %v3250
        %v3358 = vadd.f32 %v3150, %v3255
        %v3359 = vadd.f32 %v3151, %v3255
        %v3360 = vadd.f32 %v3152, %v3255
        %v3361 = vadd.f32 %v3153, %v3255
        %v3362 = vadd.f32 %v3154, %v3255
        %v3363 = vadd.f32 %v3155, %v3255
        %v3364 = vadd.f32 %v3156, %v3255
        %v3365 = vadd.f32 %v3157, %v3260
        %v3366 = vadd.f32 %v3158, %v3260
        %v3367 = vadd.f32 %v3159, %v3260
        %v3368 = vadd.f32 %v3160, %v3260
        %v3369 = vadd.f32 %v3161, %v3260
        %v3370 = vadd.f32 %v3162, %v3260
        %v3371 = vadd.f32 %v3163, %v3260
        %v3372 = vadd.f32 %v3164, %v3265
        %v3373 = vadd.f32 %v3165, %v3265
        %v3374 = vadd.f32 %v3166, %v3265
        %v3375 = vadd.f32 %v3167, %v3265
        %v3376 = vadd.f32 %v3168, %v3265
        %v3377 = vadd.f32 %v3169, %v3265
        %v3378 = vadd.f32 %v3170, %v3265
        %3379 = vst [vmem:[%s5] sm:$0xff] %v3267
        %3380 = vst [vmem:[%s5 + $0x8] sm:$0xff] %v3268
        %3381 = vst [vmem:[%s5 + $0x10] sm:$0xff] %v3269
        %3382 = vst [vmem:[%s5 + $0x18] sm:$0xff] %v3270
        %3383 = vst [vmem:[%s5 + $0x20] sm:$0xff] %v3271
        %3384 = vst [vmem:[%s5 + $0x28] sm:$0xff] %v3272
        %3385 = vst.msk [vmem:[%s5 + $0x30] sm:$0xff] %vm2148, %v3273
        %3386 = vst [vmem:[%s5 + $0x38] sm:$0xff] %v3274
        %3387 = vst [vmem:[%s5 + $0x40] sm:$0xff] %v3275
        %3388 = vst [vmem:[%s5 + $0x48] sm:$0xff] %v3276
        %3389 = vst [vmem:[%s5 + $0x50] sm:$0xff] %v3277
        %3390 = vst [vmem:[%s5 + $0x58] sm:$0xff] %v3278
        %3391 = vst [vmem:[%s5 + $0x60] sm:$0xff] %v3279
        %3392 = vst.msk [vmem:[%s5 + $0x68] sm:$0xff] %vm2148, %v3280
        %3393 = vst [vmem:[%s5 + $0x70] sm:$0xff] %v3281
        %3394 = vst [vmem:[%s5 + $0x78] sm:$0xff] %v3282
        %3395 = vst [vmem:[%s5 + $0x80] sm:$0xff] %v3283
        %3396 = vst [vmem:[%s5 + $0x88] sm:$0xff] %v3284
        %3397 = vst [vmem:[%s5 + $0x90] sm:$0xff] %v3285
        %3398 = vst [vmem:[%s5 + $0x98] sm:$0xff] %v3286
        %3399 = vst.msk [vmem:[%s5 + $0xa0] sm:$0xff] %vm2148, %v3287
        %3400 = vst [vmem:[%s5 + $0xa8] sm:$0xff] %v3288
        %3401 = vst [vmem:[%s5 + $0xb0] sm:$0xff] %v3289
        %3402 = vst [vmem:[%s5 + $0xb8] sm:$0xff] %v3290
        %3403 = vst [vmem:[%s5 + $0xc0] sm:$0xff] %v3291
        %3404 = vst [vmem:[%s5 + $0xc8] sm:$0xff] %v3292
        %3405 = vst [vmem:[%s5 + $0xd0] sm:$0xff] %v3293
        %3406 = vst.msk [vmem:[%s5 + $0xd8] sm:$0xff] %vm2148, %v3294
        %3407 = vst [vmem:[%s5 + $0xe0] sm:$0xff] %v3295
        %3408 = vst [vmem:[%s5 + $0xe8] sm:$0xff] %v3296
        %3409 = vst [vmem:[%s5 + $0xf0] sm:$0xff] %v3297
        %3410 = vst [vmem:[%s5 + $0xf8] sm:$0xff] %v3298
        %3411 = vst [vmem:[%s5 + $0x100] sm:$0xff] %v3299
        %3412 = vst [vmem:[%s5 + $0x108] sm:$0xff] %v3300
        %3413 = vst.msk [vmem:[%s5 + $0x110] sm:$0xff] %vm2148, %v3301
        %3414 = vst [vmem:[%s5 + $0x118] sm:$0xff] %v3302
        %3415 = vst [vmem:[%s5 + $0x120] sm:$0xff] %v3303
        %3416 = vst [vmem:[%s5 + $0x128] sm:$0xff] %v3304
        %3417 = vst [vmem:[%s5 + $0x130] sm:$0xff] %v3305
        %3418 = vst [vmem:[%s5 + $0x138] sm:$0xff] %v3306
        %3419 = vst [vmem:[%s5 + $0x140] sm:$0xff] %v3307
        %3420 = vst.msk [vmem:[%s5 + $0x148] sm:$0xff] %vm2148, %v3308
        %3421 = vst [vmem:[%s5 + $0x150] sm:$0xff] %v3309
        %3422 = vst [vmem:[%s5 + $0x158] sm:$0xff] %v3310
        %3423 = vst [vmem:[%s5 + $0x160] sm:$0xff] %v3311
        %3424 = vst [vmem:[%s5 + $0x168] sm:$0xff] %v3312
        %3425 = vst [vmem:[%s5 + $0x170] sm:$0xff] %v3313
        %3426 = vst [vmem:[%s5 + $0x178] sm:$0xff] %v3314
        %3427 = vst.msk [vmem:[%s5 + $0x180] sm:$0xff] %vm2148, %v3315
        %3428 = vst [vmem:[%s5 + $0x188] sm:$0xff] %v3316
        %3429 = vst [vmem:[%s5 + $0x190] sm:$0xff] %v3317
        %3430 = vst [vmem:[%s5 + $0x198] sm:$0xff] %v3318
        %3431 = vst [vmem:[%s5 + $0x1a0] sm:$0xff] %v3319
        %3432 = vst [vmem:[%s5 + $0x1a8] sm:$0xff] %v3320
        %3433 = vst [vmem:[%s5 + $0x1b0] sm:$0xff] %v3321
        %3434 = vst.msk [vmem:[%s5 + $0x1b8] sm:$0xff] %vm2148, %v3322
        %3435 = vst [vmem:[%s5 + $0x1c0] sm:$0xff] %v3323
        %3436 = vst [vmem:[%s5 + $0x1c8] sm:$0xff] %v3324
        %3437 = vst [vmem:[%s5 + $0x1d0] sm:$0xff] %v3325
        %3438 = vst [vmem:[%s5 + $0x1d8] sm:$0xff] %v3326
        %3439 = vst [vmem:[%s5 + $0x1e0] sm:$0xff] %v3327
        %3440 = vst [vmem:[%s5 + $0x1e8] sm:$0xff] %v3328
        %3441 = vst.msk [vmem:[%s5 + $0x1f0] sm:$0xff] %vm2148, %v3329
        %3442 = vst [vmem:[%s5 + $0x1f8] sm:$0xff] %v3330
        %3443 = vst [vmem:[%s5 + $0x200] sm:$0xff] %v3331
        %3444 = vst [vmem:[%s5 + $0x208] sm:$0xff] %v3332
        %3445 = vst [vmem:[%s5 + $0x210] sm:$0xff] %v3333
        %3446 = vst [vmem:[%s5 + $0x218] sm:$0xff] %v3334
        %3447 = vst [vmem:[%s5 + $0x220] sm:$0xff] %v3335
        %3448 = vst.msk [vmem:[%s5 + $0x228] sm:$0xff] %vm2148, %v3336
        %3449 = vst [vmem:[%s5 + $0x230] sm:$0xff] %v3337
        %3450 = vst [vmem:[%s5 + $0x238] sm:$0xff] %v3338
        %3451 = vst [vmem:[%s5 + $0x240] sm:$0xff] %v3339
        %3452 = vst [vmem:[%s5 + $0x248] sm:$0xff] %v3340
        %3453 = vst [vmem:[%s5 + $0x250] sm:$0xff] %v3341
        %3454 = vst [vmem:[%s5 + $0x258] sm:$0xff] %v3342
        %3455 = vst.msk [vmem:[%s5 + $0x260] sm:$0xff] %vm2148, %v3343
        %3456 = vst [vmem:[%s5 + $0x268] sm:$0xff] %v3344
        %3457 = vst [vmem:[%s5 + $0x270] sm:$0xff] %v3345
        %3458 = vst [vmem:[%s5 + $0x278] sm:$0xff] %v3346
        %3459 = vst [vmem:[%s5 + $0x280] sm:$0xff] %v3347
        %3460 = vst [vmem:[%s5 + $0x288] sm:$0xff] %v3348
        %3461 = vst [vmem:[%s5 + $0x290] sm:$0xff] %v3349
        %3462 = vst.msk [vmem:[%s5 + $0x298] sm:$0xff] %vm2148, %v3350
        %3463 = vst [vmem:[%s5 + $0x2a0] sm:$0xff] %v3351
        %3464 = vst [vmem:[%s5 + $0x2a8] sm:$0xff] %v3352
        %3465 = vst [vmem:[%s5 + $0x2b0] sm:$0xff] %v3353
        %3466 = vst [vmem:[%s5 + $0x2b8] sm:$0xff] %v3354
        %3467 = vst [vmem:[%s5 + $0x2c0] sm:$0xff] %v3355
        %3468 = vst [vmem:[%s5 + $0x2c8] sm:$0xff] %v3356
        %3469 = vst.msk [vmem:[%s5 + $0x2d0] sm:$0xff] %vm2148, %v3357
        %3470 = vst [vmem:[%s5 + $0x2d8] sm:$0xff] %v3358
        %3471 = vst [vmem:[%s5 + $0x2e0] sm:$0xff] %v3359
        %3472 = vst [vmem:[%s5 + $0x2e8] sm:$0xff] %v3360
        %3473 = vst [vmem:[%s5 + $0x2f0] sm:$0xff] %v3361
        %3474 = vst [vmem:[%s5 + $0x2f8] sm:$0xff] %v3362
        %3475 = vst [vmem:[%s5 + $0x300] sm:$0xff] %v3363
        %3476 = vst.msk [vmem:[%s5 + $0x308] sm:$0xff] %vm2148, %v3364
        %3477 = vst [vmem:[%s5 + $0x310] sm:$0xff] %v3365
        %3478 = vst [vmem:[%s5 + $0x318] sm:$0xff] %v3366
        %3479 = vst [vmem:[%s5 + $0x320] sm:$0xff] %v3367
        %3480 = vst [vmem:[%s5 + $0x328] sm:$0xff] %v3368
        %3481 = vst [vmem:[%s5 + $0x330] sm:$0xff] %v3369
        %3482 = vst [vmem:[%s5 + $0x338] sm:$0xff] %v3370
        %3483 = vst.msk [vmem:[%s5 + $0x340] sm:$0xff] %vm2148, %v3371
        %3484 = vst [vmem:[%s5 + $0x348] sm:$0xff] %v3372
        %3485 = vst [vmem:[%s5 + $0x350] sm:$0xff] %v3373
        %3486 = vst [vmem:[%s5 + $0x358] sm:$0xff] %v3374
        %3487 = vst [vmem:[%s5 + $0x360] sm:$0xff] %v3375
        %3488 = vst [vmem:[%s5 + $0x368] sm:$0xff] %v3376
        %3489 = vst [vmem:[%s5 + $0x370] sm:$0xff] %v3377
        %3490 = vst.msk [vmem:[%s5 + $0x378] sm:$0xff] %vm2148, %v3378
      $region48: #{tpu_custom_call.1} parent=39 // pred_fallthru
        _
      // Predicated region
      $region49: #{tpu_custom_call.1} parent=39 // pred_check
        %p3491 = pneg %p144
      $region50: #{tpu_custom_call.1} parent=39 // pred_check_branch
        %3493 = sbr.rel (%p3491) target = $region52
      $region51: #{tpu_custom_call.1} parent=39 // pred_region
        _
      $region52: #{tpu_custom_call.1} parent=39 // pred_fallthru
        _
      // Predicated region
      $region53: #{tpu_custom_call.1} parent=39 // pred_check
        %p3494 = pneg %p144
      $region54: #{tpu_custom_call.1} parent=39 // pred_check_branch
        %3496 = sbr.rel (%p3494) target = $region56
      $region55: #{tpu_custom_call.1} parent=39 // pred_region
        _
      $region56: #{tpu_custom_call.1} parent=39 // pred_fallthru
        _
    $region40: #{tpu_custom_call.1} parent=5 // pred_fallthru
      _
    %p3497 = scmp.le.s32.totalorder 2, %s11
    // Predicated region
    $region57: #{tpu_custom_call.1} parent=5 // pred_check
      %p3498 = pneg %p3497
    $region58: #{tpu_custom_call.1} parent=5 // pred_check_branch
      %3500 = sbr.rel (%p3498) target = $region60
    $region59: #{tpu_custom_call.1} parent=5 // pred_region
      %s3501 = ssub.s32 %s11, 2
    $region60: #{tpu_custom_call.1} parent=5 // pred_fallthru
      _
  $region6: #{tpu_custom_call.1} parent=0 // loop_footer
    %s15 = sadd.s32 1, %s11
  $region7: #{tpu_custom_call.1} parent=0 // loop_footer_branch
    %10 = sbr.rel target = $region3
  $region8: #{tpu_custom_call.1} parent=0 // loop_exit
    _

</llo_original>
